<compile_context>
chip_gen: v7x
topology: tpu7x:2x2x1
jax: 0.10.0
libtpu: 0.0.40
codegen_flags: <defaults>
</compile_context>

<pallas_src>
import functools

import jax
import jax.numpy as jnp
from jax.experimental import pallas as pl
from jax.experimental.pallas import tpu as pltpu

D_IN, H1, H2, D_OUT = 784, 512, 256, 1
MAX_BLOCK_B = 1024  # ~14 MiB per-step working set; safe under the 32 MiB scoped VMEM limit


def _round_up(x, m):
    return ((x + m - 1) // m) * m


def _choose_block_b(B):
    """Batch-tile selection.

    * B_pad <= 1024: a single grid step — no per-step overhead, no pad waste
      beyond rounding the batch up to a sublane multiple of 8 (best on the
      single-TensorCore v5e/v6e; also fine on v7x at these tiny batches).
    * Larger B: the fewest <=1024-row steps, equalized across steps so v7x's
      two TensorCores get balanced work, and rounded to 128 rows so the
      transposed (1, block_b) output tiles stay lane-dense/unmasked.
    """
    B8 = _round_up(B, 8)
    if B8 <= MAX_BLOCK_B:
        return B8
    n_steps = pl.cdiv(B8, MAX_BLOCK_B)
    return _round_up(pl.cdiv(B8, n_steps), 128)


def _disc_kernel(x_ref, w1_ref, b1_ref, w2_ref, b2_ref, w3_ref, b3_ref, o_ref):
    # Layer 1: Linear(784 -> 512). x arrives f32 straight from HBM (no wrapper
    # pad/cast pass); the f32->bf16 cast is cheap VPU work hidden under the
    # matmul. K=784 is not a lane multiple; Mosaic masks the ragged tail.
    x = x_ref[...].astype(jnp.bfloat16)
    h = jnp.dot(x, w1_ref[...], preferred_element_type=jnp.float32)
    h = h + b1_ref[...]
    h = jnp.maximum(h, 0.2 * h)  # LeakyReLU(0.2): mul+max (2 VALU ops) vs cmp+mul+select

    # Layer 2: Linear(512 -> 256); activations re-quantized to bf16 for the MXU,
    # bias-add / LeakyReLU stay in f32 on the VPU.
    h = jnp.dot(h.astype(jnp.bfloat16), w2_ref[...],
                preferred_element_type=jnp.float32)
    h = h + b2_ref[...]
    h = jnp.maximum(h, 0.2 * h)

    # Layer 3: Linear(256 -> 1) as an M=1 matmul against h^T (q·k^T pattern):
    # the (1, block_b) logits come out already lane-major, so the final store
    # is a dense unmasked vst and no XLU lane-reduction/relayout is needed.
    logits = jnp.dot(w3_ref[...], h.T, preferred_element_type=jnp.float32)  # (1, block_b)
    logits = logits + b3_ref[...]

    # Exact sigmoid: approx reciprocal (~2^-12 rel. err) can exceed 1.0 for
    # large logits; the tensor is tiny so the exact divide is free.
    o_ref[...] = (1.0 / (1.0 + jnp.exp(-logits))).astype(o_ref.dtype)


@functools.partial(jax.jit, static_argnames=("block_b",))
def discriminator_forward(x, kparams, block_b=None):
    """x: (B, 784) float32. kparams: kernel-ready params from prepare_params()."""
    B = x.shape[0]
    if block_b is None:
        block_b = _choose_block_b(B)
    n_blocks = pl.cdiv(B, block_b)
    B_pad = n_blocks * block_b

    if block_b % 8:
        raise ValueError("block_b must be a multiple of 8")
    if n_blocks > 1 and block_b % 128:
        raise ValueError("block_b must be a multiple of 128 when it does not cover the batch")

    w1, b1, w2, b2, w3r, b3 = (kparams[k] for k in ("w1", "b1", "w2", "b2", "w3r", "b3"))

    # Grid-invariant operands (constant index_map): loaded once, kept resident.
    const = lambda shape: pl.BlockSpec(shape, lambda i: (0, 0))

    out = pl.pallas_call(
        _disc_kernel,
        out_shape=jax.ShapeDtypeStruct((1, B_pad), jnp.float32),
        grid_spec=pltpu.PrefetchScalarGridSpec(
            num_scalar_prefetch=0,
            grid=(n_blocks,),
            in_specs=[
                # x consumed as-is from HBM (f32, unpadded 784 lanes). The last
                # block may read a few rows past B (unspecified values); those
                # rows only feed output lanes that are sliced away below.
                pl.BlockSpec((block_b, D_IN), lambda i: (i, 0)),
                const((D_IN, H1)),   # w1 (bf16)
                const((1, H1)),      # b1 (f32)
                const((H1, H2)),     # w2 (bf16)
                const((1, H2)),      # b2 (f32)
                const((1, H2)),      # w3 row (f32)
                const((1, D_OUT)),   # b3 (f32)
            ],
            # Lane-dense output: one (1, block_b) row tile per grid step.
            out_specs=pl.BlockSpec((1, block_b), lambda i: (0, i)),
        ),
        compiler_params=pltpu.CompilerParams(
            dimension_semantics=("parallel",),  # >=2 steps shard across v7x's 2 TCs
            # Worst-case working set at block_b=1024 is ~14 MiB (f32 x tile
            # double-buffered + f32/bf16 intermediates + ~1 MiB bf16 weights):
            # above v5e's 16 MiB scoped default, equal to the v6e/v7x defaults,
            # and far below v7x's 64 MiB physical / v5e-v6e's 128 MiB VMEM.
            vmem_limit_bytes=32 * 1024 * 1024,
        ),
    )(x, w1, b1, w2, b2, w3r, b3)

    # (1, B_pad) -> (B, 1). Tiny (<= a few KiB); kept outside the kernel so the
    # kernel's HBM writeback stays a single contiguous lane-dense store.
    return out.reshape(B_pad, 1)[:B]


def init_params(key):
    """PyTorch nn.Linear-style init: U(-1/sqrt(fan_in), 1/sqrt(fan_in)); (in, out) layout."""
    ks = jax.random.split(key, 6)

    def lin(kw, kb, fan_in, fan_out):
        bound = 1.0 / jnp.sqrt(fan_in)
        w = jax.random.uniform(kw, (fan_in, fan_out), jnp.float32, -bound, bound)
        b = jax.random.uniform(kb, (1, fan_out), jnp.float32, -bound, bound)
        return w, b

    w1, b1 = lin(ks[0], ks[1], D_IN, H1)
    w2, b2 = lin(ks[2], ks[3], H1, H2)
    w3, b3 = lin(ks[4], ks[5], H2, D_OUT)
    return dict(w1=w1, b1=b1, w2=w2, b2=b2, w3=w3, b3=b3)


def prepare_params(p):
    """One-time host-side prep: cast matmul weights to bf16 (halves weight DMA),
    reshape w3 (256, 1) -> (1, 256) row for the in-kernel w3 @ h^T matmul."""
    return dict(
        w1=p["w1"].astype(jnp.bfloat16),
        b1=p["b1"].astype(jnp.float32),
        w2=p["w2"].astype(jnp.bfloat16),
        b2=p["b2"].astype(jnp.float32),
        w3r=p["w3"].reshape(1, H2).astype(jnp.float32),
        b3=p["b3"].astype(jnp.float32),
    )


def reference_forward(x, p):
    """Pure-JAX reference matching the kernel's precision (bf16 MXU inputs, f32 accum).
    Note: bf16 quantization of x / layer-1 activations is an intentional deviation
    from the f32 PyTorch reference, covered by the 2e-3 tolerance."""
    h = jnp.dot(x.astype(jnp.bfloat16), p["w1"].astype(jnp.bfloat16),
                preferred_element_type=jnp.float32) + p["b1"]
    h = jnp.where(h > 0, h, 0.2 * h)
    h = jnp.dot(h.astype(jnp.bfloat16), p["w2"].astype(jnp.bfloat16),
                preferred_element_type=jnp.float32) + p["b2"]
    h = jnp.where(h > 0, h, 0.2 * h)
    h = h @ p["w3"] + p["b3"]
    return jax.nn.sigmoid(h)


if __name__ == "__main__":
    key = jax.random.PRNGKey(0)
    k_params, k_x = jax.random.split(key)
    params = init_params(k_params)
    kparams = prepare_params(params)

    # B=300: not a multiple of 8 (exercises the ragged trailing rows of the x
    # tile, handled by Pallas's padded block reads — no wrapper pad needed).
    B = 300
    x = jax.random.normal(k_x, (B, D_IN), jnp.float32)

    ref = reference_forward(x, params)

    # Auto tiling: a single 304-row step, lane-dense (1, 304) output store.
    out = jax.block_until_ready(discriminator_forward(x, kparams))
    assert out.shape == (B, D_OUT)
    assert bool(jnp.all((out >= 0.0) & (out <= 1.0))), "sigmoid range violated"
    assert jnp.allclose(out, ref, atol=2e-3, rtol=2e-3), "mismatch vs reference (auto tile)"

    # Forced multi-step path: 3 x 128-row tiles — checks the lane-dense
    # (1, 128) output blocks and a >=2-step parallel grid (v7x megacore split).
    out_mb = jax.block_until_ready(discriminator_forward(x, kparams, block_b=128))
    assert out_mb.shape == (B, D_OUT)
    assert jnp.allclose(out_mb, ref, atol=2e-3, rtol=2e-3), "mismatch vs reference (block_b=128)"

    print("KERNEL_OK")
</pallas_src>

<mosaic_0001>
module attributes {stable_mosaic.version = 11 : i64} {
  func.func @_disc_kernel(%arg0: i32, %arg1: memref<304x784xf32, #tpu.memory_space<vmem>>, %arg2: memref<784x512xbf16, #tpu.memory_space<vmem>>, %arg3: memref<1x512xf32, #tpu.memory_space<vmem>>, %arg4: memref<512x256xbf16, #tpu.memory_space<vmem>>, %arg5: memref<1x256xf32, #tpu.memory_space<vmem>>, %arg6: memref<1x256xf32, #tpu.memory_space<vmem>>, %arg7: memref<1x1xf32, #tpu.memory_space<vmem>>, %arg8: memref<1x304xf32, #tpu.memory_space<vmem>>) attributes {dimension_semantics = [#tpu.dimension_semantics<parallel>], iteration_bounds = array<i64: 1>, scalar_prefetch = 0 : i64, scratch_operands = 0 : i64, tpu.core_type = #tpu.core_type<tc>, window_params = [{transform_indices = @transform_0, window_bounds = array<i64: 304, 784>}, {pipeline_mode = #tpu.pipeline_mode<synchronous>, transform_indices = @transform_1, window_bounds = array<i64: 784, 512>}, {pipeline_mode = #tpu.pipeline_mode<synchronous>, transform_indices = @transform_2, window_bounds = array<i64: 1, 512>}, {pipeline_mode = #tpu.pipeline_mode<synchronous>, transform_indices = @transform_3, window_bounds = array<i64: 512, 256>}, {pipeline_mode = #tpu.pipeline_mode<synchronous>, transform_indices = @transform_4, window_bounds = array<i64: 1, 256>}, {pipeline_mode = #tpu.pipeline_mode<synchronous>, transform_indices = @transform_5, window_bounds = array<i64: 1, 256>}, {pipeline_mode = #tpu.pipeline_mode<synchronous>, transform_indices = @transform_6, window_bounds = array<i64: 1, 1>}, {transform_indices = @transform_7, window_bounds = array<i64: 1, 304>}]} {
    %c0 = arith.constant 0 : index
    %c0_0 = arith.constant 0 : index
    %0 = vector.load %arg1[%c0, %c0_0] : memref<304x784xf32, #tpu.memory_space<vmem>>, vector<304x784xf32>
    %1 = arith.truncf %0 : vector<304x784xf32> to vector<304x784xbf16>
    %c0_1 = arith.constant 0 : index
    %c0_2 = arith.constant 0 : index
    %2 = vector.load %arg2[%c0_1, %c0_2] : memref<784x512xbf16, #tpu.memory_space<vmem>>, vector<784x512xbf16>
    %cst = arith.constant dense<0.000000e+00> : vector<304x512xf32>
    %3 = tpu.matmul %1, %2, %cst {dimension_numbers = #tpu.dot_dimension_numbers<[1], [0], [0], [1], [0, 0, 1, 1], [], []>} : vector<304x784xbf16>, vector<784x512xbf16>, vector<304x512xf32> -> vector<304x512xf32>
    %c0_3 = arith.constant 0 : index
    %c0_4 = arith.constant 0 : index
    %4 = vector.load %arg3[%c0_3, %c0_4] : memref<1x512xf32, #tpu.memory_space<vmem>>, vector<1x512xf32>
    %5 = vector.broadcast %4 : vector<1x512xf32> to vector<304x512xf32>
    %6 = arith.addf %3, %5 : vector<304x512xf32>
    %cst_5 = arith.constant 2.000000e-01 : f32
    %7 = vector.broadcast %cst_5 : f32 to vector<304x512xf32>
    %8 = arith.mulf %7, %6 : vector<304x512xf32>
    %9 = arith.maximumf %6, %8 : vector<304x512xf32>
    %10 = arith.truncf %9 : vector<304x512xf32> to vector<304x512xbf16>
    %c0_6 = arith.constant 0 : index
    %c0_7 = arith.constant 0 : index
    %11 = vector.load %arg4[%c0_6, %c0_7] : memref<512x256xbf16, #tpu.memory_space<vmem>>, vector<512x256xbf16>
    %cst_8 = arith.constant dense<0.000000e+00> : vector<304x256xf32>
    %12 = tpu.matmul %10, %11, %cst_8 {dimension_numbers = #tpu.dot_dimension_numbers<[1], [0], [0], [1], [0, 0, 1, 1], [], []>} : vector<304x512xbf16>, vector<512x256xbf16>, vector<304x256xf32> -> vector<304x256xf32>
    %c0_9 = arith.constant 0 : index
    %c0_10 = arith.constant 0 : index
    %13 = vector.load %arg5[%c0_9, %c0_10] : memref<1x256xf32, #tpu.memory_space<vmem>>, vector<1x256xf32>
    %14 = vector.broadcast %13 : vector<1x256xf32> to vector<304x256xf32>
    %15 = arith.addf %12, %14 : vector<304x256xf32>
    %cst_11 = arith.constant 2.000000e-01 : f32
    %16 = vector.broadcast %cst_11 : f32 to vector<304x256xf32>
    %17 = arith.mulf %16, %15 : vector<304x256xf32>
    %18 = arith.maximumf %15, %17 : vector<304x256xf32>
    %c0_12 = arith.constant 0 : index
    %c0_13 = arith.constant 0 : index
    %19 = vector.load %arg6[%c0_12, %c0_13] : memref<1x256xf32, #tpu.memory_space<vmem>>, vector<1x256xf32>
    %20 = tpu.transpose %18, [1, 0] : vector<304x256xf32> -> vector<256x304xf32>
    %cst_14 = arith.constant dense<0.000000e+00> : vector<1x304xf32>
    %21 = tpu.matmul %19, %20, %cst_14 {dimension_numbers = #tpu.dot_dimension_numbers<[1], [0], [0], [1], [0, 0, 1, 1], [], []>} : vector<1x256xf32>, vector<256x304xf32>, vector<1x304xf32> -> vector<1x304xf32>
    %c0_15 = arith.constant 0 : index
    %c0_16 = arith.constant 0 : index
    %22 = vector.load %arg7[%c0_15, %c0_16] : memref<1x1xf32, #tpu.memory_space<vmem>>, vector<1x1xf32>
    %23 = vector.broadcast %22 : vector<1x1xf32> to vector<1x304xf32>
    %24 = arith.addf %21, %23 : vector<1x304xf32>
    %cst_17 = arith.constant 0.000000e+00 : f32
    %25 = vector.broadcast %cst_17 : f32 to vector<1x304xf32>
    %26 = arith.subf %25, %24 : vector<1x304xf32>
    %27 = math.exp %26 : vector<1x304xf32>
    %cst_18 = arith.constant 1.000000e+00 : f32
    %28 = vector.broadcast %cst_18 : f32 to vector<1x304xf32>
    %29 = arith.addf %28, %27 : vector<1x304xf32>
    %cst_19 = arith.constant 1.000000e+00 : f32
    %30 = vector.broadcast %cst_19 : f32 to vector<1x304xf32>
    %31 = arith.divf %30, %29 : vector<1x304xf32>
    %c0_20 = arith.constant 0 : index
    %c0_21 = arith.constant 0 : index
    %32 = vector.load %arg8[%c0_20, %c0_21] : memref<1x304xf32, #tpu.memory_space<vmem>>, vector<1x304xf32>
    tpu.vector_store %arg8[%c0_20, %c0_21], %31 {strides = array<i32>} : memref<1x304xf32, #tpu.memory_space<vmem>>, vector<1x304xf32>,
    return
  }
  func.func @transform_0(%arg0: i32) -> (i32, i32) {
    %c0_i32 = arith.constant 0 : i32
    %c0_i32_0 = arith.constant 0 : i32
    return %arg0, %c0_i32 : i32, i32
  }
  func.func @transform_1(%arg0: i32) -> (i32, i32) {
    %c0_i32 = arith.constant 0 : i32
    %c0_i32_0 = arith.constant 0 : i32
    %c0_i32_1 = arith.constant 0 : i32
    return %c0_i32, %c0_i32_0 : i32, i32
  }
  func.func @transform_2(%arg0: i32) -> (i32, i32) {
    %c0_i32 = arith.constant 0 : i32
    %c0_i32_0 = arith.constant 0 : i32
    %c0_i32_1 = arith.constant 0 : i32
    return %c0_i32, %c0_i32_0 : i32, i32
  }
  func.func @transform_3(%arg0: i32) -> (i32, i32) {
    %c0_i32 = arith.constant 0 : i32
    %c0_i32_0 = arith.constant 0 : i32
    %c0_i32_1 = arith.constant 0 : i32
    return %c0_i32, %c0_i32_0 : i32, i32
  }
  func.func @transform_4(%arg0: i32) -> (i32, i32) {
    %c0_i32 = arith.constant 0 : i32
    %c0_i32_0 = arith.constant 0 : i32
    %c0_i32_1 = arith.constant 0 : i32
    return %c0_i32, %c0_i32_0 : i32, i32
  }
  func.func @transform_5(%arg0: i32) -> (i32, i32) {
    %c0_i32 = arith.constant 0 : i32
    %c0_i32_0 = arith.constant 0 : i32
    %c0_i32_1 = arith.constant 0 : i32
    return %c0_i32, %c0_i32_0 : i32, i32
  }
  func.func @transform_6(%arg0: i32) -> (i32, i32) {
    %c0_i32 = arith.constant 0 : i32
    %c0_i32_0 = arith.constant 0 : i32
    %c0_i32_1 = arith.constant 0 : i32
    return %c0_i32, %c0_i32_0 : i32, i32
  }
  func.func @transform_7(%arg0: i32) -> (i32, i32) {
    %c0_i32 = arith.constant 0 : i32
    %c0_i32_0 = arith.constant 0 : i32
    return %c0_i32, %arg0 : i32, i32
  }
}

</mosaic_0001>

<llo_original>
// kernel: discriminator_forward.1
$region0: #{discriminator_forward.1}
  #allocation0 [shape = 'u32[]', space=smem, size = 0x4, offset = 0x4, fixed_abs, tag = 'smem constant byte address 0x4 - core index']
  #allocation1 [shape = 'u32[144,128]{1,0:T(1,128)}', space=vmem, size = 0x12000, scoped, tag = 'internal scratch']
  #allocation2 [shape = 'f32[1,1]{1,0:T(1,128)S(1)}', space=vmem, size = 0x200, scoped, tag = 'scoped memory for discriminator_forward.1']
  %s0 = inlined_call_operand.hbm [shape: f32[300,784], index: 0, kind: input, shape index: {}]
  %s1 = inlined_call_operand.hbm [shape: bf16[784,512], index: 1, kind: input, shape index: {}]
  %s2 = inlined_call_operand.hbm [shape: f32[1,512], index: 2, kind: input, shape index: {}]
  %s3 = inlined_call_operand.hbm [shape: bf16[512,256], index: 3, kind: input, shape index: {}]
  %s4 = inlined_call_operand.hbm [shape: f32[1,256], index: 4, kind: input, shape index: {}]
  %s5 = inlined_call_operand.hbm [shape: f32[1,256], index: 5, kind: input, shape index: {}]
  %s6 = inlined_call_operand.<no memory space> [shape: f32[1,1], index: 6, kind: input, shape index: {}]
  %s7 = inlined_call_operand.vmem [shape: f32[1,304], index: 7, kind: output, shape index: {}]
  %s8 = sld [smem:[#allocation0]]
  $region62: #{discriminator_forward.1} parent=0
    _
  %s10 = ssub.s32 1, %s8
  %s11 = scalar_select 0, %s10, %s8
  %v12 = vstv %s6
  %13 = vst [vmem:[#allocation2] sm:$0x1] %v12
  $region1: #{discriminator_forward.1} parent=0
    #allocation3 [shape = 'u8[1089536]{0}', space=vmem, size = 0x10a000, scoped, tag = 'input window, operand 0, single buffered']
    #allocation4 [shape = 's32[1]{0}', space=sflag, size = 0x4, scoped, tag = 'scoped memory for discriminator_forward.1']
    #allocation5 [shape = 'u8[802816]{0}', space=vmem, size = 0xc4000, scoped, tag = 'input window, operand 1, single buffered']
    #allocation6 [shape = 's32[1]{0}', space=sflag, size = 0x4, scoped, tag = 'scoped memory for discriminator_forward.1']
    #allocation7 [shape = 'u8[2048]{0}', space=vmem, size = 0x800, scoped, tag = 'input window, operand 2, single buffered']
    #allocation8 [shape = 'u8[262144]{0}', space=vmem, size = 0x40000, scoped, tag = 'input window, operand 3, single buffered']
    #allocation9 [shape = 's32[1]{0}', space=sflag, size = 0x4, scoped, tag = 'scoped memory for discriminator_forward.1']
    #allocation10 [shape = 'u8[1024]{0}', space=vmem, size = 0x400, scoped, tag = 'input window, operand 4, single buffered']
    #allocation11 [shape = 'u8[1024]{0}', space=vmem, size = 0x400, scoped, tag = 'input window, operand 5, single buffered']
    #allocation12 [shape = 's32[1]{0}', space=sflag, size = 0x4, scoped, tag = 'scoped memory for discriminator_forward.1']
    %14 = vsyncpa [#allocation4], 0
    %15 = vsyncpa [#allocation6], 0
    %16 = vsyncpa [#allocation9], 0
    %17 = vsyncpa [#allocation12], 0
    // Predicated region
    $region2: #{discriminator_forward.1} parent=1 // pred_check
      _
    $region3: #{discriminator_forward.1} parent=1 // pred_check_branch
      %19 = sbr.rel (0) target = $region5
    $region4: #{discriminator_forward.1} parent=1 // pred_region
      %s21 = ssub.s32 34048, 34048
      %22 = vsyncadd [#allocation4], %s21
      %s23 = sshll.u32 [#allocation3], 4
      %s24 = int_to_ptr.vmem [resolvable:$true] %s23
      %29 = dma.hbm_to_vmem [thread:$0]  %s0, 34048, %s24, [#allocation4], 896, 896, 56
    $region5: #{discriminator_forward.1} parent=1 // pred_fallthru
      _
    // Predicated region
    $region6: #{discriminator_forward.1} parent=1 // pred_check
      _
    $region7: #{discriminator_forward.1} parent=1 // pred_check_branch
      %31 = sbr.rel (0) target = $region9
    $region8: #{discriminator_forward.1} parent=1 // pred_region
      %s33 = ssub.s32 25088, 25088
      %34 = vsyncadd [#allocation6], %s33
      %s35 = sshll.u32 [#allocation5], 4
      %s36 = int_to_ptr.vmem [resolvable:$true] %s35
      %41 = dma.hbm_to_vmem [thread:$0]  %s1, 25088, %s36, [#allocation6], 256, 256, 16
    $region9: #{discriminator_forward.1} parent=1 // pred_fallthru
      _
    // Predicated region
    $region10: #{discriminator_forward.1} parent=1 // pred_check
      _
    $region11: #{discriminator_forward.1} parent=1 // pred_check_branch
      %43 = sbr.rel (0) target = $region13
    $region12: #{discriminator_forward.1} parent=1 // pred_region
      %s45 = ssub.s32 64, 64
      %46 = vsyncadd [#allocation6], %s45
      %s48 = sshll.u32 [#allocation7], 4
      %s49 = int_to_ptr.vmem [resolvable:$true] %s48
      %51 = dma.hbm_to_vmem [thread:$0]  %s2, 64, %s49, [#allocation6]
    $region13: #{discriminator_forward.1} parent=1 // pred_fallthru
      _
    // Predicated region
    $region14: #{discriminator_forward.1} parent=1 // pred_check
      _
    $region15: #{discriminator_forward.1} parent=1 // pred_check_branch
      %53 = sbr.rel (0) target = $region17
    $region16: #{discriminator_forward.1} parent=1 // pred_region
      %s55 = ssub.s32 8192, 8192
      %56 = vsyncadd [#allocation9], %s55
      %s57 = sshll.u32 [#allocation8], 4
      %s58 = int_to_ptr.vmem [resolvable:$true] %s57
      %63 = dma.hbm_to_vmem [thread:$0]  %s3, 8192, %s58, [#allocation9], 128, 128, 8
    $region17: #{discriminator_forward.1} parent=1 // pred_fallthru
      _
    // Predicated region
    $region18: #{discriminator_forward.1} parent=1 // pred_check
      _
    $region19: #{discriminator_forward.1} parent=1 // pred_check_branch
      %65 = sbr.rel (0) target = $region21
    $region20: #{discriminator_forward.1} parent=1 // pred_region
      %s67 = ssub.s32 32, 32
      %68 = vsyncadd [#allocation9], %s67
      %s70 = sshll.u32 [#allocation10], 4
      %s71 = int_to_ptr.vmem [resolvable:$true] %s70
      %73 = dma.hbm_to_vmem [thread:$0]  %s4, 32, %s71, [#allocation9]
    $region21: #{discriminator_forward.1} parent=1 // pred_fallthru
      _
    // Predicated region
    $region22: #{discriminator_forward.1} parent=1 // pred_check
      _
    $region23: #{discriminator_forward.1} parent=1 // pred_check_branch
      %75 = sbr.rel (0) target = $region25
    $region24: #{discriminator_forward.1} parent=1 // pred_region
      %s77 = ssub.s32 32, 32
      %78 = vsyncadd [#allocation12], %s77
      %s80 = sshll.u32 [#allocation11], 4
      %s81 = int_to_ptr.vmem [resolvable:$true] %s80
      %83 = dma.hbm_to_vmem [thread:$0]  %s5, 32, %s81, [#allocation12]
    $region25: #{discriminator_forward.1} parent=1 // pred_fallthru
      _
    // Predicated region
    $region26: #{discriminator_forward.1} parent=1 // pred_check
      _
    $region27: #{discriminator_forward.1} parent=1 // pred_check_branch
      %85 = sbr.rel (0) target = $region29
    $region28: #{discriminator_forward.1} parent=1 // pred_region
      _
    $region29: #{discriminator_forward.1} parent=1 // pred_fallthru
      _
    // Predicated region
    $region30: #{discriminator_forward.1} parent=1 // pred_check
      _
    $region31: #{discriminator_forward.1} parent=1 // pred_check_branch
      %87 = sbr.rel (0) target = $region33
    $region32: #{discriminator_forward.1} parent=1 // pred_region
      %88 = dma.done [#allocation4], 34048
    $region33: #{discriminator_forward.1} parent=1 // pred_fallthru
      _
    // Predicated region
    $region34: #{discriminator_forward.1} parent=1 // pred_check
      _
    $region35: #{discriminator_forward.1} parent=1 // pred_check_branch
      %90 = sbr.rel (0) target = $region37
    $region36: #{discriminator_forward.1} parent=1 // pred_region
      %91 = dma.done [#allocation6], 25088
    $region37: #{discriminator_forward.1} parent=1 // pred_fallthru
      _
    // Predicated region
    $region38: #{discriminator_forward.1} parent=1 // pred_check
      _
    $region39: #{discriminator_forward.1} parent=1 // pred_check_branch
      %93 = sbr.rel (0) target = $region41
    $region40: #{discriminator_forward.1} parent=1 // pred_region
      %94 = dma.done [#allocation6], 64
    $region41: #{discriminator_forward.1} parent=1 // pred_fallthru
      _
    // Predicated region
    $region42: #{discriminator_forward.1} parent=1 // pred_check
      _
    $region43: #{discriminator_forward.1} parent=1 // pred_check_branch
      %96 = sbr.rel (0) target = $region45
    $region44: #{discriminator_forward.1} parent=1 // pred_region
      %97 = dma.done [#allocation9], 8192
    $region45: #{discriminator_forward.1} parent=1 // pred_fallthru
      _
    // Predicated region
    $region46: #{discriminator_forward.1} parent=1 // pred_check
      _
    $region47: #{discriminator_forward.1} parent=1 // pred_check_branch
      %99 = sbr.rel (0) target = $region49
    $region48: #{discriminator_forward.1} parent=1 // pred_region
      %100 = dma.done [#allocation9], 32
    $region49: #{discriminator_forward.1} parent=1 // pred_fallthru
      _
    // Predicated region
    $region50: #{discriminator_forward.1} parent=1 // pred_check
      _
    $region51: #{discriminator_forward.1} parent=1 // pred_check_branch
      %102 = sbr.rel (0) target = $region53
    $region52: #{discriminator_forward.1} parent=1 // pred_region
      %103 = dma.done [#allocation12], 32
    $region53: #{discriminator_forward.1} parent=1 // pred_fallthru
      _
    %v105 = vld [vmem:[#allocation3] sm:$0xff]
    %v106 = vld [vmem:[#allocation3 + $0x8] sm:$0xff]
    %v107 = vld [vmem:[#allocation3 + $0x10] sm:$0xff]
    %v108 = vld [vmem:[#allocation3 + $0x18] sm:$0xff]
    %v109 = vld [vmem:[#allocation3 + $0x20] sm:$0xff]
    %v110 = vld [vmem:[#allocation3 + $0x28] sm:$0xff]
    %v111 = vld [vmem:[#allocation3 + $0x30] sm:$0xff]
    %v112 = vld [vmem:[#allocation3 + $0x38] sm:$0xff]
    %v113 = vld [vmem:[#allocation3 + $0x40] sm:$0xff]
    %v114 = vld [vmem:[#allocation3 + $0x48] sm:$0xff]
    %v115 = vld [vmem:[#allocation3 + $0x50] sm:$0xff]
    %v116 = vld [vmem:[#allocation3 + $0x58] sm:$0xff]
    %v117 = vld [vmem:[#allocation3 + $0x60] sm:$0xff]
    %v118 = vld [vmem:[#allocation3 + $0x68] sm:$0xff]
    %v119 = vld [vmem:[#allocation3 + $0x70] sm:$0xff]
    %v120 = vld [vmem:[#allocation3 + $0x78] sm:$0xff]
    %v121 = vld [vmem:[#allocation3 + $0x80] sm:$0xff]
    %v122 = vld [vmem:[#allocation3 + $0x88] sm:$0xff]
    %v123 = vld [vmem:[#allocation3 + $0x90] sm:$0xff]
    %v124 = vld [vmem:[#allocation3 + $0x98] sm:$0xff]
    %v125 = vld [vmem:[#allocation3 + $0xa0] sm:$0xff]
    %v126 = vld [vmem:[#allocation3 + $0xa8] sm:$0xff]
    %v127 = vld [vmem:[#allocation3 + $0xb0] sm:$0xff]
    %v128 = vld [vmem:[#allocation3 + $0xb8] sm:$0xff]
    %v129 = vld [vmem:[#allocation3 + $0xc0] sm:$0xff]
    %v130 = vld [vmem:[#allocation3 + $0xc8] sm:$0xff]
    %v131 = vld [vmem:[#allocation3 + $0xd0] sm:$0xff]
    %v132 = vld [vmem:[#allocation3 + $0xd8] sm:$0xff]
    %v133 = vld [vmem:[#allocation3 + $0xe0] sm:$0xff]
    %v134 = vld [vmem:[#allocation3 + $0xe8] sm:$0xff]
    %v135 = vld [vmem:[#allocation3 + $0xf0] sm:$0xff]
    %v136 = vld [vmem:[#allocation3 + $0xf8] sm:$0xff]
    %v137 = vld [vmem:[#allocation3 + $0x100] sm:$0xff]
    %v138 = vld [vmem:[#allocation3 + $0x108] sm:$0xff]
    %v139 = vld [vmem:[#allocation3 + $0x110] sm:$0xff]
    %v140 = vld [vmem:[#allocation3 + $0x118] sm:$0xff]
    %v141 = vld [vmem:[#allocation3 + $0x120] sm:$0xff]
    %v142 = vld [vmem:[#allocation3 + $0x128] sm:$0xff]
    %v143 = vld [vmem:[#allocation3 + $0x130] sm:$0xff]
    %v144 = vld [vmem:[#allocation3 + $0x138] sm:$0xff]
    %v145 = vld [vmem:[#allocation3 + $0x140] sm:$0xff]
    %v146 = vld [vmem:[#allocation3 + $0x148] sm:$0xff]
    %v147 = vld [vmem:[#allocation3 + $0x150] sm:$0xff]
    %v148 = vld [vmem:[#allocation3 + $0x158] sm:$0xff]
    %v149 = vld [vmem:[#allocation3 + $0x160] sm:$0xff]
    %v150 = vld [vmem:[#allocation3 + $0x168] sm:$0xff]
    %v151 = vld [vmem:[#allocation3 + $0x170] sm:$0xff]
    %v152 = vld [vmem:[#allocation3 + $0x178] sm:$0xff]
    %v153 = vld [vmem:[#allocation3 + $0x180] sm:$0xff]
    %v154 = vld [vmem:[#allocation3 + $0x188] sm:$0xff]
    %v155 = vld [vmem:[#allocation3 + $0x190] sm:$0xff]
    %v156 = vld [vmem:[#allocation3 + $0x198] sm:$0xff]
    %v157 = vld [vmem:[#allocation3 + $0x1a0] sm:$0xff]
    %v158 = vld [vmem:[#allocation3 + $0x1a8] sm:$0xff]
    %v159 = vld [vmem:[#allocation3 + $0x1b0] sm:$0xff]
    %v160 = vld [vmem:[#allocation3 + $0x1b8] sm:$0xff]
    %v161 = vld [vmem:[#allocation3 + $0x1c0] sm:$0xff]
    %v162 = vld [vmem:[#allocation3 + $0x1c8] sm:$0xff]
    %v163 = vld [vmem:[#allocation3 + $0x1d0] sm:$0xff]
    %v164 = vld [vmem:[#allocation3 + $0x1d8] sm:$0xff]
    %v165 = vld [vmem:[#allocation3 + $0x1e0] sm:$0xff]
    %v166 = vld [vmem:[#allocation3 + $0x1e8] sm:$0xff]
    %v167 = vld [vmem:[#allocation3 + $0x1f0] sm:$0xff]
    %v168 = vld [vmem:[#allocation3 + $0x1f8] sm:$0xff]
    %v169 = vld [vmem:[#allocation3 + $0x200] sm:$0xff]
    %v170 = vld [vmem:[#allocation3 + $0x208] sm:$0xff]
    %v171 = vld [vmem:[#allocation3 + $0x210] sm:$0xff]
    %v172 = vld [vmem:[#allocation3 + $0x218] sm:$0xff]
    %v173 = vld [vmem:[#allocation3 + $0x220] sm:$0xff]
    %v174 = vld [vmem:[#allocation3 + $0x228] sm:$0xff]
    %v175 = vld [vmem:[#allocation3 + $0x230] sm:$0xff]
    %v176 = vld [vmem:[#allocation3 + $0x238] sm:$0xff]
    %v177 = vld [vmem:[#allocation3 + $0x240] sm:$0xff]
    %v178 = vld [vmem:[#allocation3 + $0x248] sm:$0xff]
    %v179 = vld [vmem:[#allocation3 + $0x250] sm:$0xff]
    %v180 = vld [vmem:[#allocation3 + $0x258] sm:$0xff]
    %v181 = vld [vmem:[#allocation3 + $0x260] sm:$0xff]
    %v182 = vld [vmem:[#allocation3 + $0x268] sm:$0xff]
    %v183 = vld [vmem:[#allocation3 + $0x270] sm:$0xff]
    %v184 = vld [vmem:[#allocation3 + $0x278] sm:$0xff]
    %v185 = vld [vmem:[#allocation3 + $0x280] sm:$0xff]
    %v186 = vld [vmem:[#allocation3 + $0x288] sm:$0xff]
    %v187 = vld [vmem:[#allocation3 + $0x290] sm:$0xff]
    %v188 = vld [vmem:[#allocation3 + $0x298] sm:$0xff]
    %v189 = vld [vmem:[#allocation3 + $0x2a0] sm:$0xff]
    %v190 = vld [vmem:[#allocation3 + $0x2a8] sm:$0xff]
    %v191 = vld [vmem:[#allocation3 + $0x2b0] sm:$0xff]
    %v192 = vld [vmem:[#allocation3 + $0x2b8] sm:$0xff]
    %v193 = vld [vmem:[#allocation3 + $0x2c0] sm:$0xff]
    %v194 = vld [vmem:[#allocation3 + $0x2c8] sm:$0xff]
    %v195 = vld [vmem:[#allocation3 + $0x2d0] sm:$0xff]
    %v196 = vld [vmem:[#allocation3 + $0x2d8] sm:$0xff]
    %v197 = vld [vmem:[#allocation3 + $0x2e0] sm:$0xff]
    %v198 = vld [vmem:[#allocation3 + $0x2e8] sm:$0xff]
    %v199 = vld [vmem:[#allocation3 + $0x2f0] sm:$0xff]
    %v200 = vld [vmem:[#allocation3 + $0x2f8] sm:$0xff]
    %v201 = vld [vmem:[#allocation3 + $0x300] sm:$0xff]
    %v202 = vld [vmem:[#allocation3 + $0x308] sm:$0xff]
    %v203 = vld [vmem:[#allocation3 + $0x310] sm:$0xff]
    %v204 = vld [vmem:[#allocation3 + $0x318] sm:$0xff]
    %v205 = vld [vmem:[#allocation3 + $0x320] sm:$0xff]
    %v206 = vld [vmem:[#allocation3 + $0x328] sm:$0xff]
    %v207 = vld [vmem:[#allocation3 + $0x330] sm:$0xff]
    %v208 = vld [vmem:[#allocation3 + $0x338] sm:$0xff]
    %v209 = vld [vmem:[#allocation3 + $0x340] sm:$0xff]
    %v210 = vld [vmem:[#allocation3 + $0x348] sm:$0xff]
    %v211 = vld [vmem:[#allocation3 + $0x350] sm:$0xff]
    %v212 = vld [vmem:[#allocation3 + $0x358] sm:$0xff]
    %v213 = vld [vmem:[#allocation3 + $0x360] sm:$0xff]
    %v214 = vld [vmem:[#allocation3 + $0x368] sm:$0xff]
    %v215 = vld [vmem:[#allocation3 + $0x370] sm:$0xff]
    %v216 = vld [vmem:[#allocation3 + $0x378] sm:$0xff]
    %v217 = vld [vmem:[#allocation3 + $0x380] sm:$0xff]
    %v218 = vld [vmem:[#allocation3 + $0x388] sm:$0xff]
    %v219 = vld [vmem:[#allocation3 + $0x390] sm:$0xff]
    %v220 = vld [vmem:[#allocation3 + $0x398] sm:$0xff]
    %v221 = vld [vmem:[#allocation3 + $0x3a0] sm:$0xff]
    %v222 = vld [vmem:[#allocation3 + $0x3a8] sm:$0xff]
    %v223 = vld [vmem:[#allocation3 + $0x3b0] sm:$0xff]
    %v224 = vld [vmem:[#allocation3 + $0x3b8] sm:$0xff]
    %v225 = vld [vmem:[#allocation3 + $0x3c0] sm:$0xff]
    %v226 = vld [vmem:[#allocation3 + $0x3c8] sm:$0xff]
    %v227 = vld [vmem:[#allocation3 + $0x3d0] sm:$0xff]
    %v228 = vld [vmem:[#allocation3 + $0x3d8] sm:$0xff]
    %v229 = vld [vmem:[#allocation3 + $0x3e0] sm:$0xff]
    %v230 = vld [vmem:[#allocation3 + $0x3e8] sm:$0xff]
    %v231 = vld [vmem:[#allocation3 + $0x3f0] sm:$0xff]
    %v232 = vld [vmem:[#allocation3 + $0x3f8] sm:$0xff]
    %v233 = vld [vmem:[#allocation3 + $0x400] sm:$0xff]
    %v234 = vld [vmem:[#allocation3 + $0x408] sm:$0xff]
    %v235 = vld [vmem:[#allocation3 + $0x410] sm:$0xff]
    %v236 = vld [vmem:[#allocation3 + $0x418] sm:$0xff]
    %v237 = vld [vmem:[#allocation3 + $0x420] sm:$0xff]
    %v238 = vld [vmem:[#allocation3 + $0x428] sm:$0xff]
    %v239 = vld [vmem:[#allocation3 + $0x430] sm:$0xff]
    %v240 = vld [vmem:[#allocation3 + $0x438] sm:$0xff]
    %v241 = vld [vmem:[#allocation3 + $0x440] sm:$0xff]
    %v242 = vld [vmem:[#allocation3 + $0x448] sm:$0xff]
    %v243 = vld [vmem:[#allocation3 + $0x450] sm:$0xff]
    %v244 = vld [vmem:[#allocation3 + $0x458] sm:$0xff]
    %v245 = vld [vmem:[#allocation3 + $0x460] sm:$0xff]
    %v246 = vld [vmem:[#allocation3 + $0x468] sm:$0xff]
    %v247 = vld [vmem:[#allocation3 + $0x470] sm:$0xff]
    %v248 = vld [vmem:[#allocation3 + $0x478] sm:$0xff]
    %v249 = vld [vmem:[#allocation3 + $0x480] sm:$0xff]
    %v250 = vld [vmem:[#allocation3 + $0x488] sm:$0xff]
    %v251 = vld [vmem:[#allocation3 + $0x490] sm:$0xff]
    %v252 = vld [vmem:[#allocation3 + $0x498] sm:$0xff]
    %v253 = vld [vmem:[#allocation3 + $0x4a0] sm:$0xff]
    %v254 = vld [vmem:[#allocation3 + $0x4a8] sm:$0xff]
    %v255 = vld [vmem:[#allocation3 + $0x4b0] sm:$0xff]
    %v256 = vld [vmem:[#allocation3 + $0x4b8] sm:$0xff]
    %v257 = vld [vmem:[#allocation3 + $0x4c0] sm:$0xff]
    %v258 = vld [vmem:[#allocation3 + $0x4c8] sm:$0xff]
    %v259 = vld [vmem:[#allocation3 + $0x4d0] sm:$0xff]
    %v260 = vld [vmem:[#allocation3 + $0x4d8] sm:$0xff]
    %v261 = vld [vmem:[#allocation3 + $0x4e0] sm:$0xff]
    %v262 = vld [vmem:[#allocation3 + $0x4e8] sm:$0xff]
    %v263 = vld [vmem:[#allocation3 + $0x4f0] sm:$0xff]
    %v264 = vld [vmem:[#allocation3 + $0x4f8] sm:$0xff]
    %v265 = vld [vmem:[#allocation3 + $0x500] sm:$0xff]
    %v266 = vld [vmem:[#allocation3 + $0x508] sm:$0xff]
    %v267 = vld [vmem:[#allocation3 + $0x510] sm:$0xff]
    %v268 = vld [vmem:[#allocation3 + $0x518] sm:$0xff]
    %v269 = vld [vmem:[#allocation3 + $0x520] sm:$0xff]
    %v270 = vld [vmem:[#allocation3 + $0x528] sm:$0xff]
    %v271 = vld [vmem:[#allocation3 + $0x530] sm:$0xff]
    %v272 = vld [vmem:[#allocation3 + $0x538] sm:$0xff]
    %v273 = vld [vmem:[#allocation3 + $0x540] sm:$0xff]
    %v274 = vld [vmem:[#allocation3 + $0x548] sm:$0xff]
    %v275 = vld [vmem:[#allocation3 + $0x550] sm:$0xff]
    %v276 = vld [vmem:[#allocation3 + $0x558] sm:$0xff]
    %v277 = vld [vmem:[#allocation3 + $0x560] sm:$0xff]
    %v278 = vld [vmem:[#allocation3 + $0x568] sm:$0xff]
    %v279 = vld [vmem:[#allocation3 + $0x570] sm:$0xff]
    %v280 = vld [vmem:[#allocation3 + $0x578] sm:$0xff]
    %v281 = vld [vmem:[#allocation3 + $0x580] sm:$0xff]
    %v282 = vld [vmem:[#allocation3 + $0x588] sm:$0xff]
    %v283 = vld [vmem:[#allocation3 + $0x590] sm:$0xff]
    %v284 = vld [vmem:[#allocation3 + $0x598] sm:$0xff]
    %v285 = vld [vmem:[#allocation3 + $0x5a0] sm:$0xff]
    %v286 = vld [vmem:[#allocation3 + $0x5a8] sm:$0xff]
    %v287 = vld [vmem:[#allocation3 + $0x5b0] sm:$0xff]
    %v288 = vld [vmem:[#allocation3 + $0x5b8] sm:$0xff]
    %v289 = vld [vmem:[#allocation3 + $0x5c0] sm:$0xff]
    %v290 = vld [vmem:[#allocation3 + $0x5c8] sm:$0xff]
    %v291 = vld [vmem:[#allocation3 + $0x5d0] sm:$0xff]
    %v292 = vld [vmem:[#allocation3 + $0x5d8] sm:$0xff]
    %v293 = vld [vmem:[#allocation3 + $0x5e0] sm:$0xff]
    %v294 = vld [vmem:[#allocation3 + $0x5e8] sm:$0xff]
    %v295 = vld [vmem:[#allocation3 + $0x5f0] sm:$0xff]
    %v296 = vld [vmem:[#allocation3 + $0x5f8] sm:$0xff]
    %v297 = vld [vmem:[#allocation3 + $0x600] sm:$0xff]
    %v298 = vld [vmem:[#allocation3 + $0x608] sm:$0xff]
    %v299 = vld [vmem:[#allocation3 + $0x610] sm:$0xff]
    %v300 = vld [vmem:[#allocation3 + $0x618] sm:$0xff]
    %v301 = vld [vmem:[#allocation3 + $0x620] sm:$0xff]
    %v302 = vld [vmem:[#allocation3 + $0x628] sm:$0xff]
    %v303 = vld [vmem:[#allocation3 + $0x630] sm:$0xff]
    %v304 = vld [vmem:[#allocation3 + $0x638] sm:$0xff]
    %v305 = vld [vmem:[#allocation3 + $0x640] sm:$0xff]
    %v306 = vld [vmem:[#allocation3 + $0x648] sm:$0xff]
    %v307 = vld [vmem:[#allocation3 + $0x650] sm:$0xff]
    %v308 = vld [vmem:[#allocation3 + $0x658] sm:$0xff]
    %v309 = vld [vmem:[#allocation3 + $0x660] sm:$0xff]
    %v310 = vld [vmem:[#allocation3 + $0x668] sm:$0xff]
    %v311 = vld [vmem:[#allocation3 + $0x670] sm:$0xff]
    %v312 = vld [vmem:[#allocation3 + $0x678] sm:$0xff]
    %v313 = vld [vmem:[#allocation3 + $0x680] sm:$0xff]
    %v314 = vld [vmem:[#allocation3 + $0x688] sm:$0xff]
    %v315 = vld [vmem:[#allocation3 + $0x690] sm:$0xff]
    %v316 = vld [vmem:[#allocation3 + $0x698] sm:$0xff]
    %v317 = vld [vmem:[#allocation3 + $0x6a0] sm:$0xff]
    %v318 = vld [vmem:[#allocation3 + $0x6a8] sm:$0xff]
    %v319 = vld [vmem:[#allocation3 + $0x6b0] sm:$0xff]
    %v320 = vld [vmem:[#allocation3 + $0x6b8] sm:$0xff]
    %v321 = vld [vmem:[#allocation3 + $0x6c0] sm:$0xff]
    %v322 = vld [vmem:[#allocation3 + $0x6c8] sm:$0xff]
    %v323 = vld [vmem:[#allocation3 + $0x6d0] sm:$0xff]
    %v324 = vld [vmem:[#allocation3 + $0x6d8] sm:$0xff]
    %v325 = vld [vmem:[#allocation3 + $0x6e0] sm:$0xff]
    %v326 = vld [vmem:[#allocation3 + $0x6e8] sm:$0xff]
    %v327 = vld [vmem:[#allocation3 + $0x6f0] sm:$0xff]
    %v328 = vld [vmem:[#allocation3 + $0x6f8] sm:$0xff]
    %v329 = vld [vmem:[#allocation3 + $0x700] sm:$0xff]
    %v330 = vld [vmem:[#allocation3 + $0x708] sm:$0xff]
    %v331 = vld [vmem:[#allocation3 + $0x710] sm:$0xff]
    %v332 = vld [vmem:[#allocation3 + $0x718] sm:$0xff]
    %v333 = vld [vmem:[#allocation3 + $0x720] sm:$0xff]
    %v334 = vld [vmem:[#allocation3 + $0x728] sm:$0xff]
    %v335 = vld [vmem:[#allocation3 + $0x730] sm:$0xff]
    %v336 = vld [vmem:[#allocation3 + $0x738] sm:$0xff]
    %v337 = vld [vmem:[#allocation3 + $0x740] sm:$0xff]
    %v338 = vld [vmem:[#allocation3 + $0x748] sm:$0xff]
    %v339 = vld [vmem:[#allocation3 + $0x750] sm:$0xff]
    %v340 = vld [vmem:[#allocation3 + $0x758] sm:$0xff]
    %v341 = vld [vmem:[#allocation3 + $0x760] sm:$0xff]
    %v342 = vld [vmem:[#allocation3 + $0x768] sm:$0xff]
    %v343 = vld [vmem:[#allocation3 + $0x770] sm:$0xff]
    %v344 = vld [vmem:[#allocation3 + $0x778] sm:$0xff]
    %v345 = vld [vmem:[#allocation3 + $0x780] sm:$0xff]
    %v346 = vld [vmem:[#allocation3 + $0x788] sm:$0xff]
    %v347 = vld [vmem:[#allocation3 + $0x790] sm:$0xff]
    %v348 = vld [vmem:[#allocation3 + $0x798] sm:$0xff]
    %v349 = vld [vmem:[#allocation3 + $0x7a0] sm:$0xff]
    %v350 = vld [vmem:[#allocation3 + $0x7a8] sm:$0xff]
    %v351 = vld [vmem:[#allocation3 + $0x7b0] sm:$0xff]
    %v352 = vld [vmem:[#allocation3 + $0x7b8] sm:$0xff]
    %v353 = vld [vmem:[#allocation3 + $0x7c0] sm:$0xff]
    %v354 = vld [vmem:[#allocation3 + $0x7c8] sm:$0xff]
    %v355 = vld [vmem:[#allocation3 + $0x7d0] sm:$0xff]
    %v356 = vld [vmem:[#allocation3 + $0x7d8] sm:$0xff]
    %v357 = vld [vmem:[#allocation3 + $0x7e0] sm:$0xff]
    %v358 = vld [vmem:[#allocation3 + $0x7e8] sm:$0xff]
    %v359 = vld [vmem:[#allocation3 + $0x7f0] sm:$0xff]
    %v360 = vld [vmem:[#allocation3 + $0x7f8] sm:$0xff]
    %v361 = vld [vmem:[#allocation3 + $0x800] sm:$0xff]
    %v362 = vld [vmem:[#allocation3 + $0x808] sm:$0xff]
    %v363 = vld [vmem:[#allocation3 + $0x810] sm:$0xff]
    %v364 = vld [vmem:[#allocation3 + $0x818] sm:$0xff]
    %v365 = vld [vmem:[#allocation3 + $0x820] sm:$0xff]
    %v366 = vld [vmem:[#allocation3 + $0x828] sm:$0xff]
    %v367 = vld [vmem:[#allocation3 + $0x830] sm:$0xff]
    %v368 = vld [vmem:[#allocation3 + $0x838] sm:$0xff]
    %v369 = vld [vmem:[#allocation3 + $0x840] sm:$0xff]
    %v370 = vld [vmem:[#allocation3 + $0x848] sm:$0xff]
    %v371 = vpack.c.bf16 %v112, %v105
    %v372 = vpack.c.bf16 %v113, %v106
    %v373 = vpack.c.bf16 %v114, %v107
    %v374 = vpack.c.bf16 %v115, %v108
    %v375 = vpack.c.bf16 %v116, %v109
    %v376 = vpack.c.bf16 %v117, %v110
    %v377 = vpack.c.bf16 %v118, %v111
    %v378 = vpack.c.bf16 %v126, %v119
    %v379 = vpack.c.bf16 %v127, %v120
    %v380 = vpack.c.bf16 %v128, %v121
    %v381 = vpack.c.bf16 %v129, %v122
    %v382 = vpack.c.bf16 %v130, %v123
    %v383 = vpack.c.bf16 %v131, %v124
    %v384 = vpack.c.bf16 %v132, %v125
    %v385 = vpack.c.bf16 %v140, %v133
    %v386 = vpack.c.bf16 %v141, %v134
    %v387 = vpack.c.bf16 %v142, %v135
    %v388 = vpack.c.bf16 %v143, %v136
    %v389 = vpack.c.bf16 %v144, %v137
    %v390 = vpack.c.bf16 %v145, %v138
    %v391 = vpack.c.bf16 %v146, %v139
    %v392 = vpack.c.bf16 %v154, %v147
    %v393 = vpack.c.bf16 %v155, %v148
    %v394 = vpack.c.bf16 %v156, %v149
    %v395 = vpack.c.bf16 %v157, %v150
    %v396 = vpack.c.bf16 %v158, %v151
    %v397 = vpack.c.bf16 %v159, %v152
    %v398 = vpack.c.bf16 %v160, %v153
    %v399 = vpack.c.bf16 %v168, %v161
    %v400 = vpack.c.bf16 %v169, %v162
    %v401 = vpack.c.bf16 %v170, %v163
    %v402 = vpack.c.bf16 %v171, %v164
    %v403 = vpack.c.bf16 %v172, %v165
    %v404 = vpack.c.bf16 %v173, %v166
    %v405 = vpack.c.bf16 %v174, %v167
    %v406 = vpack.c.bf16 %v182, %v175
    %v407 = vpack.c.bf16 %v183, %v176
    %v408 = vpack.c.bf16 %v184, %v177
    %v409 = vpack.c.bf16 %v185, %v178
    %v410 = vpack.c.bf16 %v186, %v179
    %v411 = vpack.c.bf16 %v187, %v180
    %v412 = vpack.c.bf16 %v188, %v181
    %v413 = vpack.c.bf16 %v196, %v189
    %v414 = vpack.c.bf16 %v197, %v190
    %v415 = vpack.c.bf16 %v198, %v191
    %v416 = vpack.c.bf16 %v199, %v192
    %v417 = vpack.c.bf16 %v200, %v193
    %v418 = vpack.c.bf16 %v201, %v194
    %v419 = vpack.c.bf16 %v202, %v195
    %v420 = vpack.c.bf16 %v210, %v203
    %v421 = vpack.c.bf16 %v211, %v204
    %v422 = vpack.c.bf16 %v212, %v205
    %v423 = vpack.c.bf16 %v213, %v206
    %v424 = vpack.c.bf16 %v214, %v207
    %v425 = vpack.c.bf16 %v215, %v208
    %v426 = vpack.c.bf16 %v216, %v209
    %v427 = vpack.c.bf16 %v224, %v217
    %v428 = vpack.c.bf16 %v225, %v218
    %v429 = vpack.c.bf16 %v226, %v219
    %v430 = vpack.c.bf16 %v227, %v220
    %v431 = vpack.c.bf16 %v228, %v221
    %v432 = vpack.c.bf16 %v229, %v222
    %v433 = vpack.c.bf16 %v230, %v223
    %v434 = vpack.c.bf16 %v238, %v231
    %v435 = vpack.c.bf16 %v239, %v232
    %v436 = vpack.c.bf16 %v240, %v233
    %v437 = vpack.c.bf16 %v241, %v234
    %v438 = vpack.c.bf16 %v242, %v235
    %v439 = vpack.c.bf16 %v243, %v236
    %v440 = vpack.c.bf16 %v244, %v237
    %v441 = vpack.c.bf16 %v252, %v245
    %v442 = vpack.c.bf16 %v253, %v246
    %v443 = vpack.c.bf16 %v254, %v247
    %v444 = vpack.c.bf16 %v255, %v248
    %v445 = vpack.c.bf16 %v256, %v249
    %v446 = vpack.c.bf16 %v257, %v250
    %v447 = vpack.c.bf16 %v258, %v251
    %v448 = vpack.c.bf16 %v266, %v259
    %v449 = vpack.c.bf16 %v267, %v260
    %v450 = vpack.c.bf16 %v268, %v261
    %v451 = vpack.c.bf16 %v269, %v262
    %v452 = vpack.c.bf16 %v270, %v263
    %v453 = vpack.c.bf16 %v271, %v264
    %v454 = vpack.c.bf16 %v272, %v265
    %v455 = vpack.c.bf16 %v280, %v273
    %v456 = vpack.c.bf16 %v281, %v274
    %v457 = vpack.c.bf16 %v282, %v275
    %v458 = vpack.c.bf16 %v283, %v276
    %v459 = vpack.c.bf16 %v284, %v277
    %v460 = vpack.c.bf16 %v285, %v278
    %v461 = vpack.c.bf16 %v286, %v279
    %v462 = vpack.c.bf16 %v294, %v287
    %v463 = vpack.c.bf16 %v295, %v288
    %v464 = vpack.c.bf16 %v296, %v289
    %v465 = vpack.c.bf16 %v297, %v290
    %v466 = vpack.c.bf16 %v298, %v291
    %v467 = vpack.c.bf16 %v299, %v292
    %v468 = vpack.c.bf16 %v300, %v293
    %v469 = vpack.c.bf16 %v308, %v301
    %v470 = vpack.c.bf16 %v309, %v302
    %v471 = vpack.c.bf16 %v310, %v303
    %v472 = vpack.c.bf16 %v311, %v304
    %v473 = vpack.c.bf16 %v312, %v305
    %v474 = vpack.c.bf16 %v313, %v306
    %v475 = vpack.c.bf16 %v314, %v307
    %v476 = vpack.c.bf16 %v322, %v315
    %v477 = vpack.c.bf16 %v323, %v316
    %v478 = vpack.c.bf16 %v324, %v317
    %v479 = vpack.c.bf16 %v325, %v318
    %v480 = vpack.c.bf16 %v326, %v319
    %v481 = vpack.c.bf16 %v327, %v320
    %v482 = vpack.c.bf16 %v328, %v321
    %v483 = vpack.c.bf16 %v336, %v329
    %v484 = vpack.c.bf16 %v337, %v330
    %v485 = vpack.c.bf16 %v338, %v331
    %v486 = vpack.c.bf16 %v339, %v332
    %v487 = vpack.c.bf16 %v340, %v333
    %v488 = vpack.c.bf16 %v341, %v334
    %v489 = vpack.c.bf16 %v342, %v335
    %v490 = vpack.c.bf16 %v350, %v343
    %v491 = vpack.c.bf16 %v351, %v344
    %v492 = vpack.c.bf16 %v352, %v345
    %v493 = vpack.c.bf16 %v353, %v346
    %v494 = vpack.c.bf16 %v354, %v347
    %v495 = vpack.c.bf16 %v355, %v348
    %v496 = vpack.c.bf16 %v356, %v349
    %v497 = vpack.c.bf16 %v364, %v357
    %v498 = vpack.c.bf16 %v365, %v358
    %v499 = vpack.c.bf16 %v366, %v359
    %v500 = vpack.c.bf16 %v367, %v360
    %v501 = vpack.c.bf16 %v368, %v361
    %v502 = vpack.c.bf16 %v369, %v362
    %v503 = vpack.c.bf16 %v370, %v363
    %v504 = vld [vmem:[#allocation5] sm:$0xff]
    %v505 = vld [vmem:[#allocation5 + $0x8] sm:$0xff]
    %v506 = vld [vmem:[#allocation5 + $0x10] sm:$0xff]
    %v507 = vld [vmem:[#allocation5 + $0x18] sm:$0xff]
    %v508 = vld [vmem:[#allocation5 + $0x20] sm:$0xff]
    %v509 = vld [vmem:[#allocation5 + $0x28] sm:$0xff]
    %v510 = vld [vmem:[#allocation5 + $0x30] sm:$0xff]
    %v511 = vld [vmem:[#allocation5 + $0x38] sm:$0xff]
    %v512 = vld [vmem:[#allocation5 + $0x40] sm:$0xff]
    %v513 = vld [vmem:[#allocation5 + $0x48] sm:$0xff]
    %v514 = vld [vmem:[#allocation5 + $0x50] sm:$0xff]
    %v515 = vld [vmem:[#allocation5 + $0x58] sm:$0xff]
    %v516 = vld [vmem:[#allocation5 + $0x60] sm:$0xff]
    %v517 = vld [vmem:[#allocation5 + $0x68] sm:$0xff]
    %v518 = vld [vmem:[#allocation5 + $0x70] sm:$0xff]
    %v519 = vld [vmem:[#allocation5 + $0x78] sm:$0xff]
    %v520 = vld [vmem:[#allocation5 + $0x80] sm:$0xff]
    %v521 = vld [vmem:[#allocation5 + $0x88] sm:$0xff]
    %v522 = vld [vmem:[#allocation5 + $0x90] sm:$0xff]
    %v523 = vld [vmem:[#allocation5 + $0x98] sm:$0xff]
    %v524 = vld [vmem:[#allocation5 + $0xa0] sm:$0xff]
    %v525 = vld [vmem:[#allocation5 + $0xa8] sm:$0xff]
    %v526 = vld [vmem:[#allocation5 + $0xb0] sm:$0xff]
    %v527 = vld [vmem:[#allocation5 + $0xb8] sm:$0xff]
    %v528 = vld [vmem:[#allocation5 + $0xc0] sm:$0xff]
    %v529 = vld [vmem:[#allocation5 + $0xc8] sm:$0xff]
    %v530 = vld [vmem:[#allocation5 + $0xd0] sm:$0xff]
    %v531 = vld [vmem:[#allocation5 + $0xd8] sm:$0xff]
    %v532 = vld [vmem:[#allocation5 + $0xe0] sm:$0xff]
    %v533 = vld [vmem:[#allocation5 + $0xe8] sm:$0xff]
    %v534 = vld [vmem:[#allocation5 + $0xf0] sm:$0xff]
    %v535 = vld [vmem:[#allocation5 + $0xf8] sm:$0xff]
    %v536 = vld [vmem:[#allocation5 + $0x100] sm:$0xff]
    %v537 = vld [vmem:[#allocation5 + $0x108] sm:$0xff]
    %v538 = vld [vmem:[#allocation5 + $0x110] sm:$0xff]
    %v539 = vld [vmem:[#allocation5 + $0x118] sm:$0xff]
    %v540 = vld [vmem:[#allocation5 + $0x120] sm:$0xff]
    %v541 = vld [vmem:[#allocation5 + $0x128] sm:$0xff]
    %v542 = vld [vmem:[#allocation5 + $0x130] sm:$0xff]
    %v543 = vld [vmem:[#allocation5 + $0x138] sm:$0xff]
    %v544 = vld [vmem:[#allocation5 + $0x140] sm:$0xff]
    %v545 = vld [vmem:[#allocation5 + $0x148] sm:$0xff]
    %v546 = vld [vmem:[#allocation5 + $0x150] sm:$0xff]
    %v547 = vld [vmem:[#allocation5 + $0x158] sm:$0xff]
    %v548 = vld [vmem:[#allocation5 + $0x160] sm:$0xff]
    %v549 = vld [vmem:[#allocation5 + $0x168] sm:$0xff]
    %v550 = vld [vmem:[#allocation5 + $0x170] sm:$0xff]
    %v551 = vld [vmem:[#allocation5 + $0x178] sm:$0xff]
    %v552 = vld [vmem:[#allocation5 + $0x180] sm:$0xff]
    %v553 = vld [vmem:[#allocation5 + $0x188] sm:$0xff]
    %v554 = vld [vmem:[#allocation5 + $0x190] sm:$0xff]
    %v555 = vld [vmem:[#allocation5 + $0x198] sm:$0xff]
    %v556 = vld [vmem:[#allocation5 + $0x1a0] sm:$0xff]
    %v557 = vld [vmem:[#allocation5 + $0x1a8] sm:$0xff]
    %v558 = vld [vmem:[#allocation5 + $0x1b0] sm:$0xff]
    %v559 = vld [vmem:[#allocation5 + $0x1b8] sm:$0xff]
    %v560 = vld [vmem:[#allocation5 + $0x1c0] sm:$0xff]
    %v561 = vld [vmem:[#allocation5 + $0x1c8] sm:$0xff]
    %v562 = vld [vmem:[#allocation5 + $0x1d0] sm:$0xff]
    %v563 = vld [vmem:[#allocation5 + $0x1d8] sm:$0xff]
    %v564 = vld [vmem:[#allocation5 + $0x1e0] sm:$0xff]
    %v565 = vld [vmem:[#allocation5 + $0x1e8] sm:$0xff]
    %v566 = vld [vmem:[#allocation5 + $0x1f0] sm:$0xff]
    %v567 = vld [vmem:[#allocation5 + $0x1f8] sm:$0xff]
    %v568 = vld [vmem:[#allocation5 + $0x200] sm:$0xff]
    %v569 = vld [vmem:[#allocation5 + $0x208] sm:$0xff]
    %v570 = vld [vmem:[#allocation5 + $0x210] sm:$0xff]
    %v571 = vld [vmem:[#allocation5 + $0x218] sm:$0xff]
    %v572 = vld [vmem:[#allocation5 + $0x220] sm:$0xff]
    %v573 = vld [vmem:[#allocation5 + $0x228] sm:$0xff]
    %v574 = vld [vmem:[#allocation5 + $0x230] sm:$0xff]
    %v575 = vld [vmem:[#allocation5 + $0x238] sm:$0xff]
    %v576 = vld [vmem:[#allocation5 + $0x240] sm:$0xff]
    %v577 = vld [vmem:[#allocation5 + $0x248] sm:$0xff]
    %v578 = vld [vmem:[#allocation5 + $0x250] sm:$0xff]
    %v579 = vld [vmem:[#allocation5 + $0x258] sm:$0xff]
    %v580 = vld [vmem:[#allocation5 + $0x260] sm:$0xff]
    %v581 = vld [vmem:[#allocation5 + $0x268] sm:$0xff]
    %v582 = vld [vmem:[#allocation5 + $0x270] sm:$0xff]
    %v583 = vld [vmem:[#allocation5 + $0x278] sm:$0xff]
    %v584 = vld [vmem:[#allocation5 + $0x280] sm:$0xff]
    %v585 = vld [vmem:[#allocation5 + $0x288] sm:$0xff]
    %v586 = vld [vmem:[#allocation5 + $0x290] sm:$0xff]
    %v587 = vld [vmem:[#allocation5 + $0x298] sm:$0xff]
    %v588 = vld [vmem:[#allocation5 + $0x2a0] sm:$0xff]
    %v589 = vld [vmem:[#allocation5 + $0x2a8] sm:$0xff]
    %v590 = vld [vmem:[#allocation5 + $0x2b0] sm:$0xff]
    %v591 = vld [vmem:[#allocation5 + $0x2b8] sm:$0xff]
    %v592 = vld [vmem:[#allocation5 + $0x2c0] sm:$0xff]
    %v593 = vld [vmem:[#allocation5 + $0x2c8] sm:$0xff]
    %v594 = vld [vmem:[#allocation5 + $0x2d0] sm:$0xff]
    %v595 = vld [vmem:[#allocation5 + $0x2d8] sm:$0xff]
    %v596 = vld [vmem:[#allocation5 + $0x2e0] sm:$0xff]
    %v597 = vld [vmem:[#allocation5 + $0x2e8] sm:$0xff]
    %v598 = vld [vmem:[#allocation5 + $0x2f0] sm:$0xff]
    %v599 = vld [vmem:[#allocation5 + $0x2f8] sm:$0xff]
    %v600 = vld [vmem:[#allocation5 + $0x300] sm:$0xff]
    %v601 = vld [vmem:[#allocation5 + $0x308] sm:$0xff]
    %v602 = vld [vmem:[#allocation5 + $0x310] sm:$0xff]
    %v603 = vld [vmem:[#allocation5 + $0x318] sm:$0xff]
    %v604 = vld [vmem:[#allocation5 + $0x320] sm:$0xff]
    %v605 = vld [vmem:[#allocation5 + $0x328] sm:$0xff]
    %v606 = vld [vmem:[#allocation5 + $0x330] sm:$0xff]
    %v607 = vld [vmem:[#allocation5 + $0x338] sm:$0xff]
    %v608 = vld [vmem:[#allocation5 + $0x340] sm:$0xff]
    %v609 = vld [vmem:[#allocation5 + $0x348] sm:$0xff]
    %v610 = vld [vmem:[#allocation5 + $0x350] sm:$0xff]
    %v611 = vld [vmem:[#allocation5 + $0x358] sm:$0xff]
    %v612 = vld [vmem:[#allocation5 + $0x360] sm:$0xff]
    %v613 = vld [vmem:[#allocation5 + $0x368] sm:$0xff]
    %v614 = vld [vmem:[#allocation5 + $0x370] sm:$0xff]
    %v615 = vld [vmem:[#allocation5 + $0x378] sm:$0xff]
    %v616 = vld [vmem:[#allocation5 + $0x380] sm:$0xff]
    %v617 = vld [vmem:[#allocation5 + $0x388] sm:$0xff]
    %v618 = vld [vmem:[#allocation5 + $0x390] sm:$0xff]
    %v619 = vld [vmem:[#allocation5 + $0x398] sm:$0xff]
    %v620 = vld [vmem:[#allocation5 + $0x3a0] sm:$0xff]
    %v621 = vld [vmem:[#allocation5 + $0x3a8] sm:$0xff]
    %v622 = vld [vmem:[#allocation5 + $0x3b0] sm:$0xff]
    %v623 = vld [vmem:[#allocation5 + $0x3b8] sm:$0xff]
    %v624 = vld [vmem:[#allocation5 + $0x3c0] sm:$0xff]
    %v625 = vld [vmem:[#allocation5 + $0x3c8] sm:$0xff]
    %v626 = vld [vmem:[#allocation5 + $0x3d0] sm:$0xff]
    %v627 = vld [vmem:[#allocation5 + $0x3d8] sm:$0xff]
    %v628 = vld [vmem:[#allocation5 + $0x3e0] sm:$0xff]
    %v629 = vld [vmem:[#allocation5 + $0x3e8] sm:$0xff]
    %v630 = vld [vmem:[#allocation5 + $0x3f0] sm:$0xff]
    %v631 = vld [vmem:[#allocation5 + $0x3f8] sm:$0xff]
    %v632 = vld [vmem:[#allocation5 + $0x400] sm:$0xff]
    %v633 = vld [vmem:[#allocation5 + $0x408] sm:$0xff]
    %v634 = vld [vmem:[#allocation5 + $0x410] sm:$0xff]
    %v635 = vld [vmem:[#allocation5 + $0x418] sm:$0xff]
    %v636 = vld [vmem:[#allocation5 + $0x420] sm:$0xff]
    %v637 = vld [vmem:[#allocation5 + $0x428] sm:$0xff]
    %v638 = vld [vmem:[#allocation5 + $0x430] sm:$0xff]
    %v639 = vld [vmem:[#allocation5 + $0x438] sm:$0xff]
    %v640 = vld [vmem:[#allocation5 + $0x440] sm:$0xff]
    %v641 = vld [vmem:[#allocation5 + $0x448] sm:$0xff]
    %v642 = vld [vmem:[#allocation5 + $0x450] sm:$0xff]
    %v643 = vld [vmem:[#allocation5 + $0x458] sm:$0xff]
    %v644 = vld [vmem:[#allocation5 + $0x460] sm:$0xff]
    %v645 = vld [vmem:[#allocation5 + $0x468] sm:$0xff]
    %v646 = vld [vmem:[#allocation5 + $0x470] sm:$0xff]
    %v647 = vld [vmem:[#allocation5 + $0x478] sm:$0xff]
    %v648 = vld [vmem:[#allocation5 + $0x480] sm:$0xff]
    %v649 = vld [vmem:[#allocation5 + $0x488] sm:$0xff]
    %v650 = vld [vmem:[#allocation5 + $0x490] sm:$0xff]
    %v651 = vld [vmem:[#allocation5 + $0x498] sm:$0xff]
    %v652 = vld [vmem:[#allocation5 + $0x4a0] sm:$0xff]
    %v653 = vld [vmem:[#allocation5 + $0x4a8] sm:$0xff]
    %v654 = vld [vmem:[#allocation5 + $0x4b0] sm:$0xff]
    %v655 = vld [vmem:[#allocation5 + $0x4b8] sm:$0xff]
    %v656 = vld [vmem:[#allocation5 + $0x4c0] sm:$0xff]
    %v657 = vld [vmem:[#allocation5 + $0x4c8] sm:$0xff]
    %v658 = vld [vmem:[#allocation5 + $0x4d0] sm:$0xff]
    %v659 = vld [vmem:[#allocation5 + $0x4d8] sm:$0xff]
    %v660 = vld [vmem:[#allocation5 + $0x4e0] sm:$0xff]
    %v661 = vld [vmem:[#allocation5 + $0x4e8] sm:$0xff]
    %v662 = vld [vmem:[#allocation5 + $0x4f0] sm:$0xff]
    %v663 = vld [vmem:[#allocation5 + $0x4f8] sm:$0xff]
    %v664 = vld [vmem:[#allocation5 + $0x500] sm:$0xff]
    %v665 = vld [vmem:[#allocation5 + $0x508] sm:$0xff]
    %v666 = vld [vmem:[#allocation5 + $0x510] sm:$0xff]
    %v667 = vld [vmem:[#allocation5 + $0x518] sm:$0xff]
    %v668 = vld [vmem:[#allocation5 + $0x520] sm:$0xff]
    %v669 = vld [vmem:[#allocation5 + $0x528] sm:$0xff]
    %v670 = vld [vmem:[#allocation5 + $0x530] sm:$0xff]
    %v671 = vld [vmem:[#allocation5 + $0x538] sm:$0xff]
    %v672 = vld [vmem:[#allocation5 + $0x540] sm:$0xff]
    %v673 = vld [vmem:[#allocation5 + $0x548] sm:$0xff]
    %v674 = vld [vmem:[#allocation5 + $0x550] sm:$0xff]
    %v675 = vld [vmem:[#allocation5 + $0x558] sm:$0xff]
    %v676 = vld [vmem:[#allocation5 + $0x560] sm:$0xff]
    %v677 = vld [vmem:[#allocation5 + $0x568] sm:$0xff]
    %v678 = vld [vmem:[#allocation5 + $0x570] sm:$0xff]
    %v679 = vld [vmem:[#allocation5 + $0x578] sm:$0xff]
    %v680 = vld [vmem:[#allocation5 + $0x580] sm:$0xff]
    %v681 = vld [vmem:[#allocation5 + $0x588] sm:$0xff]
    %v682 = vld [vmem:[#allocation5 + $0x590] sm:$0xff]
    %v683 = vld [vmem:[#allocation5 + $0x598] sm:$0xff]
    %v684 = vld [vmem:[#allocation5 + $0x5a0] sm:$0xff]
    %v685 = vld [vmem:[#allocation5 + $0x5a8] sm:$0xff]
    %v686 = vld [vmem:[#allocation5 + $0x5b0] sm:$0xff]
    %v687 = vld [vmem:[#allocation5 + $0x5b8] sm:$0xff]
    %v688 = vld [vmem:[#allocation5 + $0x5c0] sm:$0xff]
    %v689 = vld [vmem:[#allocation5 + $0x5c8] sm:$0xff]
    %v690 = vld [vmem:[#allocation5 + $0x5d0] sm:$0xff]
    %v691 = vld [vmem:[#allocation5 + $0x5d8] sm:$0xff]
    %v692 = vld [vmem:[#allocation5 + $0x5e0] sm:$0xff]
    %v693 = vld [vmem:[#allocation5 + $0x5e8] sm:$0xff]
    %v694 = vld [vmem:[#allocation5 + $0x5f0] sm:$0xff]
    %v695 = vld [vmem:[#allocation5 + $0x5f8] sm:$0xff]
    %v696 = vld [vmem:[#allocation5 + $0x600] sm:$0xff]
    %v697 = vld [vmem:[#allocation5 + $0x608] sm:$0xff]
    %v698 = vld [vmem:[#allocation5 + $0x610] sm:$0xff]
    %v699 = vld [vmem:[#allocation5 + $0x618] sm:$0xff]
    %v700 = vld [vmem:[#allocation7] sm:$0xf]
    %v702 = vlaneseq
    %v703 = vshrl.u32 %v702, 7
    %v704 = vsub.s32 0, %v703
    %v705 = vrot.slane %v700, %v704
    %v706 = vlaneseq
    %v707 = vshrl.u32 %v706, 7
    %v708 = vsub.s32 1, %v707
    %v709 = vrot.slane %v700, %v708
    %v710 = vlaneseq
    %v711 = vshrl.u32 %v710, 7
    %v712 = vsub.s32 2, %v711
    %v713 = vrot.slane %v700, %v712
    %v714 = vlaneseq
    %v715 = vshrl.u32 %v714, 7
    %v716 = vsub.s32 3, %v715
    %v717 = vrot.slane %v700, %v716
    %v918 = vunpack.c.l.b16 %v504
    %v919 = vunpack.c.h.b16 %v504
    %v920 = vunpack.c.l.b16 %v505
    %v921 = vunpack.c.h.b16 %v505
    %v922 = vunpack.c.l.b16 %v506
    %v923 = vunpack.c.h.b16 %v506
    %v924 = vunpack.c.l.b16 %v507
    %v925 = vunpack.c.h.b16 %v507
    %v926 = vunpack.c.l.b16 %v508
    %v927 = vunpack.c.h.b16 %v508
    %v928 = vunpack.c.l.b16 %v509
    %v929 = vunpack.c.h.b16 %v509
    %v930 = vunpack.c.l.b16 %v510
    %v931 = vunpack.c.h.b16 %v510
    %v932 = vunpack.c.l.b16 %v511
    %v933 = vunpack.c.h.b16 %v511
    %v934 = vunpack.c.l.b16 %v512
    %v935 = vunpack.c.h.b16 %v512
    %v936 = vunpack.c.l.b16 %v513
    %v937 = vunpack.c.h.b16 %v513
    %v938 = vunpack.c.l.b16 %v514
    %v939 = vunpack.c.h.b16 %v514
    %v940 = vunpack.c.l.b16 %v515
    %v941 = vunpack.c.h.b16 %v515
    %v942 = vunpack.c.l.b16 %v516
    %v943 = vunpack.c.h.b16 %v516
    %v944 = vunpack.c.l.b16 %v517
    %v945 = vunpack.c.h.b16 %v517
    %v946 = vunpack.c.l.b16 %v518
    %v947 = vunpack.c.h.b16 %v518
    %v948 = vunpack.c.l.b16 %v519
    %v949 = vunpack.c.h.b16 %v519
    %v950 = vunpack.c.l.b16 %v520
    %v951 = vunpack.c.h.b16 %v520
    %v952 = vunpack.c.l.b16 %v521
    %v953 = vunpack.c.h.b16 %v521
    %v954 = vunpack.c.l.b16 %v522
    %v955 = vunpack.c.h.b16 %v522
    %v956 = vunpack.c.l.b16 %v523
    %v957 = vunpack.c.h.b16 %v523
    %v958 = vunpack.c.l.b16 %v524
    %v959 = vunpack.c.h.b16 %v524
    %v960 = vunpack.c.l.b16 %v525
    %v961 = vunpack.c.h.b16 %v525
    %v962 = vunpack.c.l.b16 %v526
    %v963 = vunpack.c.h.b16 %v526
    %v964 = vunpack.c.l.b16 %v527
    %v965 = vunpack.c.h.b16 %v527
    %v966 = vunpack.c.l.b16 %v528
    %v967 = vunpack.c.h.b16 %v528
    %v968 = vunpack.c.l.b16 %v529
    %v969 = vunpack.c.h.b16 %v529
    %v970 = vunpack.c.l.b16 %v530
    %v971 = vunpack.c.h.b16 %v530
    %v972 = vunpack.c.l.b16 %v531
    %v973 = vunpack.c.h.b16 %v531
    %v974 = vunpack.c.l.b16 %v532
    %v975 = vunpack.c.h.b16 %v532
    %v976 = vunpack.c.l.b16 %v533
    %v977 = vunpack.c.h.b16 %v533
    %v978 = vunpack.c.l.b16 %v534
    %v979 = vunpack.c.h.b16 %v534
    %v980 = vunpack.c.l.b16 %v535
    %v981 = vunpack.c.h.b16 %v535
    %v982 = vunpack.c.l.b16 %v536
    %v983 = vunpack.c.h.b16 %v536
    %v984 = vunpack.c.l.b16 %v537
    %v985 = vunpack.c.h.b16 %v537
    %v986 = vunpack.c.l.b16 %v538
    %v987 = vunpack.c.h.b16 %v538
    %v988 = vunpack.c.l.b16 %v539
    %v989 = vunpack.c.h.b16 %v539
    %v990 = vunpack.c.l.b16 %v540
    %v991 = vunpack.c.h.b16 %v540
    %v992 = vunpack.c.l.b16 %v541
    %v993 = vunpack.c.h.b16 %v541
    %v994 = vunpack.c.l.b16 %v542
    %v995 = vunpack.c.h.b16 %v542
    %v996 = vunpack.c.l.b16 %v543
    %v997 = vunpack.c.h.b16 %v543
    %v998 = vunpack.c.l.b16 %v544
    %v999 = vunpack.c.h.b16 %v544
    %v1000 = vunpack.c.l.b16 %v545
    %v1001 = vunpack.c.h.b16 %v545
    %v1002 = vunpack.c.l.b16 %v546
    %v1003 = vunpack.c.h.b16 %v546
    %v1004 = vunpack.c.l.b16 %v547
    %v1005 = vunpack.c.h.b16 %v547
    %v1006 = vunpack.c.l.b16 %v548
    %v1007 = vunpack.c.h.b16 %v548
    %v1008 = vunpack.c.l.b16 %v549
    %v1009 = vunpack.c.h.b16 %v549
    %v1010 = vunpack.c.l.b16 %v550
    %v1011 = vunpack.c.h.b16 %v550
    %v1012 = vunpack.c.l.b16 %v551
    %v1013 = vunpack.c.h.b16 %v551
    %v1014 = vunpack.c.l.b16 %v552
    %v1015 = vunpack.c.h.b16 %v552
    %v1016 = vunpack.c.l.b16 %v553
    %v1017 = vunpack.c.h.b16 %v553
    %v1018 = vunpack.c.l.b16 %v554
    %v1019 = vunpack.c.h.b16 %v554
    %v1020 = vunpack.c.l.b16 %v555
    %v1021 = vunpack.c.h.b16 %v555
    %v1022 = vunpack.c.l.b16 %v556
    %v1023 = vunpack.c.h.b16 %v556
    %v1024 = vunpack.c.l.b16 %v557
    %v1025 = vunpack.c.h.b16 %v557
    %v1026 = vunpack.c.l.b16 %v558
    %v1027 = vunpack.c.h.b16 %v558
    %v1028 = vunpack.c.l.b16 %v559
    %v1029 = vunpack.c.h.b16 %v559
    %v1030 = vunpack.c.l.b16 %v560
    %v1031 = vunpack.c.h.b16 %v560
    %v1032 = vunpack.c.l.b16 %v561
    %v1033 = vunpack.c.h.b16 %v561
    %v1034 = vunpack.c.l.b16 %v562
    %v1035 = vunpack.c.h.b16 %v562
    %v1036 = vunpack.c.l.b16 %v563
    %v1037 = vunpack.c.h.b16 %v563
    %v1038 = vunpack.c.l.b16 %v564
    %v1039 = vunpack.c.h.b16 %v564
    %v1040 = vunpack.c.l.b16 %v565
    %v1041 = vunpack.c.h.b16 %v565
    %v1042 = vunpack.c.l.b16 %v566
    %v1043 = vunpack.c.h.b16 %v566
    %v1044 = vunpack.c.l.b16 %v567
    %v1045 = vunpack.c.h.b16 %v567
    %v1046 = vunpack.c.l.b16 %v568
    %v1047 = vunpack.c.h.b16 %v568
    %v1048 = vunpack.c.l.b16 %v569
    %v1049 = vunpack.c.h.b16 %v569
    %v1050 = vunpack.c.l.b16 %v570
    %v1051 = vunpack.c.h.b16 %v570
    %v1052 = vunpack.c.l.b16 %v571
    %v1053 = vunpack.c.h.b16 %v571
    %v1054 = vunpack.c.l.b16 %v572
    %v1055 = vunpack.c.h.b16 %v572
    %v1056 = vunpack.c.l.b16 %v573
    %v1057 = vunpack.c.h.b16 %v573
    %v1058 = vunpack.c.l.b16 %v574
    %v1059 = vunpack.c.h.b16 %v574
    %v1060 = vunpack.c.l.b16 %v575
    %v1061 = vunpack.c.h.b16 %v575
    %v1062 = vunpack.c.l.b16 %v576
    %v1063 = vunpack.c.h.b16 %v576
    %v1064 = vunpack.c.l.b16 %v577
    %v1065 = vunpack.c.h.b16 %v577
    %v1066 = vunpack.c.l.b16 %v578
    %v1067 = vunpack.c.h.b16 %v578
    %v1068 = vunpack.c.l.b16 %v579
    %v1069 = vunpack.c.h.b16 %v579
    %v1070 = vunpack.c.l.b16 %v580
    %v1071 = vunpack.c.h.b16 %v580
    %v1072 = vunpack.c.l.b16 %v581
    %v1073 = vunpack.c.h.b16 %v581
    %v1074 = vunpack.c.l.b16 %v582
    %v1075 = vunpack.c.h.b16 %v582
    %v1076 = vunpack.c.l.b16 %v583
    %v1077 = vunpack.c.h.b16 %v583
    %v1078 = vunpack.c.l.b16 %v584
    %v1079 = vunpack.c.h.b16 %v584
    %v1080 = vunpack.c.l.b16 %v585
    %v1081 = vunpack.c.h.b16 %v585
    %v1082 = vunpack.c.l.b16 %v586
    %v1083 = vunpack.c.h.b16 %v586
    %v1084 = vunpack.c.l.b16 %v587
    %v1085 = vunpack.c.h.b16 %v587
    %v1086 = vunpack.c.l.b16 %v588
    %v1087 = vunpack.c.h.b16 %v588
    %v1088 = vunpack.c.l.b16 %v589
    %v1089 = vunpack.c.h.b16 %v589
    %v1090 = vunpack.c.l.b16 %v590
    %v1091 = vunpack.c.h.b16 %v590
    %v1092 = vunpack.c.l.b16 %v591
    %v1093 = vunpack.c.h.b16 %v591
    %v1094 = vunpack.c.l.b16 %v592
    %v1095 = vunpack.c.h.b16 %v592
    %v1096 = vunpack.c.l.b16 %v593
    %v1097 = vunpack.c.h.b16 %v593
    %v1098 = vunpack.c.l.b16 %v594
    %v1099 = vunpack.c.h.b16 %v594
    %v1100 = vunpack.c.l.b16 %v595
    %v1101 = vunpack.c.h.b16 %v595
    %v1102 = vunpack.c.l.b16 %v596
    %v1103 = vunpack.c.h.b16 %v596
    %v1104 = vunpack.c.l.b16 %v597
    %v1105 = vunpack.c.h.b16 %v597
    %v1106 = vunpack.c.l.b16 %v598
    %v1107 = vunpack.c.h.b16 %v598
    %v1108 = vunpack.c.l.b16 %v599
    %v1109 = vunpack.c.h.b16 %v599
    %v1110 = vunpack.c.l.b16 %v600
    %v1111 = vunpack.c.h.b16 %v600
    %v1112 = vunpack.c.l.b16 %v601
    %v1113 = vunpack.c.h.b16 %v601
    %v1114 = vunpack.c.l.b16 %v602
    %v1115 = vunpack.c.h.b16 %v602
    %v1116 = vunpack.c.l.b16 %v603
    %v1117 = vunpack.c.h.b16 %v603
    %v1118 = vunpack.c.l.b16 %v604
    %v1119 = vunpack.c.h.b16 %v604
    %v1120 = vunpack.c.l.b16 %v605
    %v1121 = vunpack.c.h.b16 %v605
    %v1122 = vunpack.c.l.b16 %v606
    %v1123 = vunpack.c.h.b16 %v606
    %v1124 = vunpack.c.l.b16 %v607
    %v1125 = vunpack.c.h.b16 %v607
    %v1126 = vunpack.c.l.b16 %v608
    %v1127 = vunpack.c.h.b16 %v608
    %v1128 = vunpack.c.l.b16 %v609
    %v1129 = vunpack.c.h.b16 %v609
    %v1130 = vunpack.c.l.b16 %v610
    %v1131 = vunpack.c.h.b16 %v610
    %v1132 = vunpack.c.l.b16 %v611
    %v1133 = vunpack.c.h.b16 %v611
    %v1134 = vunpack.c.l.b16 %v612
    %v1135 = vunpack.c.h.b16 %v612
    %v1136 = vunpack.c.l.b16 %v613
    %v1137 = vunpack.c.h.b16 %v613
    %v1138 = vunpack.c.l.b16 %v614
    %v1139 = vunpack.c.h.b16 %v614
    %v1140 = vunpack.c.l.b16 %v615
    %v1141 = vunpack.c.h.b16 %v615
    %v1142 = vunpack.c.l.b16 %v616
    %v1143 = vunpack.c.h.b16 %v616
    %v1144 = vunpack.c.l.b16 %v617
    %v1145 = vunpack.c.h.b16 %v617
    %v1146 = vunpack.c.l.b16 %v618
    %v1147 = vunpack.c.h.b16 %v618
    %v1148 = vunpack.c.l.b16 %v619
    %v1149 = vunpack.c.h.b16 %v619
    %v1150 = vunpack.c.l.b16 %v620
    %v1151 = vunpack.c.h.b16 %v620
    %v1152 = vunpack.c.l.b16 %v621
    %v1153 = vunpack.c.h.b16 %v621
    %v1154 = vunpack.c.l.b16 %v622
    %v1155 = vunpack.c.h.b16 %v622
    %v1156 = vunpack.c.l.b16 %v623
    %v1157 = vunpack.c.h.b16 %v623
    %v1158 = vunpack.c.l.b16 %v624
    %v1159 = vunpack.c.h.b16 %v624
    %v1160 = vunpack.c.l.b16 %v625
    %v1161 = vunpack.c.h.b16 %v625
    %v1162 = vunpack.c.l.b16 %v626
    %v1163 = vunpack.c.h.b16 %v626
    %v1164 = vunpack.c.l.b16 %v627
    %v1165 = vunpack.c.h.b16 %v627
    %v1166 = vunpack.c.l.b16 %v628
    %v1167 = vunpack.c.h.b16 %v628
    %v1168 = vunpack.c.l.b16 %v629
    %v1169 = vunpack.c.h.b16 %v629
    %v1170 = vunpack.c.l.b16 %v630
    %v1171 = vunpack.c.h.b16 %v630
    %v1172 = vunpack.c.l.b16 %v631
    %v1173 = vunpack.c.h.b16 %v631
    %v1174 = vunpack.c.l.b16 %v632
    %v1175 = vunpack.c.h.b16 %v632
    %v1176 = vunpack.c.l.b16 %v633
    %v1177 = vunpack.c.h.b16 %v633
    %v1178 = vunpack.c.l.b16 %v634
    %v1179 = vunpack.c.h.b16 %v634
    %v1180 = vunpack.c.l.b16 %v635
    %v1181 = vunpack.c.h.b16 %v635
    %v1182 = vunpack.c.l.b16 %v636
    %v1183 = vunpack.c.h.b16 %v636
    %v1184 = vunpack.c.l.b16 %v637
    %v1185 = vunpack.c.h.b16 %v637
    %v1186 = vunpack.c.l.b16 %v638
    %v1187 = vunpack.c.h.b16 %v638
    %v1188 = vunpack.c.l.b16 %v639
    %v1189 = vunpack.c.h.b16 %v639
    %v1190 = vunpack.c.l.b16 %v640
    %v1191 = vunpack.c.h.b16 %v640
    %v1192 = vunpack.c.l.b16 %v641
    %v1193 = vunpack.c.h.b16 %v641
    %v1194 = vunpack.c.l.b16 %v642
    %v1195 = vunpack.c.h.b16 %v642
    %v1196 = vunpack.c.l.b16 %v643
    %v1197 = vunpack.c.h.b16 %v643
    %v1198 = vunpack.c.l.b16 %v644
    %v1199 = vunpack.c.h.b16 %v644
    %v1200 = vunpack.c.l.b16 %v645
    %v1201 = vunpack.c.h.b16 %v645
    %v1202 = vunpack.c.l.b16 %v646
    %v1203 = vunpack.c.h.b16 %v646
    %v1204 = vunpack.c.l.b16 %v647
    %v1205 = vunpack.c.h.b16 %v647
    %v1206 = vunpack.c.l.b16 %v648
    %v1207 = vunpack.c.h.b16 %v648
    %v1208 = vunpack.c.l.b16 %v649
    %v1209 = vunpack.c.h.b16 %v649
    %v1210 = vunpack.c.l.b16 %v650
    %v1211 = vunpack.c.h.b16 %v650
    %v1212 = vunpack.c.l.b16 %v651
    %v1213 = vunpack.c.h.b16 %v651
    %v1214 = vunpack.c.l.b16 %v652
    %v1215 = vunpack.c.h.b16 %v652
    %v1216 = vunpack.c.l.b16 %v653
    %v1217 = vunpack.c.h.b16 %v653
    %v1218 = vunpack.c.l.b16 %v654
    %v1219 = vunpack.c.h.b16 %v654
    %v1220 = vunpack.c.l.b16 %v655
    %v1221 = vunpack.c.h.b16 %v655
    %v1222 = vunpack.c.l.b16 %v656
    %v1223 = vunpack.c.h.b16 %v656
    %v1224 = vunpack.c.l.b16 %v657
    %v1225 = vunpack.c.h.b16 %v657
    %v1226 = vunpack.c.l.b16 %v658
    %v1227 = vunpack.c.h.b16 %v658
    %v1228 = vunpack.c.l.b16 %v659
    %v1229 = vunpack.c.h.b16 %v659
    %v1230 = vunpack.c.l.b16 %v660
    %v1231 = vunpack.c.h.b16 %v660
    %v1232 = vunpack.c.l.b16 %v661
    %v1233 = vunpack.c.h.b16 %v661
    %v1234 = vunpack.c.l.b16 %v662
    %v1235 = vunpack.c.h.b16 %v662
    %v1236 = vunpack.c.l.b16 %v663
    %v1237 = vunpack.c.h.b16 %v663
    %v1238 = vunpack.c.l.b16 %v664
    %v1239 = vunpack.c.h.b16 %v664
    %v1240 = vunpack.c.l.b16 %v665
    %v1241 = vunpack.c.h.b16 %v665
    %v1242 = vunpack.c.l.b16 %v666
    %v1243 = vunpack.c.h.b16 %v666
    %v1244 = vunpack.c.l.b16 %v667
    %v1245 = vunpack.c.h.b16 %v667
    %v1246 = vunpack.c.l.b16 %v668
    %v1247 = vunpack.c.h.b16 %v668
    %v1248 = vunpack.c.l.b16 %v669
    %v1249 = vunpack.c.h.b16 %v669
    %v1250 = vunpack.c.l.b16 %v670
    %v1251 = vunpack.c.h.b16 %v670
    %v1252 = vunpack.c.l.b16 %v671
    %v1253 = vunpack.c.h.b16 %v671
    %v1254 = vunpack.c.l.b16 %v672
    %v1255 = vunpack.c.h.b16 %v672
    %v1256 = vunpack.c.l.b16 %v673
    %v1257 = vunpack.c.h.b16 %v673
    %v1258 = vunpack.c.l.b16 %v674
    %v1259 = vunpack.c.h.b16 %v674
    %v1260 = vunpack.c.l.b16 %v675
    %v1261 = vunpack.c.h.b16 %v675
    %v1262 = vunpack.c.l.b16 %v676
    %v1263 = vunpack.c.h.b16 %v676
    %v1264 = vunpack.c.l.b16 %v677
    %v1265 = vunpack.c.h.b16 %v677
    %v1266 = vunpack.c.l.b16 %v678
    %v1267 = vunpack.c.h.b16 %v678
    %v1268 = vunpack.c.l.b16 %v679
    %v1269 = vunpack.c.h.b16 %v679
    %v1270 = vunpack.c.l.b16 %v680
    %v1271 = vunpack.c.h.b16 %v680
    %v1272 = vunpack.c.l.b16 %v681
    %v1273 = vunpack.c.h.b16 %v681
    %v1274 = vunpack.c.l.b16 %v682
    %v1275 = vunpack.c.h.b16 %v682
    %v1276 = vunpack.c.l.b16 %v683
    %v1277 = vunpack.c.h.b16 %v683
    %v1278 = vunpack.c.l.b16 %v684
    %v1279 = vunpack.c.h.b16 %v684
    %v1280 = vunpack.c.l.b16 %v685
    %v1281 = vunpack.c.h.b16 %v685
    %v1282 = vunpack.c.l.b16 %v686
    %v1283 = vunpack.c.h.b16 %v686
    %v1284 = vunpack.c.l.b16 %v687
    %v1285 = vunpack.c.h.b16 %v687
    %v1286 = vunpack.c.l.b16 %v688
    %v1287 = vunpack.c.h.b16 %v688
    %v1288 = vunpack.c.l.b16 %v689
    %v1289 = vunpack.c.h.b16 %v689
    %v1290 = vunpack.c.l.b16 %v690
    %v1291 = vunpack.c.h.b16 %v690
    %v1292 = vunpack.c.l.b16 %v691
    %v1293 = vunpack.c.h.b16 %v691
    %v1294 = vunpack.c.l.b16 %v692
    %v1295 = vunpack.c.h.b16 %v692
    %v1296 = vunpack.c.l.b16 %v693
    %v1297 = vunpack.c.h.b16 %v693
    %v1298 = vunpack.c.l.b16 %v694
    %v1299 = vunpack.c.h.b16 %v694
    %v1300 = vunpack.c.l.b16 %v695
    %v1301 = vunpack.c.h.b16 %v695
    %v1302 = vunpack.c.l.b16 %v696
    %v1303 = vunpack.c.h.b16 %v696
    %v1304 = vunpack.c.l.b16 %v697
    %v1305 = vunpack.c.h.b16 %v697
    %v1306 = vunpack.c.l.b16 %v698
    %v1307 = vunpack.c.h.b16 %v698
    %v1308 = vunpack.c.l.b16 %v699
    %v1309 = vunpack.c.h.b16 %v699
    %v1310 = vpack.c.b16 %v922, %v918
    %v1311 = vpack.c.b16 %v923, %v919
    %v1312 = vpack.c.b16 %v924, %v920
    %v1313 = vpack.c.b16 %v925, %v921
    %v1314 = vpack.c.b16 %v930, %v926
    %v1315 = vpack.c.b16 %v931, %v927
    %v1316 = vpack.c.b16 %v932, %v928
    %v1317 = vpack.c.b16 %v933, %v929
    %v1318 = vpack.c.b16 %v938, %v934
    %v1319 = vpack.c.b16 %v939, %v935
    %v1320 = vpack.c.b16 %v940, %v936
    %v1321 = vpack.c.b16 %v941, %v937
    %v1322 = vpack.c.b16 %v946, %v942
    %v1323 = vpack.c.b16 %v947, %v943
    %v1324 = vpack.c.b16 %v948, %v944
    %v1325 = vpack.c.b16 %v949, %v945
    %v1326 = vpack.c.b16 %v954, %v950
    %v1327 = vpack.c.b16 %v955, %v951
    %v1328 = vpack.c.b16 %v956, %v952
    %v1329 = vpack.c.b16 %v957, %v953
    %v1330 = vpack.c.b16 %v962, %v958
    %v1331 = vpack.c.b16 %v963, %v959
    %v1332 = vpack.c.b16 %v964, %v960
    %v1333 = vpack.c.b16 %v965, %v961
    %v1334 = vpack.c.b16 %v970, %v966
    %v1335 = vpack.c.b16 %v971, %v967
    %v1336 = vpack.c.b16 %v972, %v968
    %v1337 = vpack.c.b16 %v973, %v969
    %v1338 = vpack.c.b16 %v978, %v974
    %v1339 = vpack.c.b16 %v979, %v975
    %v1340 = vpack.c.b16 %v980, %v976
    %v1341 = vpack.c.b16 %v981, %v977
    %v1342 = vpack.c.b16 %v986, %v982
    %v1343 = vpack.c.b16 %v987, %v983
    %v1344 = vpack.c.b16 %v988, %v984
    %v1345 = vpack.c.b16 %v989, %v985
    %v1346 = vpack.c.b16 %v994, %v990
    %v1347 = vpack.c.b16 %v995, %v991
    %v1348 = vpack.c.b16 %v996, %v992
    %v1349 = vpack.c.b16 %v997, %v993
    %v1350 = vpack.c.b16 %v1002, %v998
    %v1351 = vpack.c.b16 %v1003, %v999
    %v1352 = vpack.c.b16 %v1004, %v1000
    %v1353 = vpack.c.b16 %v1005, %v1001
    %v1354 = vpack.c.b16 %v1010, %v1006
    %v1355 = vpack.c.b16 %v1011, %v1007
    %v1356 = vpack.c.b16 %v1012, %v1008
    %v1357 = vpack.c.b16 %v1013, %v1009
    %v1358 = vpack.c.b16 %v1018, %v1014
    %v1359 = vpack.c.b16 %v1019, %v1015
    %v1360 = vpack.c.b16 %v1020, %v1016
    %v1361 = vpack.c.b16 %v1021, %v1017
    %v1362 = vpack.c.b16 %v1026, %v1022
    %v1363 = vpack.c.b16 %v1027, %v1023
    %v1364 = vpack.c.b16 %v1028, %v1024
    %v1365 = vpack.c.b16 %v1029, %v1025
    %v1366 = vpack.c.b16 %v1034, %v1030
    %v1367 = vpack.c.b16 %v1035, %v1031
    %v1368 = vpack.c.b16 %v1036, %v1032
    %v1369 = vpack.c.b16 %v1037, %v1033
    %v1370 = vpack.c.b16 %v1042, %v1038
    %v1371 = vpack.c.b16 %v1043, %v1039
    %v1372 = vpack.c.b16 %v1044, %v1040
    %v1373 = vpack.c.b16 %v1045, %v1041
    %v1374 = vpack.c.b16 %v1050, %v1046
    %v1375 = vpack.c.b16 %v1051, %v1047
    %v1376 = vpack.c.b16 %v1052, %v1048
    %v1377 = vpack.c.b16 %v1053, %v1049
    %v1378 = vpack.c.b16 %v1058, %v1054
    %v1379 = vpack.c.b16 %v1059, %v1055
    %v1380 = vpack.c.b16 %v1060, %v1056
    %v1381 = vpack.c.b16 %v1061, %v1057
    %v1382 = vpack.c.b16 %v1066, %v1062
    %v1383 = vpack.c.b16 %v1067, %v1063
    %v1384 = vpack.c.b16 %v1068, %v1064
    %v1385 = vpack.c.b16 %v1069, %v1065
    %v1386 = vpack.c.b16 %v1074, %v1070
    %v1387 = vpack.c.b16 %v1075, %v1071
    %v1388 = vpack.c.b16 %v1076, %v1072
    %v1389 = vpack.c.b16 %v1077, %v1073
    %v1390 = vpack.c.b16 %v1082, %v1078
    %v1391 = vpack.c.b16 %v1083, %v1079
    %v1392 = vpack.c.b16 %v1084, %v1080
    %v1393 = vpack.c.b16 %v1085, %v1081
    %v1394 = vpack.c.b16 %v1090, %v1086
    %v1395 = vpack.c.b16 %v1091, %v1087
    %v1396 = vpack.c.b16 %v1092, %v1088
    %v1397 = vpack.c.b16 %v1093, %v1089
    %v1398 = vpack.c.b16 %v1098, %v1094
    %v1399 = vpack.c.b16 %v1099, %v1095
    %v1400 = vpack.c.b16 %v1100, %v1096
    %v1401 = vpack.c.b16 %v1101, %v1097
    %v1402 = vpack.c.b16 %v1106, %v1102
    %v1403 = vpack.c.b16 %v1107, %v1103
    %v1404 = vpack.c.b16 %v1108, %v1104
    %v1405 = vpack.c.b16 %v1109, %v1105
    %v1406 = vpack.c.b16 %v1114, %v1110
    %v1407 = vpack.c.b16 %v1115, %v1111
    %v1408 = vpack.c.b16 %v1116, %v1112
    %v1409 = vpack.c.b16 %v1117, %v1113
    %v1410 = vpack.c.b16 %v1122, %v1118
    %v1411 = vpack.c.b16 %v1123, %v1119
    %v1412 = vpack.c.b16 %v1124, %v1120
    %v1413 = vpack.c.b16 %v1125, %v1121
    %v1414 = vpack.c.b16 %v1130, %v1126
    %v1415 = vpack.c.b16 %v1131, %v1127
    %v1416 = vpack.c.b16 %v1132, %v1128
    %v1417 = vpack.c.b16 %v1133, %v1129
    %v1418 = vpack.c.b16 %v1138, %v1134
    %v1419 = vpack.c.b16 %v1139, %v1135
    %v1420 = vpack.c.b16 %v1140, %v1136
    %v1421 = vpack.c.b16 %v1141, %v1137
    %v1422 = vpack.c.b16 %v1146, %v1142
    %v1423 = vpack.c.b16 %v1147, %v1143
    %v1424 = vpack.c.b16 %v1148, %v1144
    %v1425 = vpack.c.b16 %v1149, %v1145
    %v1426 = vpack.c.b16 %v1154, %v1150
    %v1427 = vpack.c.b16 %v1155, %v1151
    %v1428 = vpack.c.b16 %v1156, %v1152
    %v1429 = vpack.c.b16 %v1157, %v1153
    %v1430 = vpack.c.b16 %v1162, %v1158
    %v1431 = vpack.c.b16 %v1163, %v1159
    %v1432 = vpack.c.b16 %v1164, %v1160
    %v1433 = vpack.c.b16 %v1165, %v1161
    %v1434 = vpack.c.b16 %v1170, %v1166
    %v1435 = vpack.c.b16 %v1171, %v1167
    %v1436 = vpack.c.b16 %v1172, %v1168
    %v1437 = vpack.c.b16 %v1173, %v1169
    %v1438 = vpack.c.b16 %v1178, %v1174
    %v1439 = vpack.c.b16 %v1179, %v1175
    %v1440 = vpack.c.b16 %v1180, %v1176
    %v1441 = vpack.c.b16 %v1181, %v1177
    %v1442 = vpack.c.b16 %v1186, %v1182
    %v1443 = vpack.c.b16 %v1187, %v1183
    %v1444 = vpack.c.b16 %v1188, %v1184
    %v1445 = vpack.c.b16 %v1189, %v1185
    %v1446 = vpack.c.b16 %v1194, %v1190
    %v1447 = vpack.c.b16 %v1195, %v1191
    %v1448 = vpack.c.b16 %v1196, %v1192
    %v1449 = vpack.c.b16 %v1197, %v1193
    %v1450 = vpack.c.b16 %v1202, %v1198
    %v1451 = vpack.c.b16 %v1203, %v1199
    %v1452 = vpack.c.b16 %v1204, %v1200
    %v1453 = vpack.c.b16 %v1205, %v1201
    %v1454 = vpack.c.b16 %v1210, %v1206
    %v1455 = vpack.c.b16 %v1211, %v1207
    %v1456 = vpack.c.b16 %v1212, %v1208
    %v1457 = vpack.c.b16 %v1213, %v1209
    %v1458 = vpack.c.b16 %v1218, %v1214
    %v1459 = vpack.c.b16 %v1219, %v1215
    %v1460 = vpack.c.b16 %v1220, %v1216
    %v1461 = vpack.c.b16 %v1221, %v1217
    %v1462 = vpack.c.b16 %v1226, %v1222
    %v1463 = vpack.c.b16 %v1227, %v1223
    %v1464 = vpack.c.b16 %v1228, %v1224
    %v1465 = vpack.c.b16 %v1229, %v1225
    %v1466 = vpack.c.b16 %v1234, %v1230
    %v1467 = vpack.c.b16 %v1235, %v1231
    %v1468 = vpack.c.b16 %v1236, %v1232
    %v1469 = vpack.c.b16 %v1237, %v1233
    %v1470 = vpack.c.b16 %v1242, %v1238
    %v1471 = vpack.c.b16 %v1243, %v1239
    %v1472 = vpack.c.b16 %v1244, %v1240
    %v1473 = vpack.c.b16 %v1245, %v1241
    %v1474 = vpack.c.b16 %v1250, %v1246
    %v1475 = vpack.c.b16 %v1251, %v1247
    %v1476 = vpack.c.b16 %v1252, %v1248
    %v1477 = vpack.c.b16 %v1253, %v1249
    %v1478 = vpack.c.b16 %v1258, %v1254
    %v1479 = vpack.c.b16 %v1259, %v1255
    %v1480 = vpack.c.b16 %v1260, %v1256
    %v1481 = vpack.c.b16 %v1261, %v1257
    %v1482 = vpack.c.b16 %v1266, %v1262
    %v1483 = vpack.c.b16 %v1267, %v1263
    %v1484 = vpack.c.b16 %v1268, %v1264
    %v1485 = vpack.c.b16 %v1269, %v1265
    %v1486 = vpack.c.b16 %v1274, %v1270
    %v1487 = vpack.c.b16 %v1275, %v1271
    %v1488 = vpack.c.b16 %v1276, %v1272
    %v1489 = vpack.c.b16 %v1277, %v1273
    %v1490 = vpack.c.b16 %v1282, %v1278
    %v1491 = vpack.c.b16 %v1283, %v1279
    %v1492 = vpack.c.b16 %v1284, %v1280
    %v1493 = vpack.c.b16 %v1285, %v1281
    %v1494 = vpack.c.b16 %v1290, %v1286
    %v1495 = vpack.c.b16 %v1291, %v1287
    %v1496 = vpack.c.b16 %v1292, %v1288
    %v1497 = vpack.c.b16 %v1293, %v1289
    %v1498 = vpack.c.b16 %v1298, %v1294
    %v1499 = vpack.c.b16 %v1299, %v1295
    %v1500 = vpack.c.b16 %v1300, %v1296
    %v1501 = vpack.c.b16 %v1301, %v1297
    %v1502 = vpack.c.b16 %v1306, %v1302
    %v1503 = vpack.c.b16 %v1307, %v1303
    %v1504 = vpack.c.b16 %v1308, %v1304
    %v1505 = vpack.c.b16 %v1309, %v1305
    %vm1702 = vcmask 130048
    %v1704 = vsel %vm1702, %v377, 0
    %v1707 = vsel %vm1702, %v384, 0
    %v1710 = vsel %vm1702, %v391, 0
    %v1713 = vsel %vm1702, %v398, 0
    %v1716 = vsel %vm1702, %v405, 0
    %v1719 = vsel %vm1702, %v412, 0
    %v1722 = vsel %vm1702, %v419, 0
    %v1725 = vsel %vm1702, %v426, 0
    %v1728 = vsel %vm1702, %v433, 0
    %v1731 = vsel %vm1702, %v440, 0
    %v1734 = vsel %vm1702, %v447, 0
    %v1737 = vsel %vm1702, %v454, 0
    %v1740 = vsel %vm1702, %v461, 0
    %v1743 = vsel %vm1702, %v468, 0
    %v1746 = vsel %vm1702, %v475, 0
    %v1749 = vsel %vm1702, %v482, 0
    %v1752 = vsel %vm1702, %v489, 0
    %v1755 = vsel %vm1702, %v496, 0
    %v1758 = vsel %vm1702, %v503, 0
    %1760 = vmatprep.subr.bf16.mxu0 %v1311
    %1761 = vmatpush1.bf16.msra.mxu0 %v1310
    %1762 = vmatprep.subr.bf16.mxu0 %v1315
    %1763 = vmatpush1.bf16.msra.mxu0 %v1314
    %1764 = vmatprep.subr.bf16.mxu0 %v1319
    %1765 = vmatpush1.bf16.msra.mxu0 %v1318
    %1766 = vmatprep.subr.bf16.mxu0 %v1323
    %1767 = vmatpush1.bf16.msra.mxu0 %v1322
    %1768 = vmatprep.subr.bf16.mxu0 %v1327
    %1769 = vmatpush1.bf16.msra.mxu0 %v1326
    %1770 = vmatprep.subr.bf16.mxu0 %v1331
    %1771 = vmatpush1.bf16.msra.mxu0 %v1330
    %1772 = vmatprep.subr.bf16.mxu0 %v1335
    %1773 = vmatpush1.bf16.msra.mxu0 %v1334
    %1774 = vmatprep.subr.bf16.mxu0 %v1339
    %1775 = vmatpush1.bf16.msra.mxu0 %v1338
    %1776 = vmatprep.subr.bf16.mxu0 %v1343
    %1777 = vmatpush1.bf16.msra.mxu0 %v1342
    %1778 = vmatprep.subr.bf16.mxu0 %v1347
    %1779 = vmatpush1.bf16.msra.mxu0 %v1346
    %1780 = vmatprep.subr.bf16.mxu0 %v1351
    %1781 = vmatpush1.bf16.msra.mxu0 %v1350
    %1782 = vmatprep.subr.bf16.mxu0 %v1355
    %1783 = vmatpush1.bf16.msra.mxu0 %v1354
    %1784 = vmatprep.subr.bf16.mxu0 %v1359
    %1785 = vmatpush1.bf16.msra.mxu0 %v1358
    %1786 = vmatprep.subr.bf16.mxu0 %v1363
    %1787 = vmatpush1.bf16.msra.mxu0 %v1362
    %1788 = vmatprep.subr.bf16.mxu0 %v1367
    %1789 = vmatpush1.bf16.msra.mxu0 %v1366
    %1790 = vmatprep.subr.bf16.mxu0 %v1371
    %1791 = vmatpush1.bf16.msra.mxu0 %v1370
    %1792 = vmatprep.mubr.bf16.mxu0 %v372
    %1793 = vmatmul.mubr.bf16.gmra.mrb[0].mxu0 %v371
    %v1794 = vpop.f32.mrb[0].mxu0
    %v1795 = vadd.f32 %v705, %v1794
    %v1796 = vpop.f32.mrb[0].mxu0
    %v1797 = vadd.f32 %v709, %v1796
    %v1798 = vpop.f32.mrb[0].mxu0
    %v1799 = vadd.f32 %v705, %v1798
    %v1800 = vpop.f32.mrb[0].mxu0
    %v1801 = vadd.f32 %v709, %v1800
    %1802 = vmatprep.mubr.bf16.mxu0 %v379
    %1803 = vmatmul.mubr.bf16.gmra.mrb[0].mxu0 %v378
    %v1804 = vpop.f32.mrb[0].mxu0
    %v1805 = vadd.f32 %v705, %v1804
    %v1806 = vpop.f32.mrb[0].mxu0
    %v1807 = vadd.f32 %v709, %v1806
    %v1808 = vpop.f32.mrb[0].mxu0
    %v1809 = vadd.f32 %v705, %v1808
    %v1810 = vpop.f32.mrb[0].mxu0
    %v1811 = vadd.f32 %v709, %v1810
    %1812 = vmatprep.mubr.bf16.mxu0 %v386
    %1813 = vmatmul.mubr.bf16.gmra.mrb[0].mxu0 %v385
    %v1814 = vpop.f32.mrb[0].mxu0
    %v1815 = vadd.f32 %v705, %v1814
    %v1816 = vpop.f32.mrb[0].mxu0
    %v1817 = vadd.f32 %v709, %v1816
    %v1818 = vpop.f32.mrb[0].mxu0
    %v1819 = vadd.f32 %v705, %v1818
    %v1820 = vpop.f32.mrb[0].mxu0
    %v1821 = vadd.f32 %v709, %v1820
    %1822 = vmatprep.mubr.bf16.mxu0 %v393
    %1823 = vmatmul.mubr.bf16.gmra.mrb[0].mxu0 %v392
    %v1824 = vpop.f32.mrb[0].mxu0
    %v1825 = vadd.f32 %v705, %v1824
    %v1826 = vpop.f32.mrb[0].mxu0
    %v1827 = vadd.f32 %v709, %v1826
    %v1828 = vpop.f32.mrb[0].mxu0
    %v1829 = vadd.f32 %v705, %v1828
    %v1830 = vpop.f32.mrb[0].mxu0
    %v1831 = vadd.f32 %v709, %v1830
    %1832 = vmatprep.mubr.bf16.mxu0 %v400
    %1833 = vmatmul.mubr.bf16.gmra.mrb[0].mxu0 %v399
    %v1834 = vpop.f32.mrb[0].mxu0
    %v1835 = vadd.f32 %v705, %v1834
    %v1836 = vpop.f32.mrb[0].mxu0
    %v1837 = vadd.f32 %v709, %v1836
    %v1838 = vpop.f32.mrb[0].mxu0
    %v1839 = vadd.f32 %v705, %v1838
    %v1840 = vpop.f32.mrb[0].mxu0
    %v1841 = vadd.f32 %v709, %v1840
    %1842 = vmatprep.mubr.bf16.mxu0 %v407
    %1843 = vmatmul.mubr.bf16.gmra.mrb[0].mxu0 %v406
    %v1844 = vpop.f32.mrb[0].mxu0
    %v1845 = vadd.f32 %v705, %v1844
    %v1846 = vpop.f32.mrb[0].mxu0
    %v1847 = vadd.f32 %v709, %v1846
    %v1848 = vpop.f32.mrb[0].mxu0
    %v1849 = vadd.f32 %v705, %v1848
    %v1850 = vpop.f32.mrb[0].mxu0
    %v1851 = vadd.f32 %v709, %v1850
    %1852 = vmatprep.mubr.bf16.mxu0 %v414
    %1853 = vmatmul.mubr.bf16.gmra.mrb[0].mxu0 %v413
    %v1854 = vpop.f32.mrb[0].mxu0
    %v1855 = vadd.f32 %v705, %v1854
    %v1856 = vpop.f32.mrb[0].mxu0
    %v1857 = vadd.f32 %v709, %v1856
    %v1858 = vpop.f32.mrb[0].mxu0
    %v1859 = vadd.f32 %v705, %v1858
    %v1860 = vpop.f32.mrb[0].mxu0
    %v1861 = vadd.f32 %v709, %v1860
    %1862 = vmatprep.mubr.bf16.mxu0 %v421
    %1863 = vmatmul.mubr.bf16.gmra.mrb[0].mxu0 %v420
    %v1864 = vpop.f32.mrb[0].mxu0
    %v1865 = vadd.f32 %v705, %v1864
    %v1866 = vpop.f32.mrb[0].mxu0
    %v1867 = vadd.f32 %v709, %v1866
    %v1868 = vpop.f32.mrb[0].mxu0
    %v1869 = vadd.f32 %v705, %v1868
    %v1870 = vpop.f32.mrb[0].mxu0
    %v1871 = vadd.f32 %v709, %v1870
    %1872 = vmatprep.mubr.bf16.mxu0 %v428
    %1873 = vmatmul.mubr.bf16.gmra.mrb[0].mxu0 %v427
    %v1874 = vpop.f32.mrb[0].mxu0
    %v1875 = vadd.f32 %v705, %v1874
    %v1876 = vpop.f32.mrb[0].mxu0
    %v1877 = vadd.f32 %v709, %v1876
    %v1878 = vpop.f32.mrb[0].mxu0
    %v1879 = vadd.f32 %v705, %v1878
    %v1880 = vpop.f32.mrb[0].mxu0
    %v1881 = vadd.f32 %v709, %v1880
    %1882 = vmatprep.mubr.bf16.mxu0 %v435
    %1883 = vmatmul.mubr.bf16.gmra.mrb[0].mxu0 %v434
    %v1884 = vpop.f32.mrb[0].mxu0
    %v1885 = vadd.f32 %v705, %v1884
    %v1886 = vpop.f32.mrb[0].mxu0
    %v1887 = vadd.f32 %v709, %v1886
    %v1888 = vpop.f32.mrb[0].mxu0
    %v1889 = vadd.f32 %v705, %v1888
    %v1890 = vpop.f32.mrb[0].mxu0
    %v1891 = vadd.f32 %v709, %v1890
    %1892 = vmatprep.mubr.bf16.mxu0 %v442
    %1893 = vmatmul.mubr.bf16.gmra.mrb[0].mxu0 %v441
    %v1894 = vpop.f32.mrb[0].mxu0
    %v1895 = vadd.f32 %v705, %v1894
    %v1896 = vpop.f32.mrb[0].mxu0
    %v1897 = vadd.f32 %v709, %v1896
    %v1898 = vpop.f32.mrb[0].mxu0
    %v1899 = vadd.f32 %v705, %v1898
    %v1900 = vpop.f32.mrb[0].mxu0
    %v1901 = vadd.f32 %v709, %v1900
    %1902 = vmatprep.mubr.bf16.mxu0 %v449
    %1903 = vmatmul.mubr.bf16.gmra.mrb[0].mxu0 %v448
    %v1904 = vpop.f32.mrb[0].mxu0
    %v1905 = vadd.f32 %v705, %v1904
    %v1906 = vpop.f32.mrb[0].mxu0
    %v1907 = vadd.f32 %v709, %v1906
    %v1908 = vpop.f32.mrb[0].mxu0
    %v1909 = vadd.f32 %v705, %v1908
    %v1910 = vpop.f32.mrb[0].mxu0
    %v1911 = vadd.f32 %v709, %v1910
    %1912 = vmatprep.mubr.bf16.mxu0 %v456
    %1913 = vmatmul.mubr.bf16.gmra.mrb[0].mxu0 %v455
    %v1914 = vpop.f32.mrb[0].mxu0
    %v1915 = vadd.f32 %v705, %v1914
    %v1916 = vpop.f32.mrb[0].mxu0
    %v1917 = vadd.f32 %v709, %v1916
    %v1918 = vpop.f32.mrb[0].mxu0
    %v1919 = vadd.f32 %v705, %v1918
    %v1920 = vpop.f32.mrb[0].mxu0
    %v1921 = vadd.f32 %v709, %v1920
    %1922 = vmatprep.mubr.bf16.mxu0 %v463
    %1923 = vmatmul.mubr.bf16.gmra.mrb[0].mxu0 %v462
    %v1924 = vpop.f32.mrb[0].mxu0
    %v1925 = vadd.f32 %v705, %v1924
    %v1926 = vpop.f32.mrb[0].mxu0
    %v1927 = vadd.f32 %v709, %v1926
    %v1928 = vpop.f32.mrb[0].mxu0
    %v1929 = vadd.f32 %v705, %v1928
    %v1930 = vpop.f32.mrb[0].mxu0
    %v1931 = vadd.f32 %v709, %v1930
    %1932 = vmatprep.mubr.bf16.mxu0 %v470
    %1933 = vmatmul.mubr.bf16.gmra.mrb[0].mxu0 %v469
    %v1934 = vpop.f32.mrb[0].mxu0
    %v1935 = vadd.f32 %v705, %v1934
    %v1936 = vpop.f32.mrb[0].mxu0
    %v1937 = vadd.f32 %v709, %v1936
    %v1938 = vpop.f32.mrb[0].mxu0
    %v1939 = vadd.f32 %v705, %v1938
    %v1940 = vpop.f32.mrb[0].mxu0
    %v1941 = vadd.f32 %v709, %v1940
    %1942 = vmatprep.mubr.bf16.mxu0 %v477
    %1943 = vmatmul.mubr.bf16.gmra.mrb[0].mxu0 %v476
    %v1944 = vpop.f32.mrb[0].mxu0
    %v1945 = vadd.f32 %v705, %v1944
    %v1946 = vpop.f32.mrb[0].mxu0
    %v1947 = vadd.f32 %v709, %v1946
    %v1948 = vpop.f32.mrb[0].mxu0
    %v1949 = vadd.f32 %v705, %v1948
    %v1950 = vpop.f32.mrb[0].mxu0
    %v1951 = vadd.f32 %v709, %v1950
    %1952 = vmatprep.mubr.bf16.mxu0 %v484
    %1953 = vmatmul.mubr.bf16.gmra.mrb[0].mxu0 %v483
    %v1954 = vpop.f32.mrb[0].mxu0
    %v1955 = vadd.f32 %v705, %v1954
    %v1956 = vpop.f32.mrb[0].mxu0
    %v1957 = vadd.f32 %v709, %v1956
    %v1958 = vpop.f32.mrb[0].mxu0
    %v1959 = vadd.f32 %v705, %v1958
    %v1960 = vpop.f32.mrb[0].mxu0
    %v1961 = vadd.f32 %v709, %v1960
    %1962 = vmatprep.mubr.bf16.mxu0 %v491
    %1963 = vmatmul.mubr.bf16.gmra.mrb[0].mxu0 %v490
    %v1964 = vpop.f32.mrb[0].mxu0
    %v1965 = vadd.f32 %v705, %v1964
    %v1966 = vpop.f32.mrb[0].mxu0
    %v1967 = vadd.f32 %v709, %v1966
    %v1968 = vpop.f32.mrb[0].mxu0
    %v1969 = vadd.f32 %v705, %v1968
    %v1970 = vpop.f32.mrb[0].mxu0
    %v1971 = vadd.f32 %v709, %v1970
    %1972 = vmatprep.mubr.bf16.mxu0 %v498
    %1973 = vmatmul.mubr.bf16.gmra.mrb[0].mxu0 %v497
    %v1974 = vpop.f32.mrb[0].mxu0
    %v1975 = vadd.f32 %v705, %v1974
    %v1976 = vpop.f32.mrb[0].mxu0
    %v1977 = vadd.f32 %v709, %v1976
    %v1978 = vpop.f32.mrb[0].mxu0
    %v1979 = vadd.f32 %v705, %v1978
    %v1980 = vpop.f32.mrb[0].mxu0
    %v1981 = vadd.f32 %v709, %v1980
    %1982 = vdwg.mxu0
    %1983 = vmatprep.subr.bf16.mxu0 %v1375
    %1984 = vmatpush1.bf16.msra.mxu0 %v1374
    %1985 = vmatprep.subr.bf16.mxu0 %v1379
    %1986 = vmatpush1.bf16.msra.mxu0 %v1378
    %1987 = vmatprep.subr.bf16.mxu0 %v1383
    %1988 = vmatpush1.bf16.msra.mxu0 %v1382
    %1989 = vmatprep.subr.bf16.mxu0 %v1387
    %1990 = vmatpush1.bf16.msra.mxu0 %v1386
    %1991 = vmatprep.subr.bf16.mxu0 %v1391
    %1992 = vmatpush1.bf16.msra.mxu0 %v1390
    %1993 = vmatprep.subr.bf16.mxu0 %v1395
    %1994 = vmatpush1.bf16.msra.mxu0 %v1394
    %1995 = vmatprep.subr.bf16.mxu0 %v1399
    %1996 = vmatpush1.bf16.msra.mxu0 %v1398
    %1997 = vmatprep.subr.bf16.mxu0 %v1403
    %1998 = vmatpush1.bf16.msra.mxu0 %v1402
    %1999 = vmatprep.subr.bf16.mxu0 %v1407
    %2000 = vmatpush1.bf16.msra.mxu0 %v1406
    %2001 = vmatprep.subr.bf16.mxu0 %v1411
    %2002 = vmatpush1.bf16.msra.mxu0 %v1410
    %2003 = vmatprep.subr.bf16.mxu0 %v1415
    %2004 = vmatpush1.bf16.msra.mxu0 %v1414
    %2005 = vmatprep.subr.bf16.mxu0 %v1419
    %2006 = vmatpush1.bf16.msra.mxu0 %v1418
    %2007 = vmatprep.subr.bf16.mxu0 %v1423
    %2008 = vmatpush1.bf16.msra.mxu0 %v1422
    %2009 = vmatprep.subr.bf16.mxu0 %v1427
    %2010 = vmatpush1.bf16.msra.mxu0 %v1426
    %2011 = vmatprep.subr.bf16.mxu0 %v1431
    %2012 = vmatpush1.bf16.msra.mxu0 %v1430
    %2013 = vmatprep.subr.bf16.mxu0 %v1435
    %2014 = vmatpush1.bf16.msra.mxu0 %v1434
    %2015 = vmatprep.mubr.bf16.mxu0 %v374
    %2016 = vmatmul.mubr.bf16.gmra.mrb[0].mxu0 %v373
    %v2017 = vpop.f32.mrb[0].mxu0
    %v2018 = vadd.f32 %v1795, %v2017
    %v2019 = vpop.f32.mrb[0].mxu0
    %v2020 = vadd.f32 %v1797, %v2019
    %v2021 = vpop.f32.mrb[0].mxu0
    %v2022 = vadd.f32 %v1799, %v2021
    %v2023 = vpop.f32.mrb[0].mxu0
    %v2024 = vadd.f32 %v1801, %v2023
    %2025 = vmatprep.mubr.bf16.mxu0 %v381
    %2026 = vmatmul.mubr.bf16.gmra.mrb[0].mxu0 %v380
    %v2027 = vpop.f32.mrb[0].mxu0
    %v2028 = vadd.f32 %v1805, %v2027
    %v2029 = vpop.f32.mrb[0].mxu0
    %v2030 = vadd.f32 %v1807, %v2029
    %v2031 = vpop.f32.mrb[0].mxu0
    %v2032 = vadd.f32 %v1809, %v2031
    %v2033 = vpop.f32.mrb[0].mxu0
    %v2034 = vadd.f32 %v1811, %v2033
    %2035 = vmatprep.mubr.bf16.mxu0 %v388
    %2036 = vmatmul.mubr.bf16.gmra.mrb[0].mxu0 %v387
    %v2037 = vpop.f32.mrb[0].mxu0
    %v2038 = vadd.f32 %v1815, %v2037
    %v2039 = vpop.f32.mrb[0].mxu0
    %v2040 = vadd.f32 %v1817, %v2039
    %v2041 = vpop.f32.mrb[0].mxu0
    %v2042 = vadd.f32 %v1819, %v2041
    %v2043 = vpop.f32.mrb[0].mxu0
    %v2044 = vadd.f32 %v1821, %v2043
    %2045 = vmatprep.mubr.bf16.mxu0 %v395
    %2046 = vmatmul.mubr.bf16.gmra.mrb[0].mxu0 %v394
    %v2047 = vpop.f32.mrb[0].mxu0
    %v2048 = vadd.f32 %v1825, %v2047
    %v2049 = vpop.f32.mrb[0].mxu0
    %v2050 = vadd.f32 %v1827, %v2049
    %v2051 = vpop.f32.mrb[0].mxu0
    %v2052 = vadd.f32 %v1829, %v2051
    %v2053 = vpop.f32.mrb[0].mxu0
    %v2054 = vadd.f32 %v1831, %v2053
    %2055 = vmatprep.mubr.bf16.mxu0 %v402
    %2056 = vmatmul.mubr.bf16.gmra.mrb[0].mxu0 %v401
    %v2057 = vpop.f32.mrb[0].mxu0
    %v2058 = vadd.f32 %v1835, %v2057
    %v2059 = vpop.f32.mrb[0].mxu0
    %v2060 = vadd.f32 %v1837, %v2059
    %v2061 = vpop.f32.mrb[0].mxu0
    %v2062 = vadd.f32 %v1839, %v2061
    %v2063 = vpop.f32.mrb[0].mxu0
    %v2064 = vadd.f32 %v1841, %v2063
    %2065 = vmatprep.mubr.bf16.mxu0 %v409
    %2066 = vmatmul.mubr.bf16.gmra.mrb[0].mxu0 %v408
    %v2067 = vpop.f32.mrb[0].mxu0
    %v2068 = vadd.f32 %v1845, %v2067
    %v2069 = vpop.f32.mrb[0].mxu0
    %v2070 = vadd.f32 %v1847, %v2069
    %v2071 = vpop.f32.mrb[0].mxu0
    %v2072 = vadd.f32 %v1849, %v2071
    %v2073 = vpop.f32.mrb[0].mxu0
    %v2074 = vadd.f32 %v1851, %v2073
    %2075 = vmatprep.mubr.bf16.mxu0 %v416
    %2076 = vmatmul.mubr.bf16.gmra.mrb[0].mxu0 %v415
    %v2077 = vpop.f32.mrb[0].mxu0
    %v2078 = vadd.f32 %v1855, %v2077
    %v2079 = vpop.f32.mrb[0].mxu0
    %v2080 = vadd.f32 %v1857, %v2079
    %v2081 = vpop.f32.mrb[0].mxu0
    %v2082 = vadd.f32 %v1859, %v2081
    %v2083 = vpop.f32.mrb[0].mxu0
    %v2084 = vadd.f32 %v1861, %v2083
    %2085 = vmatprep.mubr.bf16.mxu0 %v423
    %2086 = vmatmul.mubr.bf16.gmra.mrb[0].mxu0 %v422
    %v2087 = vpop.f32.mrb[0].mxu0
    %v2088 = vadd.f32 %v1865, %v2087
    %v2089 = vpop.f32.mrb[0].mxu0
    %v2090 = vadd.f32 %v1867, %v2089
    %v2091 = vpop.f32.mrb[0].mxu0
    %v2092 = vadd.f32 %v1869, %v2091
    %v2093 = vpop.f32.mrb[0].mxu0
    %v2094 = vadd.f32 %v1871, %v2093
    %2095 = vmatprep.mubr.bf16.mxu0 %v430
    %2096 = vmatmul.mubr.bf16.gmra.mrb[0].mxu0 %v429
    %v2097 = vpop.f32.mrb[0].mxu0
    %v2098 = vadd.f32 %v1875, %v2097
    %v2099 = vpop.f32.mrb[0].mxu0
    %v2100 = vadd.f32 %v1877, %v2099
    %v2101 = vpop.f32.mrb[0].mxu0
    %v2102 = vadd.f32 %v1879, %v2101
    %v2103 = vpop.f32.mrb[0].mxu0
    %v2104 = vadd.f32 %v1881, %v2103
    %2105 = vmatprep.mubr.bf16.mxu0 %v437
    %2106 = vmatmul.mubr.bf16.gmra.mrb[0].mxu0 %v436
    %v2107 = vpop.f32.mrb[0].mxu0
    %v2108 = vadd.f32 %v1885, %v2107
    %v2109 = vpop.f32.mrb[0].mxu0
    %v2110 = vadd.f32 %v1887, %v2109
    %v2111 = vpop.f32.mrb[0].mxu0
    %v2112 = vadd.f32 %v1889, %v2111
    %v2113 = vpop.f32.mrb[0].mxu0
    %v2114 = vadd.f32 %v1891, %v2113
    %2115 = vmatprep.mubr.bf16.mxu0 %v444
    %2116 = vmatmul.mubr.bf16.gmra.mrb[0].mxu0 %v443
    %v2117 = vpop.f32.mrb[0].mxu0
    %v2118 = vadd.f32 %v1895, %v2117
    %v2119 = vpop.f32.mrb[0].mxu0
    %v2120 = vadd.f32 %v1897, %v2119
    %v2121 = vpop.f32.mrb[0].mxu0
    %v2122 = vadd.f32 %v1899, %v2121
    %v2123 = vpop.f32.mrb[0].mxu0
    %v2124 = vadd.f32 %v1901, %v2123
    %2125 = vmatprep.mubr.bf16.mxu0 %v451
    %2126 = vmatmul.mubr.bf16.gmra.mrb[0].mxu0 %v450
    %v2127 = vpop.f32.mrb[0].mxu0
    %v2128 = vadd.f32 %v1905, %v2127
    %v2129 = vpop.f32.mrb[0].mxu0
    %v2130 = vadd.f32 %v1907, %v2129
    %v2131 = vpop.f32.mrb[0].mxu0
    %v2132 = vadd.f32 %v1909, %v2131
    %v2133 = vpop.f32.mrb[0].mxu0
    %v2134 = vadd.f32 %v1911, %v2133
    %2135 = vmatprep.mubr.bf16.mxu0 %v458
    %2136 = vmatmul.mubr.bf16.gmra.mrb[0].mxu0 %v457
    %v2137 = vpop.f32.mrb[0].mxu0
    %v2138 = vadd.f32 %v1915, %v2137
    %v2139 = vpop.f32.mrb[0].mxu0
    %v2140 = vadd.f32 %v1917, %v2139
    %v2141 = vpop.f32.mrb[0].mxu0
    %v2142 = vadd.f32 %v1919, %v2141
    %v2143 = vpop.f32.mrb[0].mxu0
    %v2144 = vadd.f32 %v1921, %v2143
    %2145 = vmatprep.mubr.bf16.mxu0 %v465
    %2146 = vmatmul.mubr.bf16.gmra.mrb[0].mxu0 %v464
    %v2147 = vpop.f32.mrb[0].mxu0
    %v2148 = vadd.f32 %v1925, %v2147
    %v2149 = vpop.f32.mrb[0].mxu0
    %v2150 = vadd.f32 %v1927, %v2149
    %v2151 = vpop.f32.mrb[0].mxu0
    %v2152 = vadd.f32 %v1929, %v2151
    %v2153 = vpop.f32.mrb[0].mxu0
    %v2154 = vadd.f32 %v1931, %v2153
    %2155 = vmatprep.mubr.bf16.mxu0 %v472
    %2156 = vmatmul.mubr.bf16.gmra.mrb[0].mxu0 %v471
    %v2157 = vpop.f32.mrb[0].mxu0
    %v2158 = vadd.f32 %v1935, %v2157
    %v2159 = vpop.f32.mrb[0].mxu0
    %v2160 = vadd.f32 %v1937, %v2159
    %v2161 = vpop.f32.mrb[0].mxu0
    %v2162 = vadd.f32 %v1939, %v2161
    %v2163 = vpop.f32.mrb[0].mxu0
    %v2164 = vadd.f32 %v1941, %v2163
    %2165 = vmatprep.mubr.bf16.mxu0 %v479
    %2166 = vmatmul.mubr.bf16.gmra.mrb[0].mxu0 %v478
    %v2167 = vpop.f32.mrb[0].mxu0
    %v2168 = vadd.f32 %v1945, %v2167
    %v2169 = vpop.f32.mrb[0].mxu0
    %v2170 = vadd.f32 %v1947, %v2169
    %v2171 = vpop.f32.mrb[0].mxu0
    %v2172 = vadd.f32 %v1949, %v2171
    %v2173 = vpop.f32.mrb[0].mxu0
    %v2174 = vadd.f32 %v1951, %v2173
    %2175 = vmatprep.mubr.bf16.mxu0 %v486
    %2176 = vmatmul.mubr.bf16.gmra.mrb[0].mxu0 %v485
    %v2177 = vpop.f32.mrb[0].mxu0
    %v2178 = vadd.f32 %v1955, %v2177
    %v2179 = vpop.f32.mrb[0].mxu0
    %v2180 = vadd.f32 %v1957, %v2179
    %v2181 = vpop.f32.mrb[0].mxu0
    %v2182 = vadd.f32 %v1959, %v2181
    %v2183 = vpop.f32.mrb[0].mxu0
    %v2184 = vadd.f32 %v1961, %v2183
    %2185 = vmatprep.mubr.bf16.mxu0 %v493
    %2186 = vmatmul.mubr.bf16.gmra.mrb[0].mxu0 %v492
    %v2187 = vpop.f32.mrb[0].mxu0
    %v2188 = vadd.f32 %v1965, %v2187
    %v2189 = vpop.f32.mrb[0].mxu0
    %v2190 = vadd.f32 %v1967, %v2189
    %v2191 = vpop.f32.mrb[0].mxu0
    %v2192 = vadd.f32 %v1969, %v2191
    %v2193 = vpop.f32.mrb[0].mxu0
    %v2194 = vadd.f32 %v1971, %v2193
    %2195 = vmatprep.mubr.bf16.mxu0 %v500
    %2196 = vmatmul.mubr.bf16.gmra.mrb[0].mxu0 %v499
    %v2197 = vpop.f32.mrb[0].mxu0
    %v2198 = vadd.f32 %v1975, %v2197
    %v2199 = vpop.f32.mrb[0].mxu0
    %v2200 = vadd.f32 %v1977, %v2199
    %v2201 = vpop.f32.mrb[0].mxu0
    %v2202 = vadd.f32 %v1979, %v2201
    %v2203 = vpop.f32.mrb[0].mxu0
    %v2204 = vadd.f32 %v1981, %v2203
    %2205 = vdwg.mxu0
    %2206 = vmatprep.subr.bf16.mxu0 %v1439
    %2207 = vmatpush1.bf16.msra.mxu0 %v1438
    %2208 = vmatprep.subr.bf16.mxu0 %v1443
    %2209 = vmatpush1.bf16.msra.mxu0 %v1442
    %2210 = vmatprep.subr.bf16.mxu0 %v1447
    %2211 = vmatpush1.bf16.msra.mxu0 %v1446
    %2212 = vmatprep.subr.bf16.mxu0 %v1451
    %2213 = vmatpush1.bf16.msra.mxu0 %v1450
    %2214 = vmatprep.subr.bf16.mxu0 %v1455
    %2215 = vmatpush1.bf16.msra.mxu0 %v1454
    %2216 = vmatprep.subr.bf16.mxu0 %v1459
    %2217 = vmatpush1.bf16.msra.mxu0 %v1458
    %2218 = vmatprep.subr.bf16.mxu0 %v1463
    %2219 = vmatpush1.bf16.msra.mxu0 %v1462
    %2220 = vmatprep.subr.bf16.mxu0 %v1467
    %2221 = vmatpush1.bf16.msra.mxu0 %v1466
    %2222 = vmatprep.subr.bf16.mxu0 %v1471
    %2223 = vmatpush1.bf16.msra.mxu0 %v1470
    %2224 = vmatprep.subr.bf16.mxu0 %v1475
    %2225 = vmatpush1.bf16.msra.mxu0 %v1474
    %2226 = vmatprep.subr.bf16.mxu0 %v1479
    %2227 = vmatpush1.bf16.msra.mxu0 %v1478
    %2228 = vmatprep.subr.bf16.mxu0 %v1483
    %2229 = vmatpush1.bf16.msra.mxu0 %v1482
    %2230 = vmatprep.subr.bf16.mxu0 %v1487
    %2231 = vmatpush1.bf16.msra.mxu0 %v1486
    %2232 = vmatprep.subr.bf16.mxu0 %v1491
    %2233 = vmatpush1.bf16.msra.mxu0 %v1490
    %2234 = vmatprep.subr.bf16.mxu0 %v1495
    %2235 = vmatpush1.bf16.msra.mxu0 %v1494
    %2236 = vmatprep.subr.bf16.mxu0 %v1499
    %2237 = vmatpush1.bf16.msra.mxu0 %v1498
    %2238 = vmatprep.mubr.bf16.mxu0 %v376
    %2239 = vmatmul.mubr.bf16.gmra.mrb[0].mxu0 %v375
    %v2240 = vpop.f32.mrb[0].mxu0
    %v2241 = vadd.f32 %v2018, %v2240
    %v2242 = vpop.f32.mrb[0].mxu0
    %v2243 = vadd.f32 %v2020, %v2242
    %v2244 = vpop.f32.mrb[0].mxu0
    %v2245 = vadd.f32 %v2022, %v2244
    %v2246 = vpop.f32.mrb[0].mxu0
    %v2247 = vadd.f32 %v2024, %v2246
    %2248 = vmatprep.mubr.bf16.mxu0 %v383
    %2249 = vmatmul.mubr.bf16.gmra.mrb[0].mxu0 %v382
    %v2250 = vpop.f32.mrb[0].mxu0
    %v2251 = vadd.f32 %v2028, %v2250
    %v2252 = vpop.f32.mrb[0].mxu0
    %v2253 = vadd.f32 %v2030, %v2252
    %v2254 = vpop.f32.mrb[0].mxu0
    %v2255 = vadd.f32 %v2032, %v2254
    %v2256 = vpop.f32.mrb[0].mxu0
    %v2257 = vadd.f32 %v2034, %v2256
    %2258 = vmatprep.mubr.bf16.mxu0 %v390
    %2259 = vmatmul.mubr.bf16.gmra.mrb[0].mxu0 %v389
    %v2260 = vpop.f32.mrb[0].mxu0
    %v2261 = vadd.f32 %v2038, %v2260
    %v2262 = vpop.f32.mrb[0].mxu0
    %v2263 = vadd.f32 %v2040, %v2262
    %v2264 = vpop.f32.mrb[0].mxu0
    %v2265 = vadd.f32 %v2042, %v2264
    %v2266 = vpop.f32.mrb[0].mxu0
    %v2267 = vadd.f32 %v2044, %v2266
    %2268 = vmatprep.mubr.bf16.mxu0 %v397
    %2269 = vmatmul.mubr.bf16.gmra.mrb[0].mxu0 %v396
    %v2270 = vpop.f32.mrb[0].mxu0
    %v2271 = vadd.f32 %v2048, %v2270
    %v2272 = vpop.f32.mrb[0].mxu0
    %v2273 = vadd.f32 %v2050, %v2272
    %v2274 = vpop.f32.mrb[0].mxu0
    %v2275 = vadd.f32 %v2052, %v2274
    %v2276 = vpop.f32.mrb[0].mxu0
    %v2277 = vadd.f32 %v2054, %v2276
    %2278 = vmatprep.mubr.bf16.mxu0 %v404
    %2279 = vmatmul.mubr.bf16.gmra.mrb[0].mxu0 %v403
    %v2280 = vpop.f32.mrb[0].mxu0
    %v2281 = vadd.f32 %v2058, %v2280
    %v2282 = vpop.f32.mrb[0].mxu0
    %v2283 = vadd.f32 %v2060, %v2282
    %v2284 = vpop.f32.mrb[0].mxu0
    %v2285 = vadd.f32 %v2062, %v2284
    %v2286 = vpop.f32.mrb[0].mxu0
    %v2287 = vadd.f32 %v2064, %v2286
    %2288 = vmatprep.mubr.bf16.mxu0 %v411
    %2289 = vmatmul.mubr.bf16.gmra.mrb[0].mxu0 %v410
    %v2290 = vpop.f32.mrb[0].mxu0
    %v2291 = vadd.f32 %v2068, %v2290
    %v2292 = vpop.f32.mrb[0].mxu0
    %v2293 = vadd.f32 %v2070, %v2292
    %v2294 = vpop.f32.mrb[0].mxu0
    %v2295 = vadd.f32 %v2072, %v2294
    %v2296 = vpop.f32.mrb[0].mxu0
    %v2297 = vadd.f32 %v2074, %v2296
    %2298 = vmatprep.mubr.bf16.mxu0 %v418
    %2299 = vmatmul.mubr.bf16.gmra.mrb[0].mxu0 %v417
    %v2300 = vpop.f32.mrb[0].mxu0
    %v2301 = vadd.f32 %v2078, %v2300
    %v2302 = vpop.f32.mrb[0].mxu0
    %v2303 = vadd.f32 %v2080, %v2302
    %v2304 = vpop.f32.mrb[0].mxu0
    %v2305 = vadd.f32 %v2082, %v2304
    %v2306 = vpop.f32.mrb[0].mxu0
    %v2307 = vadd.f32 %v2084, %v2306
    %2308 = vmatprep.mubr.bf16.mxu0 %v425
    %2309 = vmatmul.mubr.bf16.gmra.mrb[0].mxu0 %v424
    %v2310 = vpop.f32.mrb[0].mxu0
    %v2311 = vadd.f32 %v2088, %v2310
    %v2312 = vpop.f32.mrb[0].mxu0
    %v2313 = vadd.f32 %v2090, %v2312
    %v2314 = vpop.f32.mrb[0].mxu0
    %v2315 = vadd.f32 %v2092, %v2314
    %v2316 = vpop.f32.mrb[0].mxu0
    %v2317 = vadd.f32 %v2094, %v2316
    %2318 = vmatprep.mubr.bf16.mxu0 %v432
    %2319 = vmatmul.mubr.bf16.gmra.mrb[0].mxu0 %v431
    %v2320 = vpop.f32.mrb[0].mxu0
    %v2321 = vadd.f32 %v2098, %v2320
    %v2322 = vpop.f32.mrb[0].mxu0
    %v2323 = vadd.f32 %v2100, %v2322
    %v2324 = vpop.f32.mrb[0].mxu0
    %v2325 = vadd.f32 %v2102, %v2324
    %v2326 = vpop.f32.mrb[0].mxu0
    %v2327 = vadd.f32 %v2104, %v2326
    %2328 = vmatprep.mubr.bf16.mxu0 %v439
    %2329 = vmatmul.mubr.bf16.gmra.mrb[0].mxu0 %v438
    %v2330 = vpop.f32.mrb[0].mxu0
    %v2331 = vadd.f32 %v2108, %v2330
    %v2332 = vpop.f32.mrb[0].mxu0
    %v2333 = vadd.f32 %v2110, %v2332
    %v2334 = vpop.f32.mrb[0].mxu0
    %v2335 = vadd.f32 %v2112, %v2334
    %v2336 = vpop.f32.mrb[0].mxu0
    %v2337 = vadd.f32 %v2114, %v2336
    %2338 = vmatprep.mubr.bf16.mxu0 %v446
    %2339 = vmatmul.mubr.bf16.gmra.mrb[0].mxu0 %v445
    %v2340 = vpop.f32.mrb[0].mxu0
    %v2341 = vadd.f32 %v2118, %v2340
    %v2342 = vpop.f32.mrb[0].mxu0
    %v2343 = vadd.f32 %v2120, %v2342
    %v2344 = vpop.f32.mrb[0].mxu0
    %v2345 = vadd.f32 %v2122, %v2344
    %v2346 = vpop.f32.mrb[0].mxu0
    %v2347 = vadd.f32 %v2124, %v2346
    %2348 = vmatprep.mubr.bf16.mxu0 %v453
    %2349 = vmatmul.mubr.bf16.gmra.mrb[0].mxu0 %v452
    %v2350 = vpop.f32.mrb[0].mxu0
    %v2351 = vadd.f32 %v2128, %v2350
    %v2352 = vpop.f32.mrb[0].mxu0
    %v2353 = vadd.f32 %v2130, %v2352
    %v2354 = vpop.f32.mrb[0].mxu0
    %v2355 = vadd.f32 %v2132, %v2354
    %v2356 = vpop.f32.mrb[0].mxu0
    %v2357 = vadd.f32 %v2134, %v2356
    %2358 = vmatprep.mubr.bf16.mxu0 %v460
    %2359 = vmatmul.mubr.bf16.gmra.mrb[0].mxu0 %v459
    %v2360 = vpop.f32.mrb[0].mxu0
    %v2361 = vadd.f32 %v2138, %v2360
    %v2362 = vpop.f32.mrb[0].mxu0
    %v2363 = vadd.f32 %v2140, %v2362
    %v2364 = vpop.f32.mrb[0].mxu0
    %v2365 = vadd.f32 %v2142, %v2364
    %v2366 = vpop.f32.mrb[0].mxu0
    %v2367 = vadd.f32 %v2144, %v2366
    %2368 = vmatprep.mubr.bf16.mxu0 %v467
    %2369 = vmatmul.mubr.bf16.gmra.mrb[0].mxu0 %v466
    %v2370 = vpop.f32.mrb[0].mxu0
    %v2371 = vadd.f32 %v2148, %v2370
    %v2372 = vpop.f32.mrb[0].mxu0
    %v2373 = vadd.f32 %v2150, %v2372
    %v2374 = vpop.f32.mrb[0].mxu0
    %v2375 = vadd.f32 %v2152, %v2374
    %v2376 = vpop.f32.mrb[0].mxu0
    %v2377 = vadd.f32 %v2154, %v2376
    %2378 = vmatprep.mubr.bf16.mxu0 %v474
    %2379 = vmatmul.mubr.bf16.gmra.mrb[0].mxu0 %v473
    %v2380 = vpop.f32.mrb[0].mxu0
    %v2381 = vadd.f32 %v2158, %v2380
    %v2382 = vpop.f32.mrb[0].mxu0
    %v2383 = vadd.f32 %v2160, %v2382
    %v2384 = vpop.f32.mrb[0].mxu0
    %v2385 = vadd.f32 %v2162, %v2384
    %v2386 = vpop.f32.mrb[0].mxu0
    %v2387 = vadd.f32 %v2164, %v2386
    %2388 = vmatprep.mubr.bf16.mxu0 %v481
    %2389 = vmatmul.mubr.bf16.gmra.mrb[0].mxu0 %v480
    %v2390 = vpop.f32.mrb[0].mxu0
    %v2391 = vadd.f32 %v2168, %v2390
    %v2392 = vpop.f32.mrb[0].mxu0
    %v2393 = vadd.f32 %v2170, %v2392
    %v2394 = vpop.f32.mrb[0].mxu0
    %v2395 = vadd.f32 %v2172, %v2394
    %v2396 = vpop.f32.mrb[0].mxu0
    %v2397 = vadd.f32 %v2174, %v2396
    %2398 = vmatprep.mubr.bf16.mxu0 %v488
    %2399 = vmatmul.mubr.bf16.gmra.mrb[0].mxu0 %v487
    %v2400 = vpop.f32.mrb[0].mxu0
    %v2401 = vadd.f32 %v2178, %v2400
    %v2402 = vpop.f32.mrb[0].mxu0
    %v2403 = vadd.f32 %v2180, %v2402
    %v2404 = vpop.f32.mrb[0].mxu0
    %v2405 = vadd.f32 %v2182, %v2404
    %v2406 = vpop.f32.mrb[0].mxu0
    %v2407 = vadd.f32 %v2184, %v2406
    %2408 = vmatprep.mubr.bf16.mxu0 %v495
    %2409 = vmatmul.mubr.bf16.gmra.mrb[0].mxu0 %v494
    %v2410 = vpop.f32.mrb[0].mxu0
    %v2411 = vadd.f32 %v2188, %v2410
    %v2412 = vpop.f32.mrb[0].mxu0
    %v2413 = vadd.f32 %v2190, %v2412
    %v2414 = vpop.f32.mrb[0].mxu0
    %v2415 = vadd.f32 %v2192, %v2414
    %v2416 = vpop.f32.mrb[0].mxu0
    %v2417 = vadd.f32 %v2194, %v2416
    %2418 = vmatprep.mubr.bf16.mxu0 %v502
    %2419 = vmatmul.mubr.bf16.gmra.mrb[0].mxu0 %v501
    %v2420 = vpop.f32.mrb[0].mxu0
    %v2421 = vadd.f32 %v2198, %v2420
    %v2422 = vpop.f32.mrb[0].mxu0
    %v2423 = vadd.f32 %v2200, %v2422
    %v2424 = vpop.f32.mrb[0].mxu0
    %v2425 = vadd.f32 %v2202, %v2424
    %v2426 = vpop.f32.mrb[0].mxu0
    %v2427 = vadd.f32 %v2204, %v2426
    %2428 = vdwg.mxu0
    %2429 = vmatprep.subr.bf16.mxu0 %v1503
    %2430 = vmatpush1.bf16.msra.mxu0 %v1502
    %2431 = vmatprep.subr.bf16.mxu0 0
    %2432 = vmatpush1.bf16.msra.mxu0 0
    %2433 = vmatprep.subr.bf16.mxu0 0
    %2434 = vmatpush1.bf16.msra.mxu0 0
    %2435 = vmatprep.subr.bf16.mxu0 0
    %2436 = vmatpush1.bf16.msra.mxu0 0
    %2437 = vmatprep.subr.bf16.mxu0 0
    %2438 = vmatpush1.bf16.msra.mxu0 0
    %2439 = vmatprep.subr.bf16.mxu0 0
    %2440 = vmatpush1.bf16.msra.mxu0 0
    %2441 = vmatprep.subr.bf16.mxu0 0
    %2442 = vmatpush1.bf16.msra.mxu0 0
    %2443 = vmatprep.subr.bf16.mxu0 0
    %2444 = vmatpush1.bf16.msra.mxu0 0
    %2445 = vmatprep.subr.bf16.mxu0 0
    %2446 = vmatpush1.bf16.msra.mxu0 0
    %2447 = vmatprep.subr.bf16.mxu0 0
    %2448 = vmatpush1.bf16.msra.mxu0 0
    %2449 = vmatprep.subr.bf16.mxu0 0
    %2450 = vmatpush1.bf16.msra.mxu0 0
    %2451 = vmatprep.subr.bf16.mxu0 0
    %2452 = vmatpush1.bf16.msra.mxu0 0
    %2453 = vmatprep.subr.bf16.mxu0 0
    %2454 = vmatpush1.bf16.msra.mxu0 0
    %2455 = vmatprep.subr.bf16.mxu0 0
    %2456 = vmatpush1.bf16.msra.mxu0 0
    %2457 = vmatprep.subr.bf16.mxu0 0
    %2458 = vmatpush1.bf16.msra.mxu0 0
    %2459 = vmatprep.subr.bf16.mxu0 0
    %2460 = vmatpush1.bf16.msra.mxu0 0
    %2461 = vmatprep.mubr.bf16.mxu0 0
    %2462 = vmatmul.mubr.bf16.gmra.mrb[0].mxu0 %v1704
    %v2463 = vpop.f32.mrb[0].mxu0
    %v2464 = vadd.f32 %v2241, %v2463
    %v2465 = vpop.f32.mrb[0].mxu0
    %v2466 = vadd.f32 %v2243, %v2465
    %v2467 = vpop.f32.mrb[0].mxu0
    %v2468 = vadd.f32 %v2245, %v2467
    %v2469 = vpop.f32.mrb[0].mxu0
    %v2470 = vadd.f32 %v2247, %v2469
    %2471 = vmatprep.mubr.bf16.mxu0 0
    %2472 = vmatmul.mubr.bf16.gmra.mrb[0].mxu0 %v1707
    %v2473 = vpop.f32.mrb[0].mxu0
    %v2474 = vadd.f32 %v2251, %v2473
    %v2475 = vpop.f32.mrb[0].mxu0
    %v2476 = vadd.f32 %v2253, %v2475
    %v2477 = vpop.f32.mrb[0].mxu0
    %v2478 = vadd.f32 %v2255, %v2477
    %v2479 = vpop.f32.mrb[0].mxu0
    %v2480 = vadd.f32 %v2257, %v2479
    %2481 = vmatprep.mubr.bf16.mxu0 0
    %2482 = vmatmul.mubr.bf16.gmra.mrb[0].mxu0 %v1710
    %v2483 = vpop.f32.mrb[0].mxu0
    %v2484 = vadd.f32 %v2261, %v2483
    %v2485 = vpop.f32.mrb[0].mxu0
    %v2486 = vadd.f32 %v2263, %v2485
    %v2487 = vpop.f32.mrb[0].mxu0
    %v2488 = vadd.f32 %v2265, %v2487
    %v2489 = vpop.f32.mrb[0].mxu0
    %v2490 = vadd.f32 %v2267, %v2489
    %2491 = vmatprep.mubr.bf16.mxu0 0
    %2492 = vmatmul.mubr.bf16.gmra.mrb[0].mxu0 %v1713
    %v2493 = vpop.f32.mrb[0].mxu0
    %v2494 = vadd.f32 %v2271, %v2493
    %v2495 = vpop.f32.mrb[0].mxu0
    %v2496 = vadd.f32 %v2273, %v2495
    %v2497 = vpop.f32.mrb[0].mxu0
    %v2498 = vadd.f32 %v2275, %v2497
    %v2499 = vpop.f32.mrb[0].mxu0
    %v2500 = vadd.f32 %v2277, %v2499
    %2501 = vmatprep.mubr.bf16.mxu0 0
    %2502 = vmatmul.mubr.bf16.gmra.mrb[0].mxu0 %v1716
    %v2503 = vpop.f32.mrb[0].mxu0
    %v2504 = vadd.f32 %v2281, %v2503
    %v2505 = vpop.f32.mrb[0].mxu0
    %v2506 = vadd.f32 %v2283, %v2505
    %v2507 = vpop.f32.mrb[0].mxu0
    %v2508 = vadd.f32 %v2285, %v2507
    %v2509 = vpop.f32.mrb[0].mxu0
    %v2510 = vadd.f32 %v2287, %v2509
    %2511 = vmatprep.mubr.bf16.mxu0 0
    %2512 = vmatmul.mubr.bf16.gmra.mrb[0].mxu0 %v1719
    %v2513 = vpop.f32.mrb[0].mxu0
    %v2514 = vadd.f32 %v2291, %v2513
    %v2515 = vpop.f32.mrb[0].mxu0
    %v2516 = vadd.f32 %v2293, %v2515
    %v2517 = vpop.f32.mrb[0].mxu0
    %v2518 = vadd.f32 %v2295, %v2517
    %v2519 = vpop.f32.mrb[0].mxu0
    %v2520 = vadd.f32 %v2297, %v2519
    %2521 = vmatprep.mubr.bf16.mxu0 0
    %2522 = vmatmul.mubr.bf16.gmra.mrb[0].mxu0 %v1722
    %v2523 = vpop.f32.mrb[0].mxu0
    %v2524 = vadd.f32 %v2301, %v2523
    %v2525 = vpop.f32.mrb[0].mxu0
    %v2526 = vadd.f32 %v2303, %v2525
    %v2527 = vpop.f32.mrb[0].mxu0
    %v2528 = vadd.f32 %v2305, %v2527
    %v2529 = vpop.f32.mrb[0].mxu0
    %v2530 = vadd.f32 %v2307, %v2529
    %2531 = vmatprep.mubr.bf16.mxu0 0
    %2532 = vmatmul.mubr.bf16.gmra.mrb[0].mxu0 %v1725
    %v2533 = vpop.f32.mrb[0].mxu0
    %v2534 = vadd.f32 %v2311, %v2533
    %v2535 = vpop.f32.mrb[0].mxu0
    %v2536 = vadd.f32 %v2313, %v2535
    %v2537 = vpop.f32.mrb[0].mxu0
    %v2538 = vadd.f32 %v2315, %v2537
    %v2539 = vpop.f32.mrb[0].mxu0
    %v2540 = vadd.f32 %v2317, %v2539
    %2541 = vmatprep.mubr.bf16.mxu0 0
    %2542 = vmatmul.mubr.bf16.gmra.mrb[0].mxu0 %v1728
    %v2543 = vpop.f32.mrb[0].mxu0
    %v2544 = vadd.f32 %v2321, %v2543
    %v2545 = vpop.f32.mrb[0].mxu0
    %v2546 = vadd.f32 %v2323, %v2545
    %v2547 = vpop.f32.mrb[0].mxu0
    %v2548 = vadd.f32 %v2325, %v2547
    %v2549 = vpop.f32.mrb[0].mxu0
    %v2550 = vadd.f32 %v2327, %v2549
    %2551 = vmatprep.mubr.bf16.mxu0 0
    %2552 = vmatmul.mubr.bf16.gmra.mrb[0].mxu0 %v1731
    %v2553 = vpop.f32.mrb[0].mxu0
    %v2554 = vadd.f32 %v2331, %v2553
    %v2555 = vpop.f32.mrb[0].mxu0
    %v2556 = vadd.f32 %v2333, %v2555
    %v2557 = vpop.f32.mrb[0].mxu0
    %v2558 = vadd.f32 %v2335, %v2557
    %v2559 = vpop.f32.mrb[0].mxu0
    %v2560 = vadd.f32 %v2337, %v2559
    %2561 = vmatprep.mubr.bf16.mxu0 0
    %2562 = vmatmul.mubr.bf16.gmra.mrb[0].mxu0 %v1734
    %v2563 = vpop.f32.mrb[0].mxu0
    %v2564 = vadd.f32 %v2341, %v2563
    %v2565 = vpop.f32.mrb[0].mxu0
    %v2566 = vadd.f32 %v2343, %v2565
    %v2567 = vpop.f32.mrb[0].mxu0
    %v2568 = vadd.f32 %v2345, %v2567
    %v2569 = vpop.f32.mrb[0].mxu0
    %v2570 = vadd.f32 %v2347, %v2569
    %2571 = vmatprep.mubr.bf16.mxu0 0
    %2572 = vmatmul.mubr.bf16.gmra.mrb[0].mxu0 %v1737
    %v2573 = vpop.f32.mrb[0].mxu0
    %v2574 = vadd.f32 %v2351, %v2573
    %v2575 = vpop.f32.mrb[0].mxu0
    %v2576 = vadd.f32 %v2353, %v2575
    %v2577 = vpop.f32.mrb[0].mxu0
    %v2578 = vadd.f32 %v2355, %v2577
    %v2579 = vpop.f32.mrb[0].mxu0
    %v2580 = vadd.f32 %v2357, %v2579
    %2581 = vmatprep.mubr.bf16.mxu0 0
    %2582 = vmatmul.mubr.bf16.gmra.mrb[0].mxu0 %v1740
    %v2583 = vpop.f32.mrb[0].mxu0
    %v2584 = vadd.f32 %v2361, %v2583
    %v2585 = vpop.f32.mrb[0].mxu0
    %v2586 = vadd.f32 %v2363, %v2585
    %v2587 = vpop.f32.mrb[0].mxu0
    %v2588 = vadd.f32 %v2365, %v2587
    %v2589 = vpop.f32.mrb[0].mxu0
    %v2590 = vadd.f32 %v2367, %v2589
    %2591 = vmatprep.mubr.bf16.mxu0 0
    %2592 = vmatmul.mubr.bf16.gmra.mrb[0].mxu0 %v1743
    %v2593 = vpop.f32.mrb[0].mxu0
    %v2594 = vadd.f32 %v2371, %v2593
    %v2595 = vpop.f32.mrb[0].mxu0
    %v2596 = vadd.f32 %v2373, %v2595
    %v2597 = vpop.f32.mrb[0].mxu0
    %v2598 = vadd.f32 %v2375, %v2597
    %v2599 = vpop.f32.mrb[0].mxu0
    %v2600 = vadd.f32 %v2377, %v2599
    %2601 = vmatprep.mubr.bf16.mxu0 0
    %2602 = vmatmul.mubr.bf16.gmra.mrb[0].mxu0 %v1746
    %v2603 = vpop.f32.mrb[0].mxu0
    %v2604 = vadd.f32 %v2381, %v2603
    %v2605 = vpop.f32.mrb[0].mxu0
    %v2606 = vadd.f32 %v2383, %v2605
    %v2607 = vpop.f32.mrb[0].mxu0
    %v2608 = vadd.f32 %v2385, %v2607
    %v2609 = vpop.f32.mrb[0].mxu0
    %v2610 = vadd.f32 %v2387, %v2609
    %2611 = vmatprep.mubr.bf16.mxu0 0
    %2612 = vmatmul.mubr.bf16.gmra.mrb[0].mxu0 %v1749
    %v2613 = vpop.f32.mrb[0].mxu0
    %v2614 = vadd.f32 %v2391, %v2613
    %v2615 = vpop.f32.mrb[0].mxu0
    %v2616 = vadd.f32 %v2393, %v2615
    %v2617 = vpop.f32.mrb[0].mxu0
    %v2618 = vadd.f32 %v2395, %v2617
    %v2619 = vpop.f32.mrb[0].mxu0
    %v2620 = vadd.f32 %v2397, %v2619
    %2621 = vmatprep.mubr.bf16.mxu0 0
    %2622 = vmatmul.mubr.bf16.gmra.mrb[0].mxu0 %v1752
    %v2623 = vpop.f32.mrb[0].mxu0
    %v2624 = vadd.f32 %v2401, %v2623
    %v2625 = vpop.f32.mrb[0].mxu0
    %v2626 = vadd.f32 %v2403, %v2625
    %v2627 = vpop.f32.mrb[0].mxu0
    %v2628 = vadd.f32 %v2405, %v2627
    %v2629 = vpop.f32.mrb[0].mxu0
    %v2630 = vadd.f32 %v2407, %v2629
    %2631 = vmatprep.mubr.bf16.mxu0 0
    %2632 = vmatmul.mubr.bf16.gmra.mrb[0].mxu0 %v1755
    %v2633 = vpop.f32.mrb[0].mxu0
    %v2634 = vadd.f32 %v2411, %v2633
    %v2635 = vpop.f32.mrb[0].mxu0
    %v2636 = vadd.f32 %v2413, %v2635
    %v2637 = vpop.f32.mrb[0].mxu0
    %v2638 = vadd.f32 %v2415, %v2637
    %v2639 = vpop.f32.mrb[0].mxu0
    %v2640 = vadd.f32 %v2417, %v2639
    %2641 = vmatprep.mubr.bf16.mxu0 0
    %2642 = vmatmul.mubr.bf16.gmra.mrb[0].mxu0 %v1758
    %v2643 = vpop.f32.mrb[0].mxu0
    %v2644 = vadd.f32 %v2421, %v2643
    %v2645 = vpop.f32.mrb[0].mxu0
    %v2646 = vadd.f32 %v2423, %v2645
    %v2647 = vpop.f32.mrb[0].mxu0
    %v2648 = vadd.f32 %v2425, %v2647
    %v2649 = vpop.f32.mrb[0].mxu0
    %v2650 = vadd.f32 %v2427, %v2649
    %2651 = vdwg.mxu0
    %2652 = vmatprep.subr.bf16.mxu0 %v1313
    %2653 = vmatpush1.bf16.msra.mxu0 %v1312
    %2654 = vmatprep.subr.bf16.mxu0 %v1317
    %2655 = vmatpush1.bf16.msra.mxu0 %v1316
    %2656 = vmatprep.subr.bf16.mxu0 %v1321
    %2657 = vmatpush1.bf16.msra.mxu0 %v1320
    %2658 = vmatprep.subr.bf16.mxu0 %v1325
    %2659 = vmatpush1.bf16.msra.mxu0 %v1324
    %2660 = vmatprep.subr.bf16.mxu0 %v1329
    %2661 = vmatpush1.bf16.msra.mxu0 %v1328
    %2662 = vmatprep.subr.bf16.mxu0 %v1333
    %2663 = vmatpush1.bf16.msra.mxu0 %v1332
    %2664 = vmatprep.subr.bf16.mxu0 %v1337
    %2665 = vmatpush1.bf16.msra.mxu0 %v1336
    %2666 = vmatprep.subr.bf16.mxu0 %v1341
    %2667 = vmatpush1.bf16.msra.mxu0 %v1340
    %2668 = vmatprep.subr.bf16.mxu0 %v1345
    %2669 = vmatpush1.bf16.msra.mxu0 %v1344
    %2670 = vmatprep.subr.bf16.mxu0 %v1349
    %2671 = vmatpush1.bf16.msra.mxu0 %v1348
    %2672 = vmatprep.subr.bf16.mxu0 %v1353
    %2673 = vmatpush1.bf16.msra.mxu0 %v1352
    %2674 = vmatprep.subr.bf16.mxu0 %v1357
    %2675 = vmatpush1.bf16.msra.mxu0 %v1356
    %2676 = vmatprep.subr.bf16.mxu0 %v1361
    %2677 = vmatpush1.bf16.msra.mxu0 %v1360
    %2678 = vmatprep.subr.bf16.mxu0 %v1365
    %2679 = vmatpush1.bf16.msra.mxu0 %v1364
    %2680 = vmatprep.subr.bf16.mxu0 %v1369
    %2681 = vmatpush1.bf16.msra.mxu0 %v1368
    %2682 = vmatprep.subr.bf16.mxu0 %v1373
    %2683 = vmatpush1.bf16.msra.mxu0 %v1372
    %2684 = vmatprep.mubr.bf16.mxu0 %v372
    %2685 = vmatmul.mubr.bf16.gmra.mrb[0].mxu0 %v371
    %v2686 = vpop.f32.mrb[0].mxu0
    %v2687 = vadd.f32 %v713, %v2686
    %v2688 = vpop.f32.mrb[0].mxu0
    %v2689 = vadd.f32 %v717, %v2688
    %v2690 = vpop.f32.mrb[0].mxu0
    %v2691 = vadd.f32 %v713, %v2690
    %v2692 = vpop.f32.mrb[0].mxu0
    %v2693 = vadd.f32 %v717, %v2692
    %2694 = vmatprep.mubr.bf16.mxu0 %v379
    %2695 = vmatmul.mubr.bf16.gmra.mrb[0].mxu0 %v378
    %v2696 = vpop.f32.mrb[0].mxu0
    %v2697 = vadd.f32 %v713, %v2696
    %v2698 = vpop.f32.mrb[0].mxu0
    %v2699 = vadd.f32 %v717, %v2698
    %v2700 = vpop.f32.mrb[0].mxu0
    %v2701 = vadd.f32 %v713, %v2700
    %v2702 = vpop.f32.mrb[0].mxu0
    %v2703 = vadd.f32 %v717, %v2702
    %2704 = vmatprep.mubr.bf16.mxu0 %v386
    %2705 = vmatmul.mubr.bf16.gmra.mrb[0].mxu0 %v385
    %v2706 = vpop.f32.mrb[0].mxu0
    %v2707 = vadd.f32 %v713, %v2706
    %v2708 = vpop.f32.mrb[0].mxu0
    %v2709 = vadd.f32 %v717, %v2708
    %v2710 = vpop.f32.mrb[0].mxu0
    %v2711 = vadd.f32 %v713, %v2710
    %v2712 = vpop.f32.mrb[0].mxu0
    %v2713 = vadd.f32 %v717, %v2712
    %2714 = vmatprep.mubr.bf16.mxu0 %v393
    %2715 = vmatmul.mubr.bf16.gmra.mrb[0].mxu0 %v392
    %v2716 = vpop.f32.mrb[0].mxu0
    %v2717 = vadd.f32 %v713, %v2716
    %v2718 = vpop.f32.mrb[0].mxu0
    %v2719 = vadd.f32 %v717, %v2718
    %v2720 = vpop.f32.mrb[0].mxu0
    %v2721 = vadd.f32 %v713, %v2720
    %v2722 = vpop.f32.mrb[0].mxu0
    %v2723 = vadd.f32 %v717, %v2722
    %2724 = vmatprep.mubr.bf16.mxu0 %v400
    %2725 = vmatmul.mubr.bf16.gmra.mrb[0].mxu0 %v399
    %v2726 = vpop.f32.mrb[0].mxu0
    %v2727 = vadd.f32 %v713, %v2726
    %v2728 = vpop.f32.mrb[0].mxu0
    %v2729 = vadd.f32 %v717, %v2728
    %v2730 = vpop.f32.mrb[0].mxu0
    %v2731 = vadd.f32 %v713, %v2730
    %v2732 = vpop.f32.mrb[0].mxu0
    %v2733 = vadd.f32 %v717, %v2732
    %2734 = vmatprep.mubr.bf16.mxu0 %v407
    %2735 = vmatmul.mubr.bf16.gmra.mrb[0].mxu0 %v406
    %v2736 = vpop.f32.mrb[0].mxu0
    %v2737 = vadd.f32 %v713, %v2736
    %v2738 = vpop.f32.mrb[0].mxu0
    %v2739 = vadd.f32 %v717, %v2738
    %v2740 = vpop.f32.mrb[0].mxu0
    %v2741 = vadd.f32 %v713, %v2740
    %v2742 = vpop.f32.mrb[0].mxu0
    %v2743 = vadd.f32 %v717, %v2742
    %2744 = vmatprep.mubr.bf16.mxu0 %v414
    %2745 = vmatmul.mubr.bf16.gmra.mrb[0].mxu0 %v413
    %v2746 = vpop.f32.mrb[0].mxu0
    %v2747 = vadd.f32 %v713, %v2746
    %v2748 = vpop.f32.mrb[0].mxu0
    %v2749 = vadd.f32 %v717, %v2748
    %v2750 = vpop.f32.mrb[0].mxu0
    %v2751 = vadd.f32 %v713, %v2750
    %v2752 = vpop.f32.mrb[0].mxu0
    %v2753 = vadd.f32 %v717, %v2752
    %2754 = vmatprep.mubr.bf16.mxu0 %v421
    %2755 = vmatmul.mubr.bf16.gmra.mrb[0].mxu0 %v420
    %v2756 = vpop.f32.mrb[0].mxu0
    %v2757 = vadd.f32 %v713, %v2756
    %v2758 = vpop.f32.mrb[0].mxu0
    %v2759 = vadd.f32 %v717, %v2758
    %v2760 = vpop.f32.mrb[0].mxu0
    %v2761 = vadd.f32 %v713, %v2760
    %v2762 = vpop.f32.mrb[0].mxu0
    %v2763 = vadd.f32 %v717, %v2762
    %2764 = vmatprep.mubr.bf16.mxu0 %v428
    %2765 = vmatmul.mubr.bf16.gmra.mrb[0].mxu0 %v427
    %v2766 = vpop.f32.mrb[0].mxu0
    %v2767 = vadd.f32 %v713, %v2766
    %v2768 = vpop.f32.mrb[0].mxu0
    %v2769 = vadd.f32 %v717, %v2768
    %v2770 = vpop.f32.mrb[0].mxu0
    %v2771 = vadd.f32 %v713, %v2770
    %v2772 = vpop.f32.mrb[0].mxu0
    %v2773 = vadd.f32 %v717, %v2772
    %2774 = vmatprep.mubr.bf16.mxu0 %v435
    %2775 = vmatmul.mubr.bf16.gmra.mrb[0].mxu0 %v434
    %v2776 = vpop.f32.mrb[0].mxu0
    %v2777 = vadd.f32 %v713, %v2776
    %v2778 = vpop.f32.mrb[0].mxu0
    %v2779 = vadd.f32 %v717, %v2778
    %v2780 = vpop.f32.mrb[0].mxu0
    %v2781 = vadd.f32 %v713, %v2780
    %v2782 = vpop.f32.mrb[0].mxu0
    %v2783 = vadd.f32 %v717, %v2782
    %2784 = vmatprep.mubr.bf16.mxu0 %v442
    %2785 = vmatmul.mubr.bf16.gmra.mrb[0].mxu0 %v441
    %v2786 = vpop.f32.mrb[0].mxu0
    %v2787 = vadd.f32 %v713, %v2786
    %v2788 = vpop.f32.mrb[0].mxu0
    %v2789 = vadd.f32 %v717, %v2788
    %v2790 = vpop.f32.mrb[0].mxu0
    %v2791 = vadd.f32 %v713, %v2790
    %v2792 = vpop.f32.mrb[0].mxu0
    %v2793 = vadd.f32 %v717, %v2792
    %2794 = vmatprep.mubr.bf16.mxu0 %v449
    %2795 = vmatmul.mubr.bf16.gmra.mrb[0].mxu0 %v448
    %v2796 = vpop.f32.mrb[0].mxu0
    %v2797 = vadd.f32 %v713, %v2796
    %v2798 = vpop.f32.mrb[0].mxu0
    %v2799 = vadd.f32 %v717, %v2798
    %v2800 = vpop.f32.mrb[0].mxu0
    %v2801 = vadd.f32 %v713, %v2800
    %v2802 = vpop.f32.mrb[0].mxu0
    %v2803 = vadd.f32 %v717, %v2802
    %2804 = vmatprep.mubr.bf16.mxu0 %v456
    %2805 = vmatmul.mubr.bf16.gmra.mrb[0].mxu0 %v455
    %v2806 = vpop.f32.mrb[0].mxu0
    %v2807 = vadd.f32 %v713, %v2806
    %v2808 = vpop.f32.mrb[0].mxu0
    %v2809 = vadd.f32 %v717, %v2808
    %v2810 = vpop.f32.mrb[0].mxu0
    %v2811 = vadd.f32 %v713, %v2810
    %v2812 = vpop.f32.mrb[0].mxu0
    %v2813 = vadd.f32 %v717, %v2812
    %2814 = vmatprep.mubr.bf16.mxu0 %v463
    %2815 = vmatmul.mubr.bf16.gmra.mrb[0].mxu0 %v462
    %v2816 = vpop.f32.mrb[0].mxu0
    %v2817 = vadd.f32 %v713, %v2816
    %v2818 = vpop.f32.mrb[0].mxu0
    %v2819 = vadd.f32 %v717, %v2818
    %v2820 = vpop.f32.mrb[0].mxu0
    %v2821 = vadd.f32 %v713, %v2820
    %v2822 = vpop.f32.mrb[0].mxu0
    %v2823 = vadd.f32 %v717, %v2822
    %2824 = vmatprep.mubr.bf16.mxu0 %v470
    %2825 = vmatmul.mubr.bf16.gmra.mrb[0].mxu0 %v469
    %v2826 = vpop.f32.mrb[0].mxu0
    %v2827 = vadd.f32 %v713, %v2826
    %v2828 = vpop.f32.mrb[0].mxu0
    %v2829 = vadd.f32 %v717, %v2828
    %v2830 = vpop.f32.mrb[0].mxu0
    %v2831 = vadd.f32 %v713, %v2830
    %v2832 = vpop.f32.mrb[0].mxu0
    %v2833 = vadd.f32 %v717, %v2832
    %2834 = vmatprep.mubr.bf16.mxu0 %v477
    %2835 = vmatmul.mubr.bf16.gmra.mrb[0].mxu0 %v476
    %v2836 = vpop.f32.mrb[0].mxu0
    %v2837 = vadd.f32 %v713, %v2836
    %v2838 = vpop.f32.mrb[0].mxu0
    %v2839 = vadd.f32 %v717, %v2838
    %v2840 = vpop.f32.mrb[0].mxu0
    %v2841 = vadd.f32 %v713, %v2840
    %v2842 = vpop.f32.mrb[0].mxu0
    %v2843 = vadd.f32 %v717, %v2842
    %2844 = vmatprep.mubr.bf16.mxu0 %v484
    %2845 = vmatmul.mubr.bf16.gmra.mrb[0].mxu0 %v483
    %v2846 = vpop.f32.mrb[0].mxu0
    %v2847 = vadd.f32 %v713, %v2846
    %v2848 = vpop.f32.mrb[0].mxu0
    %v2849 = vadd.f32 %v717, %v2848
    %v2850 = vpop.f32.mrb[0].mxu0
    %v2851 = vadd.f32 %v713, %v2850
    %v2852 = vpop.f32.mrb[0].mxu0
    %v2853 = vadd.f32 %v717, %v2852
    %2854 = vmatprep.mubr.bf16.mxu0 %v491
    %2855 = vmatmul.mubr.bf16.gmra.mrb[0].mxu0 %v490
    %v2856 = vpop.f32.mrb[0].mxu0
    %v2857 = vadd.f32 %v713, %v2856
    %v2858 = vpop.f32.mrb[0].mxu0
    %v2859 = vadd.f32 %v717, %v2858
    %v2860 = vpop.f32.mrb[0].mxu0
    %v2861 = vadd.f32 %v713, %v2860
    %v2862 = vpop.f32.mrb[0].mxu0
    %v2863 = vadd.f32 %v717, %v2862
    %2864 = vmatprep.mubr.bf16.mxu0 %v498
    %2865 = vmatmul.mubr.bf16.gmra.mrb[0].mxu0 %v497
    %v2866 = vpop.f32.mrb[0].mxu0
    %v2867 = vadd.f32 %v713, %v2866
    %v2868 = vpop.f32.mrb[0].mxu0
    %v2869 = vadd.f32 %v717, %v2868
    %v2870 = vpop.f32.mrb[0].mxu0
    %v2871 = vadd.f32 %v713, %v2870
    %v2872 = vpop.f32.mrb[0].mxu0
    %v2873 = vadd.f32 %v717, %v2872
    %2874 = vdwg.mxu0
    %2875 = vmatprep.subr.bf16.mxu0 %v1377
    %2876 = vmatpush1.bf16.msra.mxu0 %v1376
    %2877 = vmatprep.subr.bf16.mxu0 %v1381
    %2878 = vmatpush1.bf16.msra.mxu0 %v1380
    %2879 = vmatprep.subr.bf16.mxu0 %v1385
    %2880 = vmatpush1.bf16.msra.mxu0 %v1384
    %2881 = vmatprep.subr.bf16.mxu0 %v1389
    %2882 = vmatpush1.bf16.msra.mxu0 %v1388
    %2883 = vmatprep.subr.bf16.mxu0 %v1393
    %2884 = vmatpush1.bf16.msra.mxu0 %v1392
    %2885 = vmatprep.subr.bf16.mxu0 %v1397
    %2886 = vmatpush1.bf16.msra.mxu0 %v1396
    %2887 = vmatprep.subr.bf16.mxu0 %v1401
    %2888 = vmatpush1.bf16.msra.mxu0 %v1400
    %2889 = vmatprep.subr.bf16.mxu0 %v1405
    %2890 = vmatpush1.bf16.msra.mxu0 %v1404
    %2891 = vmatprep.subr.bf16.mxu0 %v1409
    %2892 = vmatpush1.bf16.msra.mxu0 %v1408
    %2893 = vmatprep.subr.bf16.mxu0 %v1413
    %2894 = vmatpush1.bf16.msra.mxu0 %v1412
    %2895 = vmatprep.subr.bf16.mxu0 %v1417
    %2896 = vmatpush1.bf16.msra.mxu0 %v1416
    %2897 = vmatprep.subr.bf16.mxu0 %v1421
    %2898 = vmatpush1.bf16.msra.mxu0 %v1420
    %2899 = vmatprep.subr.bf16.mxu0 %v1425
    %2900 = vmatpush1.bf16.msra.mxu0 %v1424
    %2901 = vmatprep.subr.bf16.mxu0 %v1429
    %2902 = vmatpush1.bf16.msra.mxu0 %v1428
    %2903 = vmatprep.subr.bf16.mxu0 %v1433
    %2904 = vmatpush1.bf16.msra.mxu0 %v1432
    %2905 = vmatprep.subr.bf16.mxu0 %v1437
    %2906 = vmatpush1.bf16.msra.mxu0 %v1436
    %2907 = vmatprep.mubr.bf16.mxu0 %v374
    %2908 = vmatmul.mubr.bf16.gmra.mrb[0].mxu0 %v373
    %v2909 = vpop.f32.mrb[0].mxu0
    %v2910 = vadd.f32 %v2687, %v2909
    %v2911 = vpop.f32.mrb[0].mxu0
    %v2912 = vadd.f32 %v2689, %v2911
    %v2913 = vpop.f32.mrb[0].mxu0
    %v2914 = vadd.f32 %v2691, %v2913
    %v2915 = vpop.f32.mrb[0].mxu0
    %v2916 = vadd.f32 %v2693, %v2915
    %2917 = vmatprep.mubr.bf16.mxu0 %v381
    %2918 = vmatmul.mubr.bf16.gmra.mrb[0].mxu0 %v380
    %v2919 = vpop.f32.mrb[0].mxu0
    %v2920 = vadd.f32 %v2697, %v2919
    %v2921 = vpop.f32.mrb[0].mxu0
    %v2922 = vadd.f32 %v2699, %v2921
    %v2923 = vpop.f32.mrb[0].mxu0
    %v2924 = vadd.f32 %v2701, %v2923
    %v2925 = vpop.f32.mrb[0].mxu0
    %v2926 = vadd.f32 %v2703, %v2925
    %2927 = vmatprep.mubr.bf16.mxu0 %v388
    %2928 = vmatmul.mubr.bf16.gmra.mrb[0].mxu0 %v387
    %v2929 = vpop.f32.mrb[0].mxu0
    %v2930 = vadd.f32 %v2707, %v2929
    %v2931 = vpop.f32.mrb[0].mxu0
    %v2932 = vadd.f32 %v2709, %v2931
    %v2933 = vpop.f32.mrb[0].mxu0
    %v2934 = vadd.f32 %v2711, %v2933
    %v2935 = vpop.f32.mrb[0].mxu0
    %v2936 = vadd.f32 %v2713, %v2935
    %2937 = vmatprep.mubr.bf16.mxu0 %v395
    %2938 = vmatmul.mubr.bf16.gmra.mrb[0].mxu0 %v394
    %v2939 = vpop.f32.mrb[0].mxu0
    %v2940 = vadd.f32 %v2717, %v2939
    %v2941 = vpop.f32.mrb[0].mxu0
    %v2942 = vadd.f32 %v2719, %v2941
    %v2943 = vpop.f32.mrb[0].mxu0
    %v2944 = vadd.f32 %v2721, %v2943
    %v2945 = vpop.f32.mrb[0].mxu0
    %v2946 = vadd.f32 %v2723, %v2945
    %2947 = vmatprep.mubr.bf16.mxu0 %v402
    %2948 = vmatmul.mubr.bf16.gmra.mrb[0].mxu0 %v401
    %v2949 = vpop.f32.mrb[0].mxu0
    %v2950 = vadd.f32 %v2727, %v2949
    %v2951 = vpop.f32.mrb[0].mxu0
    %v2952 = vadd.f32 %v2729, %v2951
    %v2953 = vpop.f32.mrb[0].mxu0
    %v2954 = vadd.f32 %v2731, %v2953
    %v2955 = vpop.f32.mrb[0].mxu0
    %v2956 = vadd.f32 %v2733, %v2955
    %2957 = vmatprep.mubr.bf16.mxu0 %v409
    %2958 = vmatmul.mubr.bf16.gmra.mrb[0].mxu0 %v408
    %v2959 = vpop.f32.mrb[0].mxu0
    %v2960 = vadd.f32 %v2737, %v2959
    %v2961 = vpop.f32.mrb[0].mxu0
    %v2962 = vadd.f32 %v2739, %v2961
    %v2963 = vpop.f32.mrb[0].mxu0
    %v2964 = vadd.f32 %v2741, %v2963
    %v2965 = vpop.f32.mrb[0].mxu0
    %v2966 = vadd.f32 %v2743, %v2965
    %2967 = vmatprep.mubr.bf16.mxu0 %v416
    %2968 = vmatmul.mubr.bf16.gmra.mrb[0].mxu0 %v415
    %v2969 = vpop.f32.mrb[0].mxu0
    %v2970 = vadd.f32 %v2747, %v2969
    %v2971 = vpop.f32.mrb[0].mxu0
    %v2972 = vadd.f32 %v2749, %v2971
    %v2973 = vpop.f32.mrb[0].mxu0
    %v2974 = vadd.f32 %v2751, %v2973
    %v2975 = vpop.f32.mrb[0].mxu0
    %v2976 = vadd.f32 %v2753, %v2975
    %2977 = vmatprep.mubr.bf16.mxu0 %v423
    %2978 = vmatmul.mubr.bf16.gmra.mrb[0].mxu0 %v422
    %v2979 = vpop.f32.mrb[0].mxu0
    %v2980 = vadd.f32 %v2757, %v2979
    %v2981 = vpop.f32.mrb[0].mxu0
    %v2982 = vadd.f32 %v2759, %v2981
    %v2983 = vpop.f32.mrb[0].mxu0
    %v2984 = vadd.f32 %v2761, %v2983
    %v2985 = vpop.f32.mrb[0].mxu0
    %v2986 = vadd.f32 %v2763, %v2985
    %2987 = vmatprep.mubr.bf16.mxu0 %v430
    %2988 = vmatmul.mubr.bf16.gmra.mrb[0].mxu0 %v429
    %v2989 = vpop.f32.mrb[0].mxu0
    %v2990 = vadd.f32 %v2767, %v2989
    %v2991 = vpop.f32.mrb[0].mxu0
    %v2992 = vadd.f32 %v2769, %v2991
    %v2993 = vpop.f32.mrb[0].mxu0
    %v2994 = vadd.f32 %v2771, %v2993
    %v2995 = vpop.f32.mrb[0].mxu0
    %v2996 = vadd.f32 %v2773, %v2995
    %2997 = vmatprep.mubr.bf16.mxu0 %v437
    %2998 = vmatmul.mubr.bf16.gmra.mrb[0].mxu0 %v436
    %v2999 = vpop.f32.mrb[0].mxu0
    %v3000 = vadd.f32 %v2777, %v2999
    %v3001 = vpop.f32.mrb[0].mxu0
    %v3002 = vadd.f32 %v2779, %v3001
    %v3003 = vpop.f32.mrb[0].mxu0
    %v3004 = vadd.f32 %v2781, %v3003
    %v3005 = vpop.f32.mrb[0].mxu0
    %v3006 = vadd.f32 %v2783, %v3005
    %3007 = vmatprep.mubr.bf16.mxu0 %v444
    %3008 = vmatmul.mubr.bf16.gmra.mrb[0].mxu0 %v443
    %v3009 = vpop.f32.mrb[0].mxu0
    %v3010 = vadd.f32 %v2787, %v3009
    %v3011 = vpop.f32.mrb[0].mxu0
    %v3012 = vadd.f32 %v2789, %v3011
    %v3013 = vpop.f32.mrb[0].mxu0
    %v3014 = vadd.f32 %v2791, %v3013
    %v3015 = vpop.f32.mrb[0].mxu0
    %v3016 = vadd.f32 %v2793, %v3015
    %3017 = vmatprep.mubr.bf16.mxu0 %v451
    %3018 = vmatmul.mubr.bf16.gmra.mrb[0].mxu0 %v450
    %v3019 = vpop.f32.mrb[0].mxu0
    %v3020 = vadd.f32 %v2797, %v3019
    %v3021 = vpop.f32.mrb[0].mxu0
    %v3022 = vadd.f32 %v2799, %v3021
    %v3023 = vpop.f32.mrb[0].mxu0
    %v3024 = vadd.f32 %v2801, %v3023
    %v3025 = vpop.f32.mrb[0].mxu0
    %v3026 = vadd.f32 %v2803, %v3025
    %3027 = vmatprep.mubr.bf16.mxu0 %v458
    %3028 = vmatmul.mubr.bf16.gmra.mrb[0].mxu0 %v457
    %v3029 = vpop.f32.mrb[0].mxu0
    %v3030 = vadd.f32 %v2807, %v3029
    %v3031 = vpop.f32.mrb[0].mxu0
    %v3032 = vadd.f32 %v2809, %v3031
    %v3033 = vpop.f32.mrb[0].mxu0
    %v3034 = vadd.f32 %v2811, %v3033
    %v3035 = vpop.f32.mrb[0].mxu0
    %v3036 = vadd.f32 %v2813, %v3035
    %3037 = vmatprep.mubr.bf16.mxu0 %v465
    %3038 = vmatmul.mubr.bf16.gmra.mrb[0].mxu0 %v464
    %v3039 = vpop.f32.mrb[0].mxu0
    %v3040 = vadd.f32 %v2817, %v3039
    %v3041 = vpop.f32.mrb[0].mxu0
    %v3042 = vadd.f32 %v2819, %v3041
    %v3043 = vpop.f32.mrb[0].mxu0
    %v3044 = vadd.f32 %v2821, %v3043
    %v3045 = vpop.f32.mrb[0].mxu0
    %v3046 = vadd.f32 %v2823, %v3045
    %3047 = vmatprep.mubr.bf16.mxu0 %v472
    %3048 = vmatmul.mubr.bf16.gmra.mrb[0].mxu0 %v471
    %v3049 = vpop.f32.mrb[0].mxu0
    %v3050 = vadd.f32 %v2827, %v3049
    %v3051 = vpop.f32.mrb[0].mxu0
    %v3052 = vadd.f32 %v2829, %v3051
    %v3053 = vpop.f32.mrb[0].mxu0
    %v3054 = vadd.f32 %v2831, %v3053
    %v3055 = vpop.f32.mrb[0].mxu0
    %v3056 = vadd.f32 %v2833, %v3055
    %3057 = vmatprep.mubr.bf16.mxu0 %v479
    %3058 = vmatmul.mubr.bf16.gmra.mrb[0].mxu0 %v478
    %v3059 = vpop.f32.mrb[0].mxu0
    %v3060 = vadd.f32 %v2837, %v3059
    %v3061 = vpop.f32.mrb[0].mxu0
    %v3062 = vadd.f32 %v2839, %v3061
    %v3063 = vpop.f32.mrb[0].mxu0
    %v3064 = vadd.f32 %v2841, %v3063
    %v3065 = vpop.f32.mrb[0].mxu0
    %v3066 = vadd.f32 %v2843, %v3065
    %3067 = vmatprep.mubr.bf16.mxu0 %v486
    %3068 = vmatmul.mubr.bf16.gmra.mrb[0].mxu0 %v485
    %v3069 = vpop.f32.mrb[0].mxu0
    %v3070 = vadd.f32 %v2847, %v3069
    %v3071 = vpop.f32.mrb[0].mxu0
    %v3072 = vadd.f32 %v2849, %v3071
    %v3073 = vpop.f32.mrb[0].mxu0
    %v3074 = vadd.f32 %v2851, %v3073
    %v3075 = vpop.f32.mrb[0].mxu0
    %v3076 = vadd.f32 %v2853, %v3075
    %3077 = vmatprep.mubr.bf16.mxu0 %v493
    %3078 = vmatmul.mubr.bf16.gmra.mrb[0].mxu0 %v492
    %v3079 = vpop.f32.mrb[0].mxu0
    %v3080 = vadd.f32 %v2857, %v3079
    %v3081 = vpop.f32.mrb[0].mxu0
    %v3082 = vadd.f32 %v2859, %v3081
    %v3083 = vpop.f32.mrb[0].mxu0
    %v3084 = vadd.f32 %v2861, %v3083
    %v3085 = vpop.f32.mrb[0].mxu0
    %v3086 = vadd.f32 %v2863, %v3085
    %3087 = vmatprep.mubr.bf16.mxu0 %v500
    %3088 = vmatmul.mubr.bf16.gmra.mrb[0].mxu0 %v499
    %v3089 = vpop.f32.mrb[0].mxu0
    %v3090 = vadd.f32 %v2867, %v3089
    %v3091 = vpop.f32.mrb[0].mxu0
    %v3092 = vadd.f32 %v2869, %v3091
    %v3093 = vpop.f32.mrb[0].mxu0
    %v3094 = vadd.f32 %v2871, %v3093
    %v3095 = vpop.f32.mrb[0].mxu0
    %v3096 = vadd.f32 %v2873, %v3095
    %3097 = vdwg.mxu0
    %3098 = vmatprep.subr.bf16.mxu0 %v1441
    %3099 = vmatpush1.bf16.msra.mxu0 %v1440
    %3100 = vmatprep.subr.bf16.mxu0 %v1445
    %3101 = vmatpush1.bf16.msra.mxu0 %v1444
    %3102 = vmatprep.subr.bf16.mxu0 %v1449
    %3103 = vmatpush1.bf16.msra.mxu0 %v1448
    %3104 = vmatprep.subr.bf16.mxu0 %v1453
    %3105 = vmatpush1.bf16.msra.mxu0 %v1452
    %3106 = vmatprep.subr.bf16.mxu0 %v1457
    %3107 = vmatpush1.bf16.msra.mxu0 %v1456
    %3108 = vmatprep.subr.bf16.mxu0 %v1461
    %3109 = vmatpush1.bf16.msra.mxu0 %v1460
    %3110 = vmatprep.subr.bf16.mxu0 %v1465
    %3111 = vmatpush1.bf16.msra.mxu0 %v1464
    %3112 = vmatprep.subr.bf16.mxu0 %v1469
    %3113 = vmatpush1.bf16.msra.mxu0 %v1468
    %3114 = vmatprep.subr.bf16.mxu0 %v1473
    %3115 = vmatpush1.bf16.msra.mxu0 %v1472
    %3116 = vmatprep.subr.bf16.mxu0 %v1477
    %3117 = vmatpush1.bf16.msra.mxu0 %v1476
    %3118 = vmatprep.subr.bf16.mxu0 %v1481
    %3119 = vmatpush1.bf16.msra.mxu0 %v1480
    %3120 = vmatprep.subr.bf16.mxu0 %v1485
    %3121 = vmatpush1.bf16.msra.mxu0 %v1484
    %3122 = vmatprep.subr.bf16.mxu0 %v1489
    %3123 = vmatpush1.bf16.msra.mxu0 %v1488
    %3124 = vmatprep.subr.bf16.mxu0 %v1493
    %3125 = vmatpush1.bf16.msra.mxu0 %v1492
    %3126 = vmatprep.subr.bf16.mxu0 %v1497
    %3127 = vmatpush1.bf16.msra.mxu0 %v1496
    %3128 = vmatprep.subr.bf16.mxu0 %v1501
    %3129 = vmatpush1.bf16.msra.mxu0 %v1500
    %3130 = vmatprep.mubr.bf16.mxu0 %v376
    %3131 = vmatmul.mubr.bf16.gmra.mrb[0].mxu0 %v375
    %v3132 = vpop.f32.mrb[0].mxu0
    %v3133 = vadd.f32 %v2910, %v3132
    %v3134 = vpop.f32.mrb[0].mxu0
    %v3135 = vadd.f32 %v2912, %v3134
    %v3136 = vpop.f32.mrb[0].mxu0
    %v3137 = vadd.f32 %v2914, %v3136
    %v3138 = vpop.f32.mrb[0].mxu0
    %v3139 = vadd.f32 %v2916, %v3138
    %3140 = vmatprep.mubr.bf16.mxu0 %v383
    %3141 = vmatmul.mubr.bf16.gmra.mrb[0].mxu0 %v382
    %v3142 = vpop.f32.mrb[0].mxu0
    %v3143 = vadd.f32 %v2920, %v3142
    %v3144 = vpop.f32.mrb[0].mxu0
    %v3145 = vadd.f32 %v2922, %v3144
    %v3146 = vpop.f32.mrb[0].mxu0
    %v3147 = vadd.f32 %v2924, %v3146
    %v3148 = vpop.f32.mrb[0].mxu0
    %v3149 = vadd.f32 %v2926, %v3148
    %3150 = vmatprep.mubr.bf16.mxu0 %v390
    %3151 = vmatmul.mubr.bf16.gmra.mrb[0].mxu0 %v389
    %v3152 = vpop.f32.mrb[0].mxu0
    %v3153 = vadd.f32 %v2930, %v3152
    %v3154 = vpop.f32.mrb[0].mxu0
    %v3155 = vadd.f32 %v2932, %v3154
    %v3156 = vpop.f32.mrb[0].mxu0
    %v3157 = vadd.f32 %v2934, %v3156
    %v3158 = vpop.f32.mrb[0].mxu0
    %v3159 = vadd.f32 %v2936, %v3158
    %3160 = vmatprep.mubr.bf16.mxu0 %v397
    %3161 = vmatmul.mubr.bf16.gmra.mrb[0].mxu0 %v396
    %v3162 = vpop.f32.mrb[0].mxu0
    %v3163 = vadd.f32 %v2940, %v3162
    %v3164 = vpop.f32.mrb[0].mxu0
    %v3165 = vadd.f32 %v2942, %v3164
    %v3166 = vpop.f32.mrb[0].mxu0
    %v3167 = vadd.f32 %v2944, %v3166
    %v3168 = vpop.f32.mrb[0].mxu0
    %v3169 = vadd.f32 %v2946, %v3168
    %3170 = vmatprep.mubr.bf16.mxu0 %v404
    %3171 = vmatmul.mubr.bf16.gmra.mrb[0].mxu0 %v403
    %v3172 = vpop.f32.mrb[0].mxu0
    %v3173 = vadd.f32 %v2950, %v3172
    %v3174 = vpop.f32.mrb[0].mxu0
    %v3175 = vadd.f32 %v2952, %v3174
    %v3176 = vpop.f32.mrb[0].mxu0
    %v3177 = vadd.f32 %v2954, %v3176
    %v3178 = vpop.f32.mrb[0].mxu0
    %v3179 = vadd.f32 %v2956, %v3178
    %3180 = vmatprep.mubr.bf16.mxu0 %v411
    %3181 = vmatmul.mubr.bf16.gmra.mrb[0].mxu0 %v410
    %v3182 = vpop.f32.mrb[0].mxu0
    %v3183 = vadd.f32 %v2960, %v3182
    %v3184 = vpop.f32.mrb[0].mxu0
    %v3185 = vadd.f32 %v2962, %v3184
    %v3186 = vpop.f32.mrb[0].mxu0
    %v3187 = vadd.f32 %v2964, %v3186
    %v3188 = vpop.f32.mrb[0].mxu0
    %v3189 = vadd.f32 %v2966, %v3188
    %3190 = vmatprep.mubr.bf16.mxu0 %v418
    %3191 = vmatmul.mubr.bf16.gmra.mrb[0].mxu0 %v417
    %v3192 = vpop.f32.mrb[0].mxu0
    %v3193 = vadd.f32 %v2970, %v3192
    %v3194 = vpop.f32.mrb[0].mxu0
    %v3195 = vadd.f32 %v2972, %v3194
    %v3196 = vpop.f32.mrb[0].mxu0
    %v3197 = vadd.f32 %v2974, %v3196
    %v3198 = vpop.f32.mrb[0].mxu0
    %v3199 = vadd.f32 %v2976, %v3198
    %3200 = vmatprep.mubr.bf16.mxu0 %v425
    %3201 = vmatmul.mubr.bf16.gmra.mrb[0].mxu0 %v424
    %v3202 = vpop.f32.mrb[0].mxu0
    %v3203 = vadd.f32 %v2980, %v3202
    %v3204 = vpop.f32.mrb[0].mxu0
    %v3205 = vadd.f32 %v2982, %v3204
    %v3206 = vpop.f32.mrb[0].mxu0
    %v3207 = vadd.f32 %v2984, %v3206
    %v3208 = vpop.f32.mrb[0].mxu0
    %v3209 = vadd.f32 %v2986, %v3208
    %3210 = vmatprep.mubr.bf16.mxu0 %v432
    %3211 = vmatmul.mubr.bf16.gmra.mrb[0].mxu0 %v431
    %v3212 = vpop.f32.mrb[0].mxu0
    %v3213 = vadd.f32 %v2990, %v3212
    %v3214 = vpop.f32.mrb[0].mxu0
    %v3215 = vadd.f32 %v2992, %v3214
    %v3216 = vpop.f32.mrb[0].mxu0
    %v3217 = vadd.f32 %v2994, %v3216
    %v3218 = vpop.f32.mrb[0].mxu0
    %v3219 = vadd.f32 %v2996, %v3218
    %3220 = vmatprep.mubr.bf16.mxu0 %v439
    %3221 = vmatmul.mubr.bf16.gmra.mrb[0].mxu0 %v438
    %v3222 = vpop.f32.mrb[0].mxu0
    %v3223 = vadd.f32 %v3000, %v3222
    %v3224 = vpop.f32.mrb[0].mxu0
    %v3225 = vadd.f32 %v3002, %v3224
    %v3226 = vpop.f32.mrb[0].mxu0
    %v3227 = vadd.f32 %v3004, %v3226
    %v3228 = vpop.f32.mrb[0].mxu0
    %v3229 = vadd.f32 %v3006, %v3228
    %3230 = vmatprep.mubr.bf16.mxu0 %v446
    %3231 = vmatmul.mubr.bf16.gmra.mrb[0].mxu0 %v445
    %v3232 = vpop.f32.mrb[0].mxu0
    %v3233 = vadd.f32 %v3010, %v3232
    %v3234 = vpop.f32.mrb[0].mxu0
    %v3235 = vadd.f32 %v3012, %v3234
    %v3236 = vpop.f32.mrb[0].mxu0
    %v3237 = vadd.f32 %v3014, %v3236
    %v3238 = vpop.f32.mrb[0].mxu0
    %v3239 = vadd.f32 %v3016, %v3238
    %3240 = vmatprep.mubr.bf16.mxu0 %v453
    %3241 = vmatmul.mubr.bf16.gmra.mrb[0].mxu0 %v452
    %v3242 = vpop.f32.mrb[0].mxu0
    %v3243 = vadd.f32 %v3020, %v3242
    %v3244 = vpop.f32.mrb[0].mxu0
    %v3245 = vadd.f32 %v3022, %v3244
    %v3246 = vpop.f32.mrb[0].mxu0
    %v3247 = vadd.f32 %v3024, %v3246
    %v3248 = vpop.f32.mrb[0].mxu0
    %v3249 = vadd.f32 %v3026, %v3248
    %3250 = vmatprep.mubr.bf16.mxu0 %v460
    %3251 = vmatmul.mubr.bf16.gmra.mrb[0].mxu0 %v459
    %v3252 = vpop.f32.mrb[0].mxu0
    %v3253 = vadd.f32 %v3030, %v3252
    %v3254 = vpop.f32.mrb[0].mxu0
    %v3255 = vadd.f32 %v3032, %v3254
    %v3256 = vpop.f32.mrb[0].mxu0
    %v3257 = vadd.f32 %v3034, %v3256
    %v3258 = vpop.f32.mrb[0].mxu0
    %v3259 = vadd.f32 %v3036, %v3258
    %3260 = vmatprep.mubr.bf16.mxu0 %v467
    %3261 = vmatmul.mubr.bf16.gmra.mrb[0].mxu0 %v466
    %v3262 = vpop.f32.mrb[0].mxu0
    %v3263 = vadd.f32 %v3040, %v3262
    %v3264 = vpop.f32.mrb[0].mxu0
    %v3265 = vadd.f32 %v3042, %v3264
    %v3266 = vpop.f32.mrb[0].mxu0
    %v3267 = vadd.f32 %v3044, %v3266
    %v3268 = vpop.f32.mrb[0].mxu0
    %v3269 = vadd.f32 %v3046, %v3268
    %3270 = vmatprep.mubr.bf16.mxu0 %v474
    %3271 = vmatmul.mubr.bf16.gmra.mrb[0].mxu0 %v473
    %v3272 = vpop.f32.mrb[0].mxu0
    %v3273 = vadd.f32 %v3050, %v3272
    %v3274 = vpop.f32.mrb[0].mxu0
    %v3275 = vadd.f32 %v3052, %v3274
    %v3276 = vpop.f32.mrb[0].mxu0
    %v3277 = vadd.f32 %v3054, %v3276
    %v3278 = vpop.f32.mrb[0].mxu0
    %v3279 = vadd.f32 %v3056, %v3278
    %3280 = vmatprep.mubr.bf16.mxu0 %v481
    %3281 = vmatmul.mubr.bf16.gmra.mrb[0].mxu0 %v480
    %v3282 = vpop.f32.mrb[0].mxu0
    %v3283 = vadd.f32 %v3060, %v3282
    %v3284 = vpop.f32.mrb[0].mxu0
    %v3285 = vadd.f32 %v3062, %v3284
    %v3286 = vpop.f32.mrb[0].mxu0
    %v3287 = vadd.f32 %v3064, %v3286
    %v3288 = vpop.f32.mrb[0].mxu0
    %v3289 = vadd.f32 %v3066, %v3288
    %3290 = vmatprep.mubr.bf16.mxu0 %v488
    %3291 = vmatmul.mubr.bf16.gmra.mrb[0].mxu0 %v487
    %v3292 = vpop.f32.mrb[0].mxu0
    %v3293 = vadd.f32 %v3070, %v3292
    %v3294 = vpop.f32.mrb[0].mxu0
    %v3295 = vadd.f32 %v3072, %v3294
    %v3296 = vpop.f32.mrb[0].mxu0
    %v3297 = vadd.f32 %v3074, %v3296
    %v3298 = vpop.f32.mrb[0].mxu0
    %v3299 = vadd.f32 %v3076, %v3298
    %3300 = vmatprep.mubr.bf16.mxu0 %v495
    %3301 = vmatmul.mubr.bf16.gmra.mrb[0].mxu0 %v494
    %v3302 = vpop.f32.mrb[0].mxu0
    %v3303 = vadd.f32 %v3080, %v3302
    %v3304 = vpop.f32.mrb[0].mxu0
    %v3305 = vadd.f32 %v3082, %v3304
    %v3306 = vpop.f32.mrb[0].mxu0
    %v3307 = vadd.f32 %v3084, %v3306
    %v3308 = vpop.f32.mrb[0].mxu0
    %v3309 = vadd.f32 %v3086, %v3308
    %3310 = vmatprep.mubr.bf16.mxu0 %v502
    %3311 = vmatmul.mubr.bf16.gmra.mrb[0].mxu0 %v501
    %v3312 = vpop.f32.mrb[0].mxu0
    %v3313 = vadd.f32 %v3090, %v3312
    %v3314 = vpop.f32.mrb[0].mxu0
    %v3315 = vadd.f32 %v3092, %v3314
    %v3316 = vpop.f32.mrb[0].mxu0
    %v3317 = vadd.f32 %v3094, %v3316
    %v3318 = vpop.f32.mrb[0].mxu0
    %v3319 = vadd.f32 %v3096, %v3318
    %3320 = vdwg.mxu0
    %3321 = vmatprep.subr.bf16.mxu0 %v1505
    %3322 = vmatpush1.bf16.msra.mxu0 %v1504
    %3323 = vmatprep.subr.bf16.mxu0 0
    %3324 = vmatpush1.bf16.msra.mxu0 0
    %3325 = vmatprep.subr.bf16.mxu0 0
    %3326 = vmatpush1.bf16.msra.mxu0 0
    %3327 = vmatprep.subr.bf16.mxu0 0
    %3328 = vmatpush1.bf16.msra.mxu0 0
    %3329 = vmatprep.subr.bf16.mxu0 0
    %3330 = vmatpush1.bf16.msra.mxu0 0
    %3331 = vmatprep.subr.bf16.mxu0 0
    %3332 = vmatpush1.bf16.msra.mxu0 0
    %3333 = vmatprep.subr.bf16.mxu0 0
    %3334 = vmatpush1.bf16.msra.mxu0 0
    %3335 = vmatprep.subr.bf16.mxu0 0
    %3336 = vmatpush1.bf16.msra.mxu0 0
    %3337 = vmatprep.subr.bf16.mxu0 0
    %3338 = vmatpush1.bf16.msra.mxu0 0
    %3339 = vmatprep.subr.bf16.mxu0 0
    %3340 = vmatpush1.bf16.msra.mxu0 0
    %3341 = vmatprep.subr.bf16.mxu0 0
    %3342 = vmatpush1.bf16.msra.mxu0 0
    %3343 = vmatprep.subr.bf16.mxu0 0
    %3344 = vmatpush1.bf16.msra.mxu0 0
    %3345 = vmatprep.subr.bf16.mxu0 0
    %3346 = vmatpush1.bf16.msra.mxu0 0
    %3347 = vmatprep.subr.bf16.mxu0 0
    %3348 = vmatpush1.bf16.msra.mxu0 0
    %3349 = vmatprep.subr.bf16.mxu0 0
    %3350 = vmatpush1.bf16.msra.mxu0 0
    %3351 = vmatprep.subr.bf16.mxu0 0
    %3352 = vmatpush1.bf16.msra.mxu0 0
    %3353 = vmatprep.mubr.bf16.mxu0 0
    %3354 = vmatmul.mubr.bf16.gmra.mrb[0].mxu0 %v1704
    %v3355 = vpop.f32.mrb[0].mxu0
    %v3356 = vadd.f32 %v3133, %v3355
    %v3357 = vpop.f32.mrb[0].mxu0
    %v3358 = vadd.f32 %v3135, %v3357
    %v3359 = vpop.f32.mrb[0].mxu0
    %v3360 = vadd.f32 %v3137, %v3359
    %v3361 = vpop.f32.mrb[0].mxu0
    %v3362 = vadd.f32 %v3139, %v3361
    %3363 = vmatprep.mubr.bf16.mxu0 0
    %3364 = vmatmul.mubr.bf16.gmra.mrb[0].mxu0 %v1707
    %v3365 = vpop.f32.mrb[0].mxu0
    %v3366 = vadd.f32 %v3143, %v3365
    %v3367 = vpop.f32.mrb[0].mxu0
    %v3368 = vadd.f32 %v3145, %v3367
    %v3369 = vpop.f32.mrb[0].mxu0
    %v3370 = vadd.f32 %v3147, %v3369
    %v3371 = vpop.f32.mrb[0].mxu0
    %v3372 = vadd.f32 %v3149, %v3371
    %3373 = vmatprep.mubr.bf16.mxu0 0
    %3374 = vmatmul.mubr.bf16.gmra.mrb[0].mxu0 %v1710
    %v3375 = vpop.f32.mrb[0].mxu0
    %v3376 = vadd.f32 %v3153, %v3375
    %v3377 = vpop.f32.mrb[0].mxu0
    %v3378 = vadd.f32 %v3155, %v3377
    %v3379 = vpop.f32.mrb[0].mxu0
    %v3380 = vadd.f32 %v3157, %v3379
    %v3381 = vpop.f32.mrb[0].mxu0
    %v3382 = vadd.f32 %v3159, %v3381
    %3383 = vmatprep.mubr.bf16.mxu0 0
    %3384 = vmatmul.mubr.bf16.gmra.mrb[0].mxu0 %v1713
    %v3385 = vpop.f32.mrb[0].mxu0
    %v3386 = vadd.f32 %v3163, %v3385
    %v3387 = vpop.f32.mrb[0].mxu0
    %v3388 = vadd.f32 %v3165, %v3387
    %v3389 = vpop.f32.mrb[0].mxu0
    %v3390 = vadd.f32 %v3167, %v3389
    %v3391 = vpop.f32.mrb[0].mxu0
    %v3392 = vadd.f32 %v3169, %v3391
    %3393 = vmatprep.mubr.bf16.mxu0 0
    %3394 = vmatmul.mubr.bf16.gmra.mrb[0].mxu0 %v1716
    %v3395 = vpop.f32.mrb[0].mxu0
    %v3396 = vadd.f32 %v3173, %v3395
    %v3397 = vpop.f32.mrb[0].mxu0
    %v3398 = vadd.f32 %v3175, %v3397
    %v3399 = vpop.f32.mrb[0].mxu0
    %v3400 = vadd.f32 %v3177, %v3399
    %v3401 = vpop.f32.mrb[0].mxu0
    %v3402 = vadd.f32 %v3179, %v3401
    %3403 = vmatprep.mubr.bf16.mxu0 0
    %3404 = vmatmul.mubr.bf16.gmra.mrb[0].mxu0 %v1719
    %v3405 = vpop.f32.mrb[0].mxu0
    %v3406 = vadd.f32 %v3183, %v3405
    %v3407 = vpop.f32.mrb[0].mxu0
    %v3408 = vadd.f32 %v3185, %v3407
    %v3409 = vpop.f32.mrb[0].mxu0
    %v3410 = vadd.f32 %v3187, %v3409
    %v3411 = vpop.f32.mrb[0].mxu0
    %v3412 = vadd.f32 %v3189, %v3411
    %3413 = vmatprep.mubr.bf16.mxu0 0
    %3414 = vmatmul.mubr.bf16.gmra.mrb[0].mxu0 %v1722
    %v3415 = vpop.f32.mrb[0].mxu0
    %v3416 = vadd.f32 %v3193, %v3415
    %v3417 = vpop.f32.mrb[0].mxu0
    %v3418 = vadd.f32 %v3195, %v3417
    %v3419 = vpop.f32.mrb[0].mxu0
    %v3420 = vadd.f32 %v3197, %v3419
    %v3421 = vpop.f32.mrb[0].mxu0
    %v3422 = vadd.f32 %v3199, %v3421
    %3423 = vmatprep.mubr.bf16.mxu0 0
    %3424 = vmatmul.mubr.bf16.gmra.mrb[0].mxu0 %v1725
    %v3425 = vpop.f32.mrb[0].mxu0
    %v3426 = vadd.f32 %v3203, %v3425
    %v3427 = vpop.f32.mrb[0].mxu0
    %v3428 = vadd.f32 %v3205, %v3427
    %v3429 = vpop.f32.mrb[0].mxu0
    %v3430 = vadd.f32 %v3207, %v3429
    %v3431 = vpop.f32.mrb[0].mxu0
    %v3432 = vadd.f32 %v3209, %v3431
    %3433 = vmatprep.mubr.bf16.mxu0 0
    %3434 = vmatmul.mubr.bf16.gmra.mrb[0].mxu0 %v1728
    %v3435 = vpop.f32.mrb[0].mxu0
    %v3436 = vadd.f32 %v3213, %v3435
    %v3437 = vpop.f32.mrb[0].mxu0
    %v3438 = vadd.f32 %v3215, %v3437
    %v3439 = vpop.f32.mrb[0].mxu0
    %v3440 = vadd.f32 %v3217, %v3439
    %v3441 = vpop.f32.mrb[0].mxu0
    %v3442 = vadd.f32 %v3219, %v3441
    %3443 = vmatprep.mubr.bf16.mxu0 0
    %3444 = vmatmul.mubr.bf16.gmra.mrb[0].mxu0 %v1731
    %v3445 = vpop.f32.mrb[0].mxu0
    %v3446 = vadd.f32 %v3223, %v3445
    %v3447 = vpop.f32.mrb[0].mxu0
    %v3448 = vadd.f32 %v3225, %v3447
    %v3449 = vpop.f32.mrb[0].mxu0
    %v3450 = vadd.f32 %v3227, %v3449
    %v3451 = vpop.f32.mrb[0].mxu0
    %v3452 = vadd.f32 %v3229, %v3451
    %3453 = vmatprep.mubr.bf16.mxu0 0
    %3454 = vmatmul.mubr.bf16.gmra.mrb[0].mxu0 %v1734
    %v3455 = vpop.f32.mrb[0].mxu0
    %v3456 = vadd.f32 %v3233, %v3455
    %v3457 = vpop.f32.mrb[0].mxu0
    %v3458 = vadd.f32 %v3235, %v3457
    %v3459 = vpop.f32.mrb[0].mxu0
    %v3460 = vadd.f32 %v3237, %v3459
    %v3461 = vpop.f32.mrb[0].mxu0
    %v3462 = vadd.f32 %v3239, %v3461
    %3463 = vmatprep.mubr.bf16.mxu0 0
    %3464 = vmatmul.mubr.bf16.gmra.mrb[0].mxu0 %v1737
    %v3465 = vpop.f32.mrb[0].mxu0
    %v3466 = vadd.f32 %v3243, %v3465
    %v3467 = vpop.f32.mrb[0].mxu0
    %v3468 = vadd.f32 %v3245, %v3467
    %v3469 = vpop.f32.mrb[0].mxu0
    %v3470 = vadd.f32 %v3247, %v3469
    %v3471 = vpop.f32.mrb[0].mxu0
    %v3472 = vadd.f32 %v3249, %v3471
    %3473 = vmatprep.mubr.bf16.mxu0 0
    %3474 = vmatmul.mubr.bf16.gmra.mrb[0].mxu0 %v1740
    %v3475 = vpop.f32.mrb[0].mxu0
    %v3476 = vadd.f32 %v3253, %v3475
    %v3477 = vpop.f32.mrb[0].mxu0
    %v3478 = vadd.f32 %v3255, %v3477
    %v3479 = vpop.f32.mrb[0].mxu0
    %v3480 = vadd.f32 %v3257, %v3479
    %v3481 = vpop.f32.mrb[0].mxu0
    %v3482 = vadd.f32 %v3259, %v3481
    %3483 = vmatprep.mubr.bf16.mxu0 0
    %3484 = vmatmul.mubr.bf16.gmra.mrb[0].mxu0 %v1743
    %v3485 = vpop.f32.mrb[0].mxu0
    %v3486 = vadd.f32 %v3263, %v3485
    %v3487 = vpop.f32.mrb[0].mxu0
    %v3488 = vadd.f32 %v3265, %v3487
    %v3489 = vpop.f32.mrb[0].mxu0
    %v3490 = vadd.f32 %v3267, %v3489
    %v3491 = vpop.f32.mrb[0].mxu0
    %v3492 = vadd.f32 %v3269, %v3491
    %3493 = vmatprep.mubr.bf16.mxu0 0
    %3494 = vmatmul.mubr.bf16.gmra.mrb[0].mxu0 %v1746
    %v3495 = vpop.f32.mrb[0].mxu0
    %v3496 = vadd.f32 %v3273, %v3495
    %v3497 = vpop.f32.mrb[0].mxu0
    %v3498 = vadd.f32 %v3275, %v3497
    %v3499 = vpop.f32.mrb[0].mxu0
    %v3500 = vadd.f32 %v3277, %v3499
    %v3501 = vpop.f32.mrb[0].mxu0
    %v3502 = vadd.f32 %v3279, %v3501
    %3503 = vmatprep.mubr.bf16.mxu0 0
    %3504 = vmatmul.mubr.bf16.gmra.mrb[0].mxu0 %v1749
    %v3505 = vpop.f32.mrb[0].mxu0
    %v3506 = vadd.f32 %v3283, %v3505
    %v3507 = vpop.f32.mrb[0].mxu0
    %v3508 = vadd.f32 %v3285, %v3507
    %v3509 = vpop.f32.mrb[0].mxu0
    %v3510 = vadd.f32 %v3287, %v3509
    %v3511 = vpop.f32.mrb[0].mxu0
    %v3512 = vadd.f32 %v3289, %v3511
    %3513 = vmatprep.mubr.bf16.mxu0 0
    %3514 = vmatmul.mubr.bf16.gmra.mrb[0].mxu0 %v1752
    %v3515 = vpop.f32.mrb[0].mxu0
    %v3516 = vadd.f32 %v3293, %v3515
    %v3517 = vpop.f32.mrb[0].mxu0
    %v3518 = vadd.f32 %v3295, %v3517
    %v3519 = vpop.f32.mrb[0].mxu0
    %v3520 = vadd.f32 %v3297, %v3519
    %v3521 = vpop.f32.mrb[0].mxu0
    %v3522 = vadd.f32 %v3299, %v3521
    %3523 = vmatprep.mubr.bf16.mxu0 0
    %3524 = vmatmul.mubr.bf16.gmra.mrb[0].mxu0 %v1755
    %v3525 = vpop.f32.mrb[0].mxu0
    %v3526 = vadd.f32 %v3303, %v3525
    %v3527 = vpop.f32.mrb[0].mxu0
    %v3528 = vadd.f32 %v3305, %v3527
    %v3529 = vpop.f32.mrb[0].mxu0
    %v3530 = vadd.f32 %v3307, %v3529
    %v3531 = vpop.f32.mrb[0].mxu0
    %v3532 = vadd.f32 %v3309, %v3531
    %3533 = vmatprep.mubr.bf16.mxu0 0
    %3534 = vmatmul.mubr.bf16.gmra.mrb[0].mxu0 %v1758
    %v3535 = vpop.f32.mrb[0].mxu0
    %v3536 = vadd.f32 %v3313, %v3535
    %v3537 = vpop.f32.mrb[0].mxu0
    %v3538 = vadd.f32 %v3315, %v3537
    %v3539 = vpop.f32.mrb[0].mxu0
    %v3540 = vadd.f32 %v3317, %v3539
    %v3541 = vpop.f32.mrb[0].mxu0
    %v3542 = vadd.f32 %v3319, %v3541
    %3543 = vdwg.mxu0
    %v3544 = vmul.f32 %v2464, 0.2
    %v3545 = vmul.f32 %v2466, 0.2
    %v3546 = vmul.f32 %v3356, 0.2
    %v3547 = vmul.f32 %v3358, 0.2
    %v3548 = vmul.f32 %v2468, 0.2
    %v3549 = vmul.f32 %v2470, 0.2
    %v3550 = vmul.f32 %v3360, 0.2
    %v3551 = vmul.f32 %v3362, 0.2
    %v3552 = vmul.f32 %v2474, 0.2
    %v3553 = vmul.f32 %v2476, 0.2
    %v3554 = vmul.f32 %v3366, 0.2
    %v3555 = vmul.f32 %v3368, 0.2
    %v3556 = vmul.f32 %v2478, 0.2
    %v3557 = vmul.f32 %v2480, 0.2
    %v3558 = vmul.f32 %v3370, 0.2
    %v3559 = vmul.f32 %v3372, 0.2
    %v3560 = vmul.f32 %v2484, 0.2
    %v3561 = vmul.f32 %v2486, 0.2
    %v3562 = vmul.f32 %v3376, 0.2
    %v3563 = vmul.f32 %v3378, 0.2
    %v3564 = vmul.f32 %v2488, 0.2
    %v3565 = vmul.f32 %v2490, 0.2
    %v3566 = vmul.f32 %v3380, 0.2
    %v3567 = vmul.f32 %v3382, 0.2
    %v3568 = vmul.f32 %v2494, 0.2
    %v3569 = vmul.f32 %v2496, 0.2
    %v3570 = vmul.f32 %v3386, 0.2
    %v3571 = vmul.f32 %v3388, 0.2
    %v3572 = vmul.f32 %v2498, 0.2
    %v3573 = vmul.f32 %v2500, 0.2
    %v3574 = vmul.f32 %v3390, 0.2
    %v3575 = vmul.f32 %v3392, 0.2
    %v3576 = vmul.f32 %v2504, 0.2
    %v3577 = vmul.f32 %v2506, 0.2
    %v3578 = vmul.f32 %v3396, 0.2
    %v3579 = vmul.f32 %v3398, 0.2
    %v3580 = vmul.f32 %v2508, 0.2
    %v3581 = vmul.f32 %v2510, 0.2
    %v3582 = vmul.f32 %v3400, 0.2
    %v3583 = vmul.f32 %v3402, 0.2
    %v3584 = vmul.f32 %v2514, 0.2
    %v3585 = vmul.f32 %v2516, 0.2
    %v3586 = vmul.f32 %v3406, 0.2
    %v3587 = vmul.f32 %v3408, 0.2
    %v3588 = vmul.f32 %v2518, 0.2
    %v3589 = vmul.f32 %v2520, 0.2
    %v3590 = vmul.f32 %v3410, 0.2
    %v3591 = vmul.f32 %v3412, 0.2
    %v3592 = vmul.f32 %v2524, 0.2
    %v3593 = vmul.f32 %v2526, 0.2
    %v3594 = vmul.f32 %v3416, 0.2
    %v3595 = vmul.f32 %v3418, 0.2
    %v3596 = vmul.f32 %v2528, 0.2
    %v3597 = vmul.f32 %v2530, 0.2
    %v3598 = vmul.f32 %v3420, 0.2
    %v3599 = vmul.f32 %v3422, 0.2
    %v3600 = vmul.f32 %v2534, 0.2
    %v3601 = vmul.f32 %v2536, 0.2
    %v3602 = vmul.f32 %v3426, 0.2
    %v3603 = vmul.f32 %v3428, 0.2
    %v3604 = vmul.f32 %v2538, 0.2
    %v3605 = vmul.f32 %v2540, 0.2
    %v3606 = vmul.f32 %v3430, 0.2
    %v3607 = vmul.f32 %v3432, 0.2
    %v3608 = vmul.f32 %v2544, 0.2
    %v3609 = vmul.f32 %v2546, 0.2
    %v3610 = vmul.f32 %v3436, 0.2
    %v3611 = vmul.f32 %v3438, 0.2
    %v3612 = vmul.f32 %v2548, 0.2
    %v3613 = vmul.f32 %v2550, 0.2
    %v3614 = vmul.f32 %v3440, 0.2
    %v3615 = vmul.f32 %v3442, 0.2
    %v3616 = vmul.f32 %v2554, 0.2
    %v3617 = vmul.f32 %v2556, 0.2
    %v3618 = vmul.f32 %v3446, 0.2
    %v3619 = vmul.f32 %v3448, 0.2
    %v3620 = vmul.f32 %v2558, 0.2
    %v3621 = vmul.f32 %v2560, 0.2
    %v3622 = vmul.f32 %v3450, 0.2
    %v3623 = vmul.f32 %v3452, 0.2
    %v3624 = vmul.f32 %v2564, 0.2
    %v3625 = vmul.f32 %v2566, 0.2
    %v3626 = vmul.f32 %v3456, 0.2
    %v3627 = vmul.f32 %v3458, 0.2
    %v3628 = vmul.f32 %v2568, 0.2
    %v3629 = vmul.f32 %v2570, 0.2
    %v3630 = vmul.f32 %v3460, 0.2
    %v3631 = vmul.f32 %v3462, 0.2
    %v3632 = vmul.f32 %v2574, 0.2
    %v3633 = vmul.f32 %v2576, 0.2
    %v3634 = vmul.f32 %v3466, 0.2
    %v3635 = vmul.f32 %v3468, 0.2
    %v3636 = vmul.f32 %v2578, 0.2
    %v3637 = vmul.f32 %v2580, 0.2
    %v3638 = vmul.f32 %v3470, 0.2
    %v3639 = vmul.f32 %v3472, 0.2
    %v3640 = vmul.f32 %v2584, 0.2
    %v3641 = vmul.f32 %v2586, 0.2
    %v3642 = vmul.f32 %v3476, 0.2
    %v3643 = vmul.f32 %v3478, 0.2
    %v3644 = vmul.f32 %v2588, 0.2
    %v3645 = vmul.f32 %v2590, 0.2
    %v3646 = vmul.f32 %v3480, 0.2
    %v3647 = vmul.f32 %v3482, 0.2
    %v3648 = vmul.f32 %v2594, 0.2
    %v3649 = vmul.f32 %v2596, 0.2
    %v3650 = vmul.f32 %v3486, 0.2
    %v3651 = vmul.f32 %v3488, 0.2
    %v3652 = vmul.f32 %v2598, 0.2
    %v3653 = vmul.f32 %v2600, 0.2
    %v3654 = vmul.f32 %v3490, 0.2
    %v3655 = vmul.f32 %v3492, 0.2
    %v3656 = vmul.f32 %v2604, 0.2
    %v3657 = vmul.f32 %v2606, 0.2
    %v3658 = vmul.f32 %v3496, 0.2
    %v3659 = vmul.f32 %v3498, 0.2
    %v3660 = vmul.f32 %v2608, 0.2
    %v3661 = vmul.f32 %v2610, 0.2
    %v3662 = vmul.f32 %v3500, 0.2
    %v3663 = vmul.f32 %v3502, 0.2
    %v3664 = vmul.f32 %v2614, 0.2
    %v3665 = vmul.f32 %v2616, 0.2
    %v3666 = vmul.f32 %v3506, 0.2
    %v3667 = vmul.f32 %v3508, 0.2
    %v3668 = vmul.f32 %v2618, 0.2
    %v3669 = vmul.f32 %v2620, 0.2
    %v3670 = vmul.f32 %v3510, 0.2
    %v3671 = vmul.f32 %v3512, 0.2
    %v3672 = vmul.f32 %v2624, 0.2
    %v3673 = vmul.f32 %v2626, 0.2
    %v3674 = vmul.f32 %v3516, 0.2
    %v3675 = vmul.f32 %v3518, 0.2
    %v3676 = vmul.f32 %v2628, 0.2
    %v3677 = vmul.f32 %v2630, 0.2
    %v3678 = vmul.f32 %v3520, 0.2
    %v3679 = vmul.f32 %v3522, 0.2
    %v3680 = vmul.f32 %v2634, 0.2
    %v3681 = vmul.f32 %v2636, 0.2
    %v3682 = vmul.f32 %v3526, 0.2
    %v3683 = vmul.f32 %v3528, 0.2
    %v3684 = vmul.f32 %v2638, 0.2
    %v3685 = vmul.f32 %v2640, 0.2
    %v3686 = vmul.f32 %v3530, 0.2
    %v3687 = vmul.f32 %v3532, 0.2
    %v3688 = vmul.f32 %v2644, 0.2
    %v3689 = vmul.f32 %v2646, 0.2
    %v3690 = vmul.f32 %v3536, 0.2
    %v3691 = vmul.f32 %v3538, 0.2
    %v3692 = vmul.f32 %v2648, 0.2
    %v3693 = vmul.f32 %v2650, 0.2
    %v3694 = vmul.f32 %v3540, 0.2
    %v3695 = vmul.f32 %v3542, 0.2
    %v3696 = vmax.f32 %v2464, %v3544
    %v3697 = vmax.f32 %v2466, %v3545
    %v3698 = vmax.f32 %v3356, %v3546
    %v3699 = vmax.f32 %v3358, %v3547
    %v3700 = vmax.f32 %v2468, %v3548
    %v3701 = vmax.f32 %v2470, %v3549
    %v3702 = vmax.f32 %v3360, %v3550
    %v3703 = vmax.f32 %v3362, %v3551
    %v3704 = vmax.f32 %v2474, %v3552
    %v3705 = vmax.f32 %v2476, %v3553
    %v3706 = vmax.f32 %v3366, %v3554
    %v3707 = vmax.f32 %v3368, %v3555
    %v3708 = vmax.f32 %v2478, %v3556
    %v3709 = vmax.f32 %v2480, %v3557
    %v3710 = vmax.f32 %v3370, %v3558
    %v3711 = vmax.f32 %v3372, %v3559
    %v3712 = vmax.f32 %v2484, %v3560
    %v3713 = vmax.f32 %v2486, %v3561
    %v3714 = vmax.f32 %v3376, %v3562
    %v3715 = vmax.f32 %v3378, %v3563
    %v3716 = vmax.f32 %v2488, %v3564
    %v3717 = vmax.f32 %v2490, %v3565
    %v3718 = vmax.f32 %v3380, %v3566
    %v3719 = vmax.f32 %v3382, %v3567
    %v3720 = vmax.f32 %v2494, %v3568
    %v3721 = vmax.f32 %v2496, %v3569
    %v3722 = vmax.f32 %v3386, %v3570
    %v3723 = vmax.f32 %v3388, %v3571
    %v3724 = vmax.f32 %v2498, %v3572
    %v3725 = vmax.f32 %v2500, %v3573
    %v3726 = vmax.f32 %v3390, %v3574
    %v3727 = vmax.f32 %v3392, %v3575
    %v3728 = vmax.f32 %v2504, %v3576
    %v3729 = vmax.f32 %v2506, %v3577
    %v3730 = vmax.f32 %v3396, %v3578
    %v3731 = vmax.f32 %v3398, %v3579
    %v3732 = vmax.f32 %v2508, %v3580
    %v3733 = vmax.f32 %v2510, %v3581
    %v3734 = vmax.f32 %v3400, %v3582
    %v3735 = vmax.f32 %v3402, %v3583
    %v3736 = vmax.f32 %v2514, %v3584
    %v3737 = vmax.f32 %v2516, %v3585
    %v3738 = vmax.f32 %v3406, %v3586
    %v3739 = vmax.f32 %v3408, %v3587
    %v3740 = vmax.f32 %v2518, %v3588
    %v3741 = vmax.f32 %v2520, %v3589
    %v3742 = vmax.f32 %v3410, %v3590
    %v3743 = vmax.f32 %v3412, %v3591
    %v3744 = vmax.f32 %v2524, %v3592
    %v3745 = vmax.f32 %v2526, %v3593
    %v3746 = vmax.f32 %v3416, %v3594
    %v3747 = vmax.f32 %v3418, %v3595
    %v3748 = vmax.f32 %v2528, %v3596
    %v3749 = vmax.f32 %v2530, %v3597
    %v3750 = vmax.f32 %v3420, %v3598
    %v3751 = vmax.f32 %v3422, %v3599
    %v3752 = vmax.f32 %v2534, %v3600
    %v3753 = vmax.f32 %v2536, %v3601
    %v3754 = vmax.f32 %v3426, %v3602
    %v3755 = vmax.f32 %v3428, %v3603
    %v3756 = vmax.f32 %v2538, %v3604
    %v3757 = vmax.f32 %v2540, %v3605
    %v3758 = vmax.f32 %v3430, %v3606
    %v3759 = vmax.f32 %v3432, %v3607
    %v3760 = vmax.f32 %v2544, %v3608
    %v3761 = vmax.f32 %v2546, %v3609
    %v3762 = vmax.f32 %v3436, %v3610
    %v3763 = vmax.f32 %v3438, %v3611
    %v3764 = vmax.f32 %v2548, %v3612
    %v3765 = vmax.f32 %v2550, %v3613
    %v3766 = vmax.f32 %v3440, %v3614
    %v3767 = vmax.f32 %v3442, %v3615
    %v3768 = vmax.f32 %v2554, %v3616
    %v3769 = vmax.f32 %v2556, %v3617
    %v3770 = vmax.f32 %v3446, %v3618
    %v3771 = vmax.f32 %v3448, %v3619
    %v3772 = vmax.f32 %v2558, %v3620
    %v3773 = vmax.f32 %v2560, %v3621
    %v3774 = vmax.f32 %v3450, %v3622
    %v3775 = vmax.f32 %v3452, %v3623
    %v3776 = vmax.f32 %v2564, %v3624
    %v3777 = vmax.f32 %v2566, %v3625
    %v3778 = vmax.f32 %v3456, %v3626
    %v3779 = vmax.f32 %v3458, %v3627
    %v3780 = vmax.f32 %v2568, %v3628
    %v3781 = vmax.f32 %v2570, %v3629
    %v3782 = vmax.f32 %v3460, %v3630
    %v3783 = vmax.f32 %v3462, %v3631
    %v3784 = vmax.f32 %v2574, %v3632
    %v3785 = vmax.f32 %v2576, %v3633
    %v3786 = vmax.f32 %v3466, %v3634
    %v3787 = vmax.f32 %v3468, %v3635
    %v3788 = vmax.f32 %v2578, %v3636
    %v3789 = vmax.f32 %v2580, %v3637
    %v3790 = vmax.f32 %v3470, %v3638
    %v3791 = vmax.f32 %v3472, %v3639
    %v3792 = vmax.f32 %v2584, %v3640
    %v3793 = vmax.f32 %v2586, %v3641
    %v3794 = vmax.f32 %v3476, %v3642
    %v3795 = vmax.f32 %v3478, %v3643
    %v3796 = vmax.f32 %v2588, %v3644
    %v3797 = vmax.f32 %v2590, %v3645
    %v3798 = vmax.f32 %v3480, %v3646
    %v3799 = vmax.f32 %v3482, %v3647
    %v3800 = vmax.f32 %v2594, %v3648
    %v3801 = vmax.f32 %v2596, %v3649
    %v3802 = vmax.f32 %v3486, %v3650
    %v3803 = vmax.f32 %v3488, %v3651
    %v3804 = vmax.f32 %v2598, %v3652
    %v3805 = vmax.f32 %v2600, %v3653
    %v3806 = vmax.f32 %v3490, %v3654
    %v3807 = vmax.f32 %v3492, %v3655
    %v3808 = vmax.f32 %v2604, %v3656
    %v3809 = vmax.f32 %v2606, %v3657
    %v3810 = vmax.f32 %v3496, %v3658
    %v3811 = vmax.f32 %v3498, %v3659
    %v3812 = vmax.f32 %v2608, %v3660
    %v3813 = vmax.f32 %v2610, %v3661
    %v3814 = vmax.f32 %v3500, %v3662
    %v3815 = vmax.f32 %v3502, %v3663
    %v3816 = vmax.f32 %v2614, %v3664
    %v3817 = vmax.f32 %v2616, %v3665
    %v3818 = vmax.f32 %v3506, %v3666
    %v3819 = vmax.f32 %v3508, %v3667
    %v3820 = vmax.f32 %v2618, %v3668
    %v3821 = vmax.f32 %v2620, %v3669
    %v3822 = vmax.f32 %v3510, %v3670
    %v3823 = vmax.f32 %v3512, %v3671
    %v3824 = vmax.f32 %v2624, %v3672
    %v3825 = vmax.f32 %v2626, %v3673
    %v3826 = vmax.f32 %v3516, %v3674
    %v3827 = vmax.f32 %v3518, %v3675
    %v3828 = vmax.f32 %v2628, %v3676
    %v3829 = vmax.f32 %v2630, %v3677
    %v3830 = vmax.f32 %v3520, %v3678
    %v3831 = vmax.f32 %v3522, %v3679
    %v3832 = vmax.f32 %v2634, %v3680
    %v3833 = vmax.f32 %v2636, %v3681
    %v3834 = vmax.f32 %v3526, %v3682
    %v3835 = vmax.f32 %v3528, %v3683
    %v3836 = vmax.f32 %v2638, %v3684
    %v3837 = vmax.f32 %v2640, %v3685
    %v3838 = vmax.f32 %v3530, %v3686
    %v3839 = vmax.f32 %v3532, %v3687
    %v3840 = vmax.f32 %v2644, %v3688
    %v3841 = vmax.f32 %v2646, %v3689
    %v3842 = vmax.f32 %v3536, %v3690
    %v3843 = vmax.f32 %v3538, %v3691
    %v3844 = vmax.f32 %v2648, %v3692
    %v3845 = vmax.f32 %v2650, %v3693
    %v3846 = vmax.f32 %v3540, %v3694
    %v3847 = vmax.f32 %v3542, %v3695
    %v3848 = vpack.c.bf16 %v3700, %v3696
    %v3849 = vpack.c.bf16 %v3701, %v3697
    %v3850 = vpack.c.bf16 %v3702, %v3698
    %v3851 = vpack.c.bf16 %v3703, %v3699
    %v3852 = vpack.c.bf16 %v3708, %v3704
    %v3853 = vpack.c.bf16 %v3709, %v3705
    %v3854 = vpack.c.bf16 %v3710, %v3706
    %v3855 = vpack.c.bf16 %v3711, %v3707
    %v3856 = vpack.c.bf16 %v3716, %v3712
    %v3857 = vpack.c.bf16 %v3717, %v3713
    %v3858 = vpack.c.bf16 %v3718, %v3714
    %v3859 = vpack.c.bf16 %v3719, %v3715
    %v3860 = vpack.c.bf16 %v3724, %v3720
    %v3861 = vpack.c.bf16 %v3725, %v3721
    %v3862 = vpack.c.bf16 %v3726, %v3722
    %v3863 = vpack.c.bf16 %v3727, %v3723
    %v3864 = vpack.c.bf16 %v3732, %v3728
    %v3865 = vpack.c.bf16 %v3733, %v3729
    %v3866 = vpack.c.bf16 %v3734, %v3730
    %v3867 = vpack.c.bf16 %v3735, %v3731
    %v3868 = vpack.c.bf16 %v3740, %v3736
    %v3869 = vpack.c.bf16 %v3741, %v3737
    %v3870 = vpack.c.bf16 %v3742, %v3738
    %v3871 = vpack.c.bf16 %v3743, %v3739
    %v3872 = vpack.c.bf16 %v3748, %v3744
    %v3873 = vpack.c.bf16 %v3749, %v3745
    %v3874 = vpack.c.bf16 %v3750, %v3746
    %v3875 = vpack.c.bf16 %v3751, %v3747
    %v3876 = vpack.c.bf16 %v3756, %v3752
    %v3877 = vpack.c.bf16 %v3757, %v3753
    %v3878 = vpack.c.bf16 %v3758, %v3754
    %v3879 = vpack.c.bf16 %v3759, %v3755
    %v3880 = vpack.c.bf16 %v3764, %v3760
    %v3881 = vpack.c.bf16 %v3765, %v3761
    %v3882 = vpack.c.bf16 %v3766, %v3762
    %v3883 = vpack.c.bf16 %v3767, %v3763
    %v3884 = vpack.c.bf16 %v3772, %v3768
    %v3885 = vpack.c.bf16 %v3773, %v3769
    %v3886 = vpack.c.bf16 %v3774, %v3770
    %v3887 = vpack.c.bf16 %v3775, %v3771
    %v3888 = vpack.c.bf16 %v3780, %v3776
    %v3889 = vpack.c.bf16 %v3781, %v3777
    %v3890 = vpack.c.bf16 %v3782, %v3778
    %v3891 = vpack.c.bf16 %v3783, %v3779
    %v3892 = vpack.c.bf16 %v3788, %v3784
    %v3893 = vpack.c.bf16 %v3789, %v3785
    %v3894 = vpack.c.bf16 %v3790, %v3786
    %v3895 = vpack.c.bf16 %v3791, %v3787
    %v3896 = vpack.c.bf16 %v3796, %v3792
    %v3897 = vpack.c.bf16 %v3797, %v3793
    %v3898 = vpack.c.bf16 %v3798, %v3794
    %v3899 = vpack.c.bf16 %v3799, %v3795
    %v3900 = vpack.c.bf16 %v3804, %v3800
    %v3901 = vpack.c.bf16 %v3805, %v3801
    %v3902 = vpack.c.bf16 %v3806, %v3802
    %v3903 = vpack.c.bf16 %v3807, %v3803
    %v3904 = vpack.c.bf16 %v3812, %v3808
    %v3905 = vpack.c.bf16 %v3813, %v3809
    %v3906 = vpack.c.bf16 %v3814, %v3810
    %v3907 = vpack.c.bf16 %v3815, %v3811
    %v3908 = vpack.c.bf16 %v3820, %v3816
    %v3909 = vpack.c.bf16 %v3821, %v3817
    %v3910 = vpack.c.bf16 %v3822, %v3818
    %v3911 = vpack.c.bf16 %v3823, %v3819
    %v3912 = vpack.c.bf16 %v3828, %v3824
    %v3913 = vpack.c.bf16 %v3829, %v3825
    %v3914 = vpack.c.bf16 %v3830, %v3826
    %v3915 = vpack.c.bf16 %v3831, %v3827
    %v3916 = vpack.c.bf16 %v3836, %v3832
    %v3917 = vpack.c.bf16 %v3837, %v3833
    %v3918 = vpack.c.bf16 %v3838, %v3834
    %v3919 = vpack.c.bf16 %v3839, %v3835
    %v3920 = vpack.c.bf16 %v3844, %v3840
    %v3921 = vpack.c.bf16 %v3845, %v3841
    %v3922 = vpack.c.bf16 %v3846, %v3842
    %v3923 = vpack.c.bf16 %v3847, %v3843
    %v3924 = vld [vmem:[#allocation8] sm:$0xff]
    %v3925 = vld [vmem:[#allocation8 + $0x8] sm:$0xff]
    %v3926 = vld [vmem:[#allocation8 + $0x10] sm:$0xff]
    %v3927 = vld [vmem:[#allocation8 + $0x18] sm:$0xff]
    %v3928 = vld [vmem:[#allocation8 + $0x20] sm:$0xff]
    %v3929 = vld [vmem:[#allocation8 + $0x28] sm:$0xff]
    %v3930 = vld [vmem:[#allocation8 + $0x30] sm:$0xff]
    %v3931 = vld [vmem:[#allocation8 + $0x38] sm:$0xff]
    %v3932 = vld [vmem:[#allocation8 + $0x40] sm:$0xff]
    %v3933 = vld [vmem:[#allocation8 + $0x48] sm:$0xff]
    %v3934 = vld [vmem:[#allocation8 + $0x50] sm:$0xff]
    %v3935 = vld [vmem:[#allocation8 + $0x58] sm:$0xff]
    %v3936 = vld [vmem:[#allocation8 + $0x60] sm:$0xff]
    %v3937 = vld [vmem:[#allocation8 + $0x68] sm:$0xff]
    %v3938 = vld [vmem:[#allocation8 + $0x70] sm:$0xff]
    %v3939 = vld [vmem:[#allocation8 + $0x78] sm:$0xff]
    %v3940 = vld [vmem:[#allocation8 + $0x80] sm:$0xff]
    %v3941 = vld [vmem:[#allocation8 + $0x88] sm:$0xff]
    %v3942 = vld [vmem:[#allocation8 + $0x90] sm:$0xff]
    %v3943 = vld [vmem:[#allocation8 + $0x98] sm:$0xff]
    %v3944 = vld [vmem:[#allocation8 + $0xa0] sm:$0xff]
    %v3945 = vld [vmem:[#allocation8 + $0xa8] sm:$0xff]
    %v3946 = vld [vmem:[#allocation8 + $0xb0] sm:$0xff]
    %v3947 = vld [vmem:[#allocation8 + $0xb8] sm:$0xff]
    %v3948 = vld [vmem:[#allocation8 + $0xc0] sm:$0xff]
    %v3949 = vld [vmem:[#allocation8 + $0xc8] sm:$0xff]
    %v3950 = vld [vmem:[#allocation8 + $0xd0] sm:$0xff]
    %v3951 = vld [vmem:[#allocation8 + $0xd8] sm:$0xff]
    %v3952 = vld [vmem:[#allocation8 + $0xe0] sm:$0xff]
    %v3953 = vld [vmem:[#allocation8 + $0xe8] sm:$0xff]
    %v3954 = vld [vmem:[#allocation8 + $0xf0] sm:$0xff]
    %v3955 = vld [vmem:[#allocation8 + $0xf8] sm:$0xff]
    %v3956 = vld [vmem:[#allocation8 + $0x100] sm:$0xff]
    %v3957 = vld [vmem:[#allocation8 + $0x108] sm:$0xff]
    %v3958 = vld [vmem:[#allocation8 + $0x110] sm:$0xff]
    %v3959 = vld [vmem:[#allocation8 + $0x118] sm:$0xff]
    %v3960 = vld [vmem:[#allocation8 + $0x120] sm:$0xff]
    %v3961 = vld [vmem:[#allocation8 + $0x128] sm:$0xff]
    %v3962 = vld [vmem:[#allocation8 + $0x130] sm:$0xff]
    %v3963 = vld [vmem:[#allocation8 + $0x138] sm:$0xff]
    %v3964 = vld [vmem:[#allocation8 + $0x140] sm:$0xff]
    %v3965 = vld [vmem:[#allocation8 + $0x148] sm:$0xff]
    %v3966 = vld [vmem:[#allocation8 + $0x150] sm:$0xff]
    %v3967 = vld [vmem:[#allocation8 + $0x158] sm:$0xff]
    %v3968 = vld [vmem:[#allocation8 + $0x160] sm:$0xff]
    %v3969 = vld [vmem:[#allocation8 + $0x168] sm:$0xff]
    %v3970 = vld [vmem:[#allocation8 + $0x170] sm:$0xff]
    %v3971 = vld [vmem:[#allocation8 + $0x178] sm:$0xff]
    %v3972 = vld [vmem:[#allocation8 + $0x180] sm:$0xff]
    %v3973 = vld [vmem:[#allocation8 + $0x188] sm:$0xff]
    %v3974 = vld [vmem:[#allocation8 + $0x190] sm:$0xff]
    %v3975 = vld [vmem:[#allocation8 + $0x198] sm:$0xff]
    %v3976 = vld [vmem:[#allocation8 + $0x1a0] sm:$0xff]
    %v3977 = vld [vmem:[#allocation8 + $0x1a8] sm:$0xff]
    %v3978 = vld [vmem:[#allocation8 + $0x1b0] sm:$0xff]
    %v3979 = vld [vmem:[#allocation8 + $0x1b8] sm:$0xff]
    %v3980 = vld [vmem:[#allocation8 + $0x1c0] sm:$0xff]
    %v3981 = vld [vmem:[#allocation8 + $0x1c8] sm:$0xff]
    %v3982 = vld [vmem:[#allocation8 + $0x1d0] sm:$0xff]
    %v3983 = vld [vmem:[#allocation8 + $0x1d8] sm:$0xff]
    %v3984 = vld [vmem:[#allocation8 + $0x1e0] sm:$0xff]
    %v3985 = vld [vmem:[#allocation8 + $0x1e8] sm:$0xff]
    %v3986 = vld [vmem:[#allocation8 + $0x1f0] sm:$0xff]
    %v3987 = vld [vmem:[#allocation8 + $0x1f8] sm:$0xff]
    %v3988 = vld [vmem:[#allocation10] sm:$0x3]
    %v3990 = vlaneseq
    %v3991 = vshrl.u32 %v3990, 7
    %v3992 = vsub.s32 0, %v3991
    %v3993 = vrot.slane %v3988, %v3992
    %v3994 = vlaneseq
    %v3995 = vshrl.u32 %v3994, 7
    %v3996 = vsub.s32 1, %v3995
    %v3997 = vrot.slane %v3988, %v3996
    %v4064 = vunpack.c.l.b16 %v3924
    %v4065 = vunpack.c.h.b16 %v3924
    %v4066 = vunpack.c.l.b16 %v3925
    %v4067 = vunpack.c.h.b16 %v3925
    %v4068 = vunpack.c.l.b16 %v3926
    %v4069 = vunpack.c.h.b16 %v3926
    %v4070 = vunpack.c.l.b16 %v3927
    %v4071 = vunpack.c.h.b16 %v3927
    %v4072 = vunpack.c.l.b16 %v3928
    %v4073 = vunpack.c.h.b16 %v3928
    %v4074 = vunpack.c.l.b16 %v3929
    %v4075 = vunpack.c.h.b16 %v3929
    %v4076 = vunpack.c.l.b16 %v3930
    %v4077 = vunpack.c.h.b16 %v3930
    %v4078 = vunpack.c.l.b16 %v3931
    %v4079 = vunpack.c.h.b16 %v3931
    %v4080 = vunpack.c.l.b16 %v3932
    %v4081 = vunpack.c.h.b16 %v3932
    %v4082 = vunpack.c.l.b16 %v3933
    %v4083 = vunpack.c.h.b16 %v3933
    %v4084 = vunpack.c.l.b16 %v3934
    %v4085 = vunpack.c.h.b16 %v3934
    %v4086 = vunpack.c.l.b16 %v3935
    %v4087 = vunpack.c.h.b16 %v3935
    %v4088 = vunpack.c.l.b16 %v3936
    %v4089 = vunpack.c.h.b16 %v3936
    %v4090 = vunpack.c.l.b16 %v3937
    %v4091 = vunpack.c.h.b16 %v3937
    %v4092 = vunpack.c.l.b16 %v3938
    %v4093 = vunpack.c.h.b16 %v3938
    %v4094 = vunpack.c.l.b16 %v3939
    %v4095 = vunpack.c.h.b16 %v3939
    %v4096 = vunpack.c.l.b16 %v3940
    %v4097 = vunpack.c.h.b16 %v3940
    %v4098 = vunpack.c.l.b16 %v3941
    %v4099 = vunpack.c.h.b16 %v3941
    %v4100 = vunpack.c.l.b16 %v3942
    %v4101 = vunpack.c.h.b16 %v3942
    %v4102 = vunpack.c.l.b16 %v3943
    %v4103 = vunpack.c.h.b16 %v3943
    %v4104 = vunpack.c.l.b16 %v3944
    %v4105 = vunpack.c.h.b16 %v3944
    %v4106 = vunpack.c.l.b16 %v3945
    %v4107 = vunpack.c.h.b16 %v3945
    %v4108 = vunpack.c.l.b16 %v3946
    %v4109 = vunpack.c.h.b16 %v3946
    %v4110 = vunpack.c.l.b16 %v3947
    %v4111 = vunpack.c.h.b16 %v3947
    %v4112 = vunpack.c.l.b16 %v3948
    %v4113 = vunpack.c.h.b16 %v3948
    %v4114 = vunpack.c.l.b16 %v3949
    %v4115 = vunpack.c.h.b16 %v3949
    %v4116 = vunpack.c.l.b16 %v3950
    %v4117 = vunpack.c.h.b16 %v3950
    %v4118 = vunpack.c.l.b16 %v3951
    %v4119 = vunpack.c.h.b16 %v3951
    %v4120 = vunpack.c.l.b16 %v3952
    %v4121 = vunpack.c.h.b16 %v3952
    %v4122 = vunpack.c.l.b16 %v3953
    %v4123 = vunpack.c.h.b16 %v3953
    %v4124 = vunpack.c.l.b16 %v3954
    %v4125 = vunpack.c.h.b16 %v3954
    %v4126 = vunpack.c.l.b16 %v3955
    %v4127 = vunpack.c.h.b16 %v3955
    %v4128 = vunpack.c.l.b16 %v3956
    %v4129 = vunpack.c.h.b16 %v3956
    %v4130 = vunpack.c.l.b16 %v3957
    %v4131 = vunpack.c.h.b16 %v3957
    %v4132 = vunpack.c.l.b16 %v3958
    %v4133 = vunpack.c.h.b16 %v3958
    %v4134 = vunpack.c.l.b16 %v3959
    %v4135 = vunpack.c.h.b16 %v3959
    %v4136 = vunpack.c.l.b16 %v3960
    %v4137 = vunpack.c.h.b16 %v3960
    %v4138 = vunpack.c.l.b16 %v3961
    %v4139 = vunpack.c.h.b16 %v3961
    %v4140 = vunpack.c.l.b16 %v3962
    %v4141 = vunpack.c.h.b16 %v3962
    %v4142 = vunpack.c.l.b16 %v3963
    %v4143 = vunpack.c.h.b16 %v3963
    %v4144 = vunpack.c.l.b16 %v3964
    %v4145 = vunpack.c.h.b16 %v3964
    %v4146 = vunpack.c.l.b16 %v3965
    %v4147 = vunpack.c.h.b16 %v3965
    %v4148 = vunpack.c.l.b16 %v3966
    %v4149 = vunpack.c.h.b16 %v3966
    %v4150 = vunpack.c.l.b16 %v3967
    %v4151 = vunpack.c.h.b16 %v3967
    %v4152 = vunpack.c.l.b16 %v3968
    %v4153 = vunpack.c.h.b16 %v3968
    %v4154 = vunpack.c.l.b16 %v3969
    %v4155 = vunpack.c.h.b16 %v3969
    %v4156 = vunpack.c.l.b16 %v3970
    %v4157 = vunpack.c.h.b16 %v3970
    %v4158 = vunpack.c.l.b16 %v3971
    %v4159 = vunpack.c.h.b16 %v3971
    %v4160 = vunpack.c.l.b16 %v3972
    %v4161 = vunpack.c.h.b16 %v3972
    %v4162 = vunpack.c.l.b16 %v3973
    %v4163 = vunpack.c.h.b16 %v3973
    %v4164 = vunpack.c.l.b16 %v3974
    %v4165 = vunpack.c.h.b16 %v3974
    %v4166 = vunpack.c.l.b16 %v3975
    %v4167 = vunpack.c.h.b16 %v3975
    %v4168 = vunpack.c.l.b16 %v3976
    %v4169 = vunpack.c.h.b16 %v3976
    %v4170 = vunpack.c.l.b16 %v3977
    %v4171 = vunpack.c.h.b16 %v3977
    %v4172 = vunpack.c.l.b16 %v3978
    %v4173 = vunpack.c.h.b16 %v3978
    %v4174 = vunpack.c.l.b16 %v3979
    %v4175 = vunpack.c.h.b16 %v3979
    %v4176 = vunpack.c.l.b16 %v3980
    %v4177 = vunpack.c.h.b16 %v3980
    %v4178 = vunpack.c.l.b16 %v3981
    %v4179 = vunpack.c.h.b16 %v3981
    %v4180 = vunpack.c.l.b16 %v3982
    %v4181 = vunpack.c.h.b16 %v3982
    %v4182 = vunpack.c.l.b16 %v3983
    %v4183 = vunpack.c.h.b16 %v3983
    %v4184 = vunpack.c.l.b16 %v3984
    %v4185 = vunpack.c.h.b16 %v3984
    %v4186 = vunpack.c.l.b16 %v3985
    %v4187 = vunpack.c.h.b16 %v3985
    %v4188 = vunpack.c.l.b16 %v3986
    %v4189 = vunpack.c.h.b16 %v3986
    %v4190 = vunpack.c.l.b16 %v3987
    %v4191 = vunpack.c.h.b16 %v3987
    %v4192 = vpack.c.b16 %v4066, %v4064
    %v4193 = vpack.c.b16 %v4067, %v4065
    %v4194 = vpack.c.b16 %v4070, %v4068
    %v4195 = vpack.c.b16 %v4071, %v4069
    %v4196 = vpack.c.b16 %v4074, %v4072
    %v4197 = vpack.c.b16 %v4075, %v4073
    %v4198 = vpack.c.b16 %v4078, %v4076
    %v4199 = vpack.c.b16 %v4079, %v4077
    %v4200 = vpack.c.b16 %v4082, %v4080
    %v4201 = vpack.c.b16 %v4083, %v4081
    %v4202 = vpack.c.b16 %v4086, %v4084
    %v4203 = vpack.c.b16 %v4087, %v4085
    %v4204 = vpack.c.b16 %v4090, %v4088
    %v4205 = vpack.c.b16 %v4091, %v4089
    %v4206 = vpack.c.b16 %v4094, %v4092
    %v4207 = vpack.c.b16 %v4095, %v4093
    %v4208 = vpack.c.b16 %v4098, %v4096
    %v4209 = vpack.c.b16 %v4099, %v4097
    %v4210 = vpack.c.b16 %v4102, %v4100
    %v4211 = vpack.c.b16 %v4103, %v4101
    %v4212 = vpack.c.b16 %v4106, %v4104
    %v4213 = vpack.c.b16 %v4107, %v4105
    %v4214 = vpack.c.b16 %v4110, %v4108
    %v4215 = vpack.c.b16 %v4111, %v4109
    %v4216 = vpack.c.b16 %v4114, %v4112
    %v4217 = vpack.c.b16 %v4115, %v4113
    %v4218 = vpack.c.b16 %v4118, %v4116
    %v4219 = vpack.c.b16 %v4119, %v4117
    %v4220 = vpack.c.b16 %v4122, %v4120
    %v4221 = vpack.c.b16 %v4123, %v4121
    %v4222 = vpack.c.b16 %v4126, %v4124
    %v4223 = vpack.c.b16 %v4127, %v4125
    %v4224 = vpack.c.b16 %v4130, %v4128
    %v4225 = vpack.c.b16 %v4131, %v4129
    %v4226 = vpack.c.b16 %v4134, %v4132
    %v4227 = vpack.c.b16 %v4135, %v4133
    %v4228 = vpack.c.b16 %v4138, %v4136
    %v4229 = vpack.c.b16 %v4139, %v4137
    %v4230 = vpack.c.b16 %v4142, %v4140
    %v4231 = vpack.c.b16 %v4143, %v4141
    %v4232 = vpack.c.b16 %v4146, %v4144
    %v4233 = vpack.c.b16 %v4147, %v4145
    %v4234 = vpack.c.b16 %v4150, %v4148
    %v4235 = vpack.c.b16 %v4151, %v4149
    %v4236 = vpack.c.b16 %v4154, %v4152
    %v4237 = vpack.c.b16 %v4155, %v4153
    %v4238 = vpack.c.b16 %v4158, %v4156
    %v4239 = vpack.c.b16 %v4159, %v4157
    %v4240 = vpack.c.b16 %v4162, %v4160
    %v4241 = vpack.c.b16 %v4163, %v4161
    %v4242 = vpack.c.b16 %v4166, %v4164
    %v4243 = vpack.c.b16 %v4167, %v4165
    %v4244 = vpack.c.b16 %v4170, %v4168
    %v4245 = vpack.c.b16 %v4171, %v4169
    %v4246 = vpack.c.b16 %v4174, %v4172
    %v4247 = vpack.c.b16 %v4175, %v4173
    %v4248 = vpack.c.b16 %v4178, %v4176
    %v4249 = vpack.c.b16 %v4179, %v4177
    %v4250 = vpack.c.b16 %v4182, %v4180
    %v4251 = vpack.c.b16 %v4183, %v4181
    %v4252 = vpack.c.b16 %v4186, %v4184
    %v4253 = vpack.c.b16 %v4187, %v4185
    %v4254 = vpack.c.b16 %v4190, %v4188
    %v4255 = vpack.c.b16 %v4191, %v4189
    %4320 = vmatprep.subr.bf16.mxu0 %v4193
    %4321 = vmatpush1.bf16.msra.mxu0 %v4192
    %4322 = vmatprep.subr.bf16.mxu0 %v4195
    %4323 = vmatpush1.bf16.msra.mxu0 %v4194
    %4324 = vmatprep.subr.bf16.mxu0 %v4197
    %4325 = vmatpush1.bf16.msra.mxu0 %v4196
    %4326 = vmatprep.subr.bf16.mxu0 %v4199
    %4327 = vmatpush1.bf16.msra.mxu0 %v4198
    %4328 = vmatprep.subr.bf16.mxu0 %v4201
    %4329 = vmatpush1.bf16.msra.mxu0 %v4200
    %4330 = vmatprep.subr.bf16.mxu0 %v4203
    %4331 = vmatpush1.bf16.msra.mxu0 %v4202
    %4332 = vmatprep.subr.bf16.mxu0 %v4205
    %4333 = vmatpush1.bf16.msra.mxu0 %v4204
    %4334 = vmatprep.subr.bf16.mxu0 %v4207
    %4335 = vmatpush1.bf16.msra.mxu0 %v4206
    %4336 = vmatprep.subr.bf16.mxu0 %v4209
    %4337 = vmatpush1.bf16.msra.mxu0 %v4208
    %4338 = vmatprep.subr.bf16.mxu0 %v4211
    %4339 = vmatpush1.bf16.msra.mxu0 %v4210
    %4340 = vmatprep.subr.bf16.mxu0 %v4213
    %4341 = vmatpush1.bf16.msra.mxu0 %v4212
    %4342 = vmatprep.subr.bf16.mxu0 %v4215
    %4343 = vmatpush1.bf16.msra.mxu0 %v4214
    %4344 = vmatprep.subr.bf16.mxu0 %v4217
    %4345 = vmatpush1.bf16.msra.mxu0 %v4216
    %4346 = vmatprep.subr.bf16.mxu0 %v4219
    %4347 = vmatpush1.bf16.msra.mxu0 %v4218
    %4348 = vmatprep.subr.bf16.mxu0 %v4221
    %4349 = vmatpush1.bf16.msra.mxu0 %v4220
    %4350 = vmatprep.subr.bf16.mxu0 %v4223
    %4351 = vmatpush1.bf16.msra.mxu0 %v4222
    %4352 = vmatprep.mubr.bf16.mxu0 %v3849
    %4353 = vmatmul.mubr.bf16.gmra.mrb[0].mxu0 %v3848
    %v4354 = vpop.f32.mrb[0].mxu0
    %v4355 = vadd.f32 %v3993, %v4354
    %v4356 = vpop.f32.mrb[0].mxu0
    %v4357 = vadd.f32 %v3997, %v4356
    %v4358 = vpop.f32.mrb[0].mxu0
    %v4359 = vadd.f32 %v3993, %v4358
    %v4360 = vpop.f32.mrb[0].mxu0
    %v4361 = vadd.f32 %v3997, %v4360
    %4362 = vmatprep.mubr.bf16.mxu0 %v3853
    %4363 = vmatmul.mubr.bf16.gmra.mrb[0].mxu0 %v3852
    %v4364 = vpop.f32.mrb[0].mxu0
    %v4365 = vadd.f32 %v3993, %v4364
    %v4366 = vpop.f32.mrb[0].mxu0
    %v4367 = vadd.f32 %v3997, %v4366
    %v4368 = vpop.f32.mrb[0].mxu0
    %v4369 = vadd.f32 %v3993, %v4368
    %v4370 = vpop.f32.mrb[0].mxu0
    %v4371 = vadd.f32 %v3997, %v4370
    %4372 = vmatprep.mubr.bf16.mxu0 %v3857
    %4373 = vmatmul.mubr.bf16.gmra.mrb[0].mxu0 %v3856
    %v4374 = vpop.f32.mrb[0].mxu0
    %v4375 = vadd.f32 %v3993, %v4374
    %v4376 = vpop.f32.mrb[0].mxu0
    %v4377 = vadd.f32 %v3997, %v4376
    %v4378 = vpop.f32.mrb[0].mxu0
    %v4379 = vadd.f32 %v3993, %v4378
    %v4380 = vpop.f32.mrb[0].mxu0
    %v4381 = vadd.f32 %v3997, %v4380
    %4382 = vmatprep.mubr.bf16.mxu0 %v3861
    %4383 = vmatmul.mubr.bf16.gmra.mrb[0].mxu0 %v3860
    %v4384 = vpop.f32.mrb[0].mxu0
    %v4385 = vadd.f32 %v3993, %v4384
    %v4386 = vpop.f32.mrb[0].mxu0
    %v4387 = vadd.f32 %v3997, %v4386
    %v4388 = vpop.f32.mrb[0].mxu0
    %v4389 = vadd.f32 %v3993, %v4388
    %v4390 = vpop.f32.mrb[0].mxu0
    %v4391 = vadd.f32 %v3997, %v4390
    %4392 = vmatprep.mubr.bf16.mxu0 %v3865
    %4393 = vmatmul.mubr.bf16.gmra.mrb[0].mxu0 %v3864
    %v4394 = vpop.f32.mrb[0].mxu0
    %v4395 = vadd.f32 %v3993, %v4394
    %v4396 = vpop.f32.mrb[0].mxu0
    %v4397 = vadd.f32 %v3997, %v4396
    %v4398 = vpop.f32.mrb[0].mxu0
    %v4399 = vadd.f32 %v3993, %v4398
    %v4400 = vpop.f32.mrb[0].mxu0
    %v4401 = vadd.f32 %v3997, %v4400
    %4402 = vmatprep.mubr.bf16.mxu0 %v3869
    %4403 = vmatmul.mubr.bf16.gmra.mrb[0].mxu0 %v3868
    %v4404 = vpop.f32.mrb[0].mxu0
    %v4405 = vadd.f32 %v3993, %v4404
    %v4406 = vpop.f32.mrb[0].mxu0
    %v4407 = vadd.f32 %v3997, %v4406
    %v4408 = vpop.f32.mrb[0].mxu0
    %v4409 = vadd.f32 %v3993, %v4408
    %v4410 = vpop.f32.mrb[0].mxu0
    %v4411 = vadd.f32 %v3997, %v4410
    %4412 = vmatprep.mubr.bf16.mxu0 %v3873
    %4413 = vmatmul.mubr.bf16.gmra.mrb[0].mxu0 %v3872
    %v4414 = vpop.f32.mrb[0].mxu0
    %v4415 = vadd.f32 %v3993, %v4414
    %v4416 = vpop.f32.mrb[0].mxu0
    %v4417 = vadd.f32 %v3997, %v4416
    %v4418 = vpop.f32.mrb[0].mxu0
    %v4419 = vadd.f32 %v3993, %v4418
    %v4420 = vpop.f32.mrb[0].mxu0
    %v4421 = vadd.f32 %v3997, %v4420
    %4422 = vmatprep.mubr.bf16.mxu0 %v3877
    %4423 = vmatmul.mubr.bf16.gmra.mrb[0].mxu0 %v3876
    %v4424 = vpop.f32.mrb[0].mxu0
    %v4425 = vadd.f32 %v3993, %v4424
    %v4426 = vpop.f32.mrb[0].mxu0
    %v4427 = vadd.f32 %v3997, %v4426
    %v4428 = vpop.f32.mrb[0].mxu0
    %v4429 = vadd.f32 %v3993, %v4428
    %v4430 = vpop.f32.mrb[0].mxu0
    %v4431 = vadd.f32 %v3997, %v4430
    %4432 = vmatprep.mubr.bf16.mxu0 %v3881
    %4433 = vmatmul.mubr.bf16.gmra.mrb[0].mxu0 %v3880
    %v4434 = vpop.f32.mrb[0].mxu0
    %v4435 = vadd.f32 %v3993, %v4434
    %v4436 = vpop.f32.mrb[0].mxu0
    %v4437 = vadd.f32 %v3997, %v4436
    %v4438 = vpop.f32.mrb[0].mxu0
    %v4439 = vadd.f32 %v3993, %v4438
    %v4440 = vpop.f32.mrb[0].mxu0
    %v4441 = vadd.f32 %v3997, %v4440
    %4442 = vmatprep.mubr.bf16.mxu0 %v3885
    %4443 = vmatmul.mubr.bf16.gmra.mrb[0].mxu0 %v3884
    %v4444 = vpop.f32.mrb[0].mxu0
    %v4445 = vadd.f32 %v3993, %v4444
    %v4446 = vpop.f32.mrb[0].mxu0
    %v4447 = vadd.f32 %v3997, %v4446
    %v4448 = vpop.f32.mrb[0].mxu0
    %v4449 = vadd.f32 %v3993, %v4448
    %v4450 = vpop.f32.mrb[0].mxu0
    %v4451 = vadd.f32 %v3997, %v4450
    %4452 = vmatprep.mubr.bf16.mxu0 %v3889
    %4453 = vmatmul.mubr.bf16.gmra.mrb[0].mxu0 %v3888
    %v4454 = vpop.f32.mrb[0].mxu0
    %v4455 = vadd.f32 %v3993, %v4454
    %v4456 = vpop.f32.mrb[0].mxu0
    %v4457 = vadd.f32 %v3997, %v4456
    %v4458 = vpop.f32.mrb[0].mxu0
    %v4459 = vadd.f32 %v3993, %v4458
    %v4460 = vpop.f32.mrb[0].mxu0
    %v4461 = vadd.f32 %v3997, %v4460
    %4462 = vmatprep.mubr.bf16.mxu0 %v3893
    %4463 = vmatmul.mubr.bf16.gmra.mrb[0].mxu0 %v3892
    %v4464 = vpop.f32.mrb[0].mxu0
    %v4465 = vadd.f32 %v3993, %v4464
    %v4466 = vpop.f32.mrb[0].mxu0
    %v4467 = vadd.f32 %v3997, %v4466
    %v4468 = vpop.f32.mrb[0].mxu0
    %v4469 = vadd.f32 %v3993, %v4468
    %v4470 = vpop.f32.mrb[0].mxu0
    %v4471 = vadd.f32 %v3997, %v4470
    %4472 = vmatprep.mubr.bf16.mxu0 %v3897
    %4473 = vmatmul.mubr.bf16.gmra.mrb[0].mxu0 %v3896
    %v4474 = vpop.f32.mrb[0].mxu0
    %v4475 = vadd.f32 %v3993, %v4474
    %v4476 = vpop.f32.mrb[0].mxu0
    %v4477 = vadd.f32 %v3997, %v4476
    %v4478 = vpop.f32.mrb[0].mxu0
    %v4479 = vadd.f32 %v3993, %v4478
    %v4480 = vpop.f32.mrb[0].mxu0
    %v4481 = vadd.f32 %v3997, %v4480
    %4482 = vmatprep.mubr.bf16.mxu0 %v3901
    %4483 = vmatmul.mubr.bf16.gmra.mrb[0].mxu0 %v3900
    %v4484 = vpop.f32.mrb[0].mxu0
    %v4485 = vadd.f32 %v3993, %v4484
    %v4486 = vpop.f32.mrb[0].mxu0
    %v4487 = vadd.f32 %v3997, %v4486
    %v4488 = vpop.f32.mrb[0].mxu0
    %v4489 = vadd.f32 %v3993, %v4488
    %v4490 = vpop.f32.mrb[0].mxu0
    %v4491 = vadd.f32 %v3997, %v4490
    %4492 = vmatprep.mubr.bf16.mxu0 %v3905
    %4493 = vmatmul.mubr.bf16.gmra.mrb[0].mxu0 %v3904
    %v4494 = vpop.f32.mrb[0].mxu0
    %v4495 = vadd.f32 %v3993, %v4494
    %v4496 = vpop.f32.mrb[0].mxu0
    %v4497 = vadd.f32 %v3997, %v4496
    %v4498 = vpop.f32.mrb[0].mxu0
    %v4499 = vadd.f32 %v3993, %v4498
    %v4500 = vpop.f32.mrb[0].mxu0
    %v4501 = vadd.f32 %v3997, %v4500
    %4502 = vmatprep.mubr.bf16.mxu0 %v3909
    %4503 = vmatmul.mubr.bf16.gmra.mrb[0].mxu0 %v3908
    %v4504 = vpop.f32.mrb[0].mxu0
    %v4505 = vadd.f32 %v3993, %v4504
    %v4506 = vpop.f32.mrb[0].mxu0
    %v4507 = vadd.f32 %v3997, %v4506
    %v4508 = vpop.f32.mrb[0].mxu0
    %v4509 = vadd.f32 %v3993, %v4508
    %v4510 = vpop.f32.mrb[0].mxu0
    %v4511 = vadd.f32 %v3997, %v4510
    %4512 = vmatprep.mubr.bf16.mxu0 %v3913
    %4513 = vmatmul.mubr.bf16.gmra.mrb[0].mxu0 %v3912
    %v4514 = vpop.f32.mrb[0].mxu0
    %v4515 = vadd.f32 %v3993, %v4514
    %v4516 = vpop.f32.mrb[0].mxu0
    %v4517 = vadd.f32 %v3997, %v4516
    %v4518 = vpop.f32.mrb[0].mxu0
    %v4519 = vadd.f32 %v3993, %v4518
    %v4520 = vpop.f32.mrb[0].mxu0
    %v4521 = vadd.f32 %v3997, %v4520
    %4522 = vmatprep.mubr.bf16.mxu0 %v3917
    %4523 = vmatmul.mubr.bf16.gmra.mrb[0].mxu0 %v3916
    %v4524 = vpop.f32.mrb[0].mxu0
    %v4525 = vadd.f32 %v3993, %v4524
    %v4526 = vpop.f32.mrb[0].mxu0
    %v4527 = vadd.f32 %v3997, %v4526
    %v4528 = vpop.f32.mrb[0].mxu0
    %v4529 = vadd.f32 %v3993, %v4528
    %v4530 = vpop.f32.mrb[0].mxu0
    %v4531 = vadd.f32 %v3997, %v4530
    %4532 = vmatprep.mubr.bf16.mxu0 %v3921
    %4533 = vmatmul.mubr.bf16.gmra.mrb[0].mxu0 %v3920
    %v4534 = vpop.f32.mrb[0].mxu0
    %v4535 = vadd.f32 %v3993, %v4534
    %v4536 = vpop.f32.mrb[0].mxu0
    %v4537 = vadd.f32 %v3997, %v4536
    %v4538 = vpop.f32.mrb[0].mxu0
    %v4539 = vadd.f32 %v3993, %v4538
    %v4540 = vpop.f32.mrb[0].mxu0
    %v4541 = vadd.f32 %v3997, %v4540
    %4542 = vdwg.mxu0
    %4543 = vmatprep.subr.bf16.mxu0 %v4225
    %4544 = vmatpush1.bf16.msra.mxu0 %v4224
    %4545 = vmatprep.subr.bf16.mxu0 %v4227
    %4546 = vmatpush1.bf16.msra.mxu0 %v4226
    %4547 = vmatprep.subr.bf16.mxu0 %v4229
    %4548 = vmatpush1.bf16.msra.mxu0 %v4228
    %4549 = vmatprep.subr.bf16.mxu0 %v4231
    %4550 = vmatpush1.bf16.msra.mxu0 %v4230
    %4551 = vmatprep.subr.bf16.mxu0 %v4233
    %4552 = vmatpush1.bf16.msra.mxu0 %v4232
    %4553 = vmatprep.subr.bf16.mxu0 %v4235
    %4554 = vmatpush1.bf16.msra.mxu0 %v4234
    %4555 = vmatprep.subr.bf16.mxu0 %v4237
    %4556 = vmatpush1.bf16.msra.mxu0 %v4236
    %4557 = vmatprep.subr.bf16.mxu0 %v4239
    %4558 = vmatpush1.bf16.msra.mxu0 %v4238
    %4559 = vmatprep.subr.bf16.mxu0 %v4241
    %4560 = vmatpush1.bf16.msra.mxu0 %v4240
    %4561 = vmatprep.subr.bf16.mxu0 %v4243
    %4562 = vmatpush1.bf16.msra.mxu0 %v4242
    %4563 = vmatprep.subr.bf16.mxu0 %v4245
    %4564 = vmatpush1.bf16.msra.mxu0 %v4244
    %4565 = vmatprep.subr.bf16.mxu0 %v4247
    %4566 = vmatpush1.bf16.msra.mxu0 %v4246
    %4567 = vmatprep.subr.bf16.mxu0 %v4249
    %4568 = vmatpush1.bf16.msra.mxu0 %v4248
    %4569 = vmatprep.subr.bf16.mxu0 %v4251
    %4570 = vmatpush1.bf16.msra.mxu0 %v4250
    %4571 = vmatprep.subr.bf16.mxu0 %v4253
    %4572 = vmatpush1.bf16.msra.mxu0 %v4252
    %4573 = vmatprep.subr.bf16.mxu0 %v4255
    %4574 = vmatpush1.bf16.msra.mxu0 %v4254
    %4575 = vmatprep.mubr.bf16.mxu0 %v3851
    %4576 = vmatmul.mubr.bf16.gmra.mrb[0].mxu0 %v3850
    %v4577 = vpop.f32.mrb[0].mxu0
    %v4578 = vadd.f32 %v4355, %v4577
    %v4579 = vpop.f32.mrb[0].mxu0
    %v4580 = vadd.f32 %v4357, %v4579
    %v4581 = vpop.f32.mrb[0].mxu0
    %v4582 = vadd.f32 %v4359, %v4581
    %v4583 = vpop.f32.mrb[0].mxu0
    %v4584 = vadd.f32 %v4361, %v4583
    %4585 = vmatprep.mubr.bf16.mxu0 %v3855
    %4586 = vmatmul.mubr.bf16.gmra.mrb[0].mxu0 %v3854
    %v4587 = vpop.f32.mrb[0].mxu0
    %v4588 = vadd.f32 %v4365, %v4587
    %v4589 = vpop.f32.mrb[0].mxu0
    %v4590 = vadd.f32 %v4367, %v4589
    %v4591 = vpop.f32.mrb[0].mxu0
    %v4592 = vadd.f32 %v4369, %v4591
    %v4593 = vpop.f32.mrb[0].mxu0
    %v4594 = vadd.f32 %v4371, %v4593
    %4595 = vmatprep.mubr.bf16.mxu0 %v3859
    %4596 = vmatmul.mubr.bf16.gmra.mrb[0].mxu0 %v3858
    %v4597 = vpop.f32.mrb[0].mxu0
    %v4598 = vadd.f32 %v4375, %v4597
    %v4599 = vpop.f32.mrb[0].mxu0
    %v4600 = vadd.f32 %v4377, %v4599
    %v4601 = vpop.f32.mrb[0].mxu0
    %v4602 = vadd.f32 %v4379, %v4601
    %v4603 = vpop.f32.mrb[0].mxu0
    %v4604 = vadd.f32 %v4381, %v4603
    %4605 = vmatprep.mubr.bf16.mxu0 %v3863
    %4606 = vmatmul.mubr.bf16.gmra.mrb[0].mxu0 %v3862
    %v4607 = vpop.f32.mrb[0].mxu0
    %v4608 = vadd.f32 %v4385, %v4607
    %v4609 = vpop.f32.mrb[0].mxu0
    %v4610 = vadd.f32 %v4387, %v4609
    %v4611 = vpop.f32.mrb[0].mxu0
    %v4612 = vadd.f32 %v4389, %v4611
    %v4613 = vpop.f32.mrb[0].mxu0
    %v4614 = vadd.f32 %v4391, %v4613
    %4615 = vmatprep.mubr.bf16.mxu0 %v3867
    %4616 = vmatmul.mubr.bf16.gmra.mrb[0].mxu0 %v3866
    %v4617 = vpop.f32.mrb[0].mxu0
    %v4618 = vadd.f32 %v4395, %v4617
    %v4619 = vpop.f32.mrb[0].mxu0
    %v4620 = vadd.f32 %v4397, %v4619
    %v4621 = vpop.f32.mrb[0].mxu0
    %v4622 = vadd.f32 %v4399, %v4621
    %v4623 = vpop.f32.mrb[0].mxu0
    %v4624 = vadd.f32 %v4401, %v4623
    %4625 = vmatprep.mubr.bf16.mxu0 %v3871
    %4626 = vmatmul.mubr.bf16.gmra.mrb[0].mxu0 %v3870
    %v4627 = vpop.f32.mrb[0].mxu0
    %v4628 = vadd.f32 %v4405, %v4627
    %v4629 = vpop.f32.mrb[0].mxu0
    %v4630 = vadd.f32 %v4407, %v4629
    %v4631 = vpop.f32.mrb[0].mxu0
    %v4632 = vadd.f32 %v4409, %v4631
    %v4633 = vpop.f32.mrb[0].mxu0
    %v4634 = vadd.f32 %v4411, %v4633
    %4635 = vmatprep.mubr.bf16.mxu0 %v3875
    %4636 = vmatmul.mubr.bf16.gmra.mrb[0].mxu0 %v3874
    %v4637 = vpop.f32.mrb[0].mxu0
    %v4638 = vadd.f32 %v4415, %v4637
    %v4639 = vpop.f32.mrb[0].mxu0
    %v4640 = vadd.f32 %v4417, %v4639
    %v4641 = vpop.f32.mrb[0].mxu0
    %v4642 = vadd.f32 %v4419, %v4641
    %v4643 = vpop.f32.mrb[0].mxu0
    %v4644 = vadd.f32 %v4421, %v4643
    %4645 = vmatprep.mubr.bf16.mxu0 %v3879
    %4646 = vmatmul.mubr.bf16.gmra.mrb[0].mxu0 %v3878
    %v4647 = vpop.f32.mrb[0].mxu0
    %v4648 = vadd.f32 %v4425, %v4647
    %v4649 = vpop.f32.mrb[0].mxu0
    %v4650 = vadd.f32 %v4427, %v4649
    %v4651 = vpop.f32.mrb[0].mxu0
    %v4652 = vadd.f32 %v4429, %v4651
    %v4653 = vpop.f32.mrb[0].mxu0
    %v4654 = vadd.f32 %v4431, %v4653
    %4655 = vmatprep.mubr.bf16.mxu0 %v3883
    %4656 = vmatmul.mubr.bf16.gmra.mrb[0].mxu0 %v3882
    %v4657 = vpop.f32.mrb[0].mxu0
    %v4658 = vadd.f32 %v4435, %v4657
    %v4659 = vpop.f32.mrb[0].mxu0
    %v4660 = vadd.f32 %v4437, %v4659
    %v4661 = vpop.f32.mrb[0].mxu0
    %v4662 = vadd.f32 %v4439, %v4661
    %v4663 = vpop.f32.mrb[0].mxu0
    %v4664 = vadd.f32 %v4441, %v4663
    %4665 = vmatprep.mubr.bf16.mxu0 %v3887
    %4666 = vmatmul.mubr.bf16.gmra.mrb[0].mxu0 %v3886
    %v4667 = vpop.f32.mrb[0].mxu0
    %v4668 = vadd.f32 %v4445, %v4667
    %v4669 = vpop.f32.mrb[0].mxu0
    %v4670 = vadd.f32 %v4447, %v4669
    %v4671 = vpop.f32.mrb[0].mxu0
    %v4672 = vadd.f32 %v4449, %v4671
    %v4673 = vpop.f32.mrb[0].mxu0
    %v4674 = vadd.f32 %v4451, %v4673
    %4675 = vmatprep.mubr.bf16.mxu0 %v3891
    %4676 = vmatmul.mubr.bf16.gmra.mrb[0].mxu0 %v3890
    %v4677 = vpop.f32.mrb[0].mxu0
    %v4678 = vadd.f32 %v4455, %v4677
    %v4679 = vpop.f32.mrb[0].mxu0
    %v4680 = vadd.f32 %v4457, %v4679
    %v4681 = vpop.f32.mrb[0].mxu0
    %v4682 = vadd.f32 %v4459, %v4681
    %v4683 = vpop.f32.mrb[0].mxu0
    %v4684 = vadd.f32 %v4461, %v4683
    %4685 = vmatprep.mubr.bf16.mxu0 %v3895
    %4686 = vmatmul.mubr.bf16.gmra.mrb[0].mxu0 %v3894
    %v4687 = vpop.f32.mrb[0].mxu0
    %v4688 = vadd.f32 %v4465, %v4687
    %v4689 = vpop.f32.mrb[0].mxu0
    %v4690 = vadd.f32 %v4467, %v4689
    %v4691 = vpop.f32.mrb[0].mxu0
    %v4692 = vadd.f32 %v4469, %v4691
    %v4693 = vpop.f32.mrb[0].mxu0
    %v4694 = vadd.f32 %v4471, %v4693
    %4695 = vmatprep.mubr.bf16.mxu0 %v3899
    %4696 = vmatmul.mubr.bf16.gmra.mrb[0].mxu0 %v3898
    %v4697 = vpop.f32.mrb[0].mxu0
    %v4698 = vadd.f32 %v4475, %v4697
    %v4699 = vpop.f32.mrb[0].mxu0
    %v4700 = vadd.f32 %v4477, %v4699
    %v4701 = vpop.f32.mrb[0].mxu0
    %v4702 = vadd.f32 %v4479, %v4701
    %v4703 = vpop.f32.mrb[0].mxu0
    %v4704 = vadd.f32 %v4481, %v4703
    %4705 = vmatprep.mubr.bf16.mxu0 %v3903
    %4706 = vmatmul.mubr.bf16.gmra.mrb[0].mxu0 %v3902
    %v4707 = vpop.f32.mrb[0].mxu0
    %v4708 = vadd.f32 %v4485, %v4707
    %v4709 = vpop.f32.mrb[0].mxu0
    %v4710 = vadd.f32 %v4487, %v4709
    %v4711 = vpop.f32.mrb[0].mxu0
    %v4712 = vadd.f32 %v4489, %v4711
    %v4713 = vpop.f32.mrb[0].mxu0
    %v4714 = vadd.f32 %v4491, %v4713
    %4715 = vmatprep.mubr.bf16.mxu0 %v3907
    %4716 = vmatmul.mubr.bf16.gmra.mrb[0].mxu0 %v3906
    %v4717 = vpop.f32.mrb[0].mxu0
    %v4718 = vadd.f32 %v4495, %v4717
    %v4719 = vpop.f32.mrb[0].mxu0
    %v4720 = vadd.f32 %v4497, %v4719
    %v4721 = vpop.f32.mrb[0].mxu0
    %v4722 = vadd.f32 %v4499, %v4721
    %v4723 = vpop.f32.mrb[0].mxu0
    %v4724 = vadd.f32 %v4501, %v4723
    %4725 = vmatprep.mubr.bf16.mxu0 %v3911
    %4726 = vmatmul.mubr.bf16.gmra.mrb[0].mxu0 %v3910
    %v4727 = vpop.f32.mrb[0].mxu0
    %v4728 = vadd.f32 %v4505, %v4727
    %v4729 = vpop.f32.mrb[0].mxu0
    %v4730 = vadd.f32 %v4507, %v4729
    %v4731 = vpop.f32.mrb[0].mxu0
    %v4732 = vadd.f32 %v4509, %v4731
    %v4733 = vpop.f32.mrb[0].mxu0
    %v4734 = vadd.f32 %v4511, %v4733
    %4735 = vmatprep.mubr.bf16.mxu0 %v3915
    %4736 = vmatmul.mubr.bf16.gmra.mrb[0].mxu0 %v3914
    %v4737 = vpop.f32.mrb[0].mxu0
    %v4738 = vadd.f32 %v4515, %v4737
    %v4739 = vpop.f32.mrb[0].mxu0
    %v4740 = vadd.f32 %v4517, %v4739
    %v4741 = vpop.f32.mrb[0].mxu0
    %v4742 = vadd.f32 %v4519, %v4741
    %v4743 = vpop.f32.mrb[0].mxu0
    %v4744 = vadd.f32 %v4521, %v4743
    %4745 = vmatprep.mubr.bf16.mxu0 %v3919
    %4746 = vmatmul.mubr.bf16.gmra.mrb[0].mxu0 %v3918
    %v4747 = vpop.f32.mrb[0].mxu0
    %v4748 = vadd.f32 %v4525, %v4747
    %v4749 = vpop.f32.mrb[0].mxu0
    %v4750 = vadd.f32 %v4527, %v4749
    %v4751 = vpop.f32.mrb[0].mxu0
    %v4752 = vadd.f32 %v4529, %v4751
    %v4753 = vpop.f32.mrb[0].mxu0
    %v4754 = vadd.f32 %v4531, %v4753
    %4755 = vmatprep.mubr.bf16.mxu0 %v3923
    %4756 = vmatmul.mubr.bf16.gmra.mrb[0].mxu0 %v3922
    %v4757 = vpop.f32.mrb[0].mxu0
    %v4758 = vadd.f32 %v4535, %v4757
    %v4759 = vpop.f32.mrb[0].mxu0
    %v4760 = vadd.f32 %v4537, %v4759
    %v4761 = vpop.f32.mrb[0].mxu0
    %v4762 = vadd.f32 %v4539, %v4761
    %v4763 = vpop.f32.mrb[0].mxu0
    %v4764 = vadd.f32 %v4541, %v4763
    %4765 = vdwg.mxu0
    %v4766 = vmul.f32 %v4578, 0.2
    %v4767 = vmul.f32 %v4580, 0.2
    %v4768 = vmul.f32 %v4582, 0.2
    %v4769 = vmul.f32 %v4584, 0.2
    %v4770 = vmul.f32 %v4588, 0.2
    %v4771 = vmul.f32 %v4590, 0.2
    %v4772 = vmul.f32 %v4592, 0.2
    %v4773 = vmul.f32 %v4594, 0.2
    %v4774 = vmul.f32 %v4598, 0.2
    %v4775 = vmul.f32 %v4600, 0.2
    %v4776 = vmul.f32 %v4602, 0.2
    %v4777 = vmul.f32 %v4604, 0.2
    %v4778 = vmul.f32 %v4608, 0.2
    %v4779 = vmul.f32 %v4610, 0.2
    %v4780 = vmul.f32 %v4612, 0.2
    %v4781 = vmul.f32 %v4614, 0.2
    %v4782 = vmul.f32 %v4618, 0.2
    %v4783 = vmul.f32 %v4620, 0.2
    %v4784 = vmul.f32 %v4622, 0.2
    %v4785 = vmul.f32 %v4624, 0.2
    %v4786 = vmul.f32 %v4628, 0.2
    %v4787 = vmul.f32 %v4630, 0.2
    %v4788 = vmul.f32 %v4632, 0.2
    %v4789 = vmul.f32 %v4634, 0.2
    %v4790 = vmul.f32 %v4638, 0.2
    %v4791 = vmul.f32 %v4640, 0.2
    %v4792 = vmul.f32 %v4642, 0.2
    %v4793 = vmul.f32 %v4644, 0.2
    %v4794 = vmul.f32 %v4648, 0.2
    %v4795 = vmul.f32 %v4650, 0.2
    %v4796 = vmul.f32 %v4652, 0.2
    %v4797 = vmul.f32 %v4654, 0.2
    %v4798 = vmul.f32 %v4658, 0.2
    %v4799 = vmul.f32 %v4660, 0.2
    %v4800 = vmul.f32 %v4662, 0.2
    %v4801 = vmul.f32 %v4664, 0.2
    %v4802 = vmul.f32 %v4668, 0.2
    %v4803 = vmul.f32 %v4670, 0.2
    %v4804 = vmul.f32 %v4672, 0.2
    %v4805 = vmul.f32 %v4674, 0.2
    %v4806 = vmul.f32 %v4678, 0.2
    %v4807 = vmul.f32 %v4680, 0.2
    %v4808 = vmul.f32 %v4682, 0.2
    %v4809 = vmul.f32 %v4684, 0.2
    %v4810 = vmul.f32 %v4688, 0.2
    %v4811 = vmul.f32 %v4690, 0.2
    %v4812 = vmul.f32 %v4692, 0.2
    %v4813 = vmul.f32 %v4694, 0.2
    %v4814 = vmul.f32 %v4698, 0.2
    %v4815 = vmul.f32 %v4700, 0.2
    %v4816 = vmul.f32 %v4702, 0.2
    %v4817 = vmul.f32 %v4704, 0.2
    %v4818 = vmul.f32 %v4708, 0.2
    %v4819 = vmul.f32 %v4710, 0.2
    %v4820 = vmul.f32 %v4712, 0.2
    %v4821 = vmul.f32 %v4714, 0.2
    %v4822 = vmul.f32 %v4718, 0.2
    %v4823 = vmul.f32 %v4720, 0.2
    %v4824 = vmul.f32 %v4722, 0.2
    %v4825 = vmul.f32 %v4724, 0.2
    %v4826 = vmul.f32 %v4728, 0.2
    %v4827 = vmul.f32 %v4730, 0.2
    %v4828 = vmul.f32 %v4732, 0.2
    %v4829 = vmul.f32 %v4734, 0.2
    %v4830 = vmul.f32 %v4738, 0.2
    %v4831 = vmul.f32 %v4740, 0.2
    %v4832 = vmul.f32 %v4742, 0.2
    %v4833 = vmul.f32 %v4744, 0.2
    %v4834 = vmul.f32 %v4748, 0.2
    %v4835 = vmul.f32 %v4750, 0.2
    %v4836 = vmul.f32 %v4752, 0.2
    %v4837 = vmul.f32 %v4754, 0.2
    %v4838 = vmul.f32 %v4758, 0.2
    %v4839 = vmul.f32 %v4760, 0.2
    %v4840 = vmul.f32 %v4762, 0.2
    %v4841 = vmul.f32 %v4764, 0.2
    %v4842 = vmax.f32 %v4578, %v4766
    %v4843 = vmax.f32 %v4580, %v4767
    %v4844 = vmax.f32 %v4582, %v4768
    %v4845 = vmax.f32 %v4584, %v4769
    %v4846 = vmax.f32 %v4588, %v4770
    %v4847 = vmax.f32 %v4590, %v4771
    %v4848 = vmax.f32 %v4592, %v4772
    %v4849 = vmax.f32 %v4594, %v4773
    %v4850 = vmax.f32 %v4598, %v4774
    %v4851 = vmax.f32 %v4600, %v4775
    %v4852 = vmax.f32 %v4602, %v4776
    %v4853 = vmax.f32 %v4604, %v4777
    %v4854 = vmax.f32 %v4608, %v4778
    %v4855 = vmax.f32 %v4610, %v4779
    %v4856 = vmax.f32 %v4612, %v4780
    %v4857 = vmax.f32 %v4614, %v4781
    %v4858 = vmax.f32 %v4618, %v4782
    %v4859 = vmax.f32 %v4620, %v4783
    %v4860 = vmax.f32 %v4622, %v4784
    %v4861 = vmax.f32 %v4624, %v4785
    %v4862 = vmax.f32 %v4628, %v4786
    %v4863 = vmax.f32 %v4630, %v4787
    %v4864 = vmax.f32 %v4632, %v4788
    %v4865 = vmax.f32 %v4634, %v4789
    %v4866 = vmax.f32 %v4638, %v4790
    %v4867 = vmax.f32 %v4640, %v4791
    %v4868 = vmax.f32 %v4642, %v4792
    %v4869 = vmax.f32 %v4644, %v4793
    %v4870 = vmax.f32 %v4648, %v4794
    %v4871 = vmax.f32 %v4650, %v4795
    %v4872 = vmax.f32 %v4652, %v4796
    %v4873 = vmax.f32 %v4654, %v4797
    %v4874 = vmax.f32 %v4658, %v4798
    %v4875 = vmax.f32 %v4660, %v4799
    %v4876 = vmax.f32 %v4662, %v4800
    %v4877 = vmax.f32 %v4664, %v4801
    %v4878 = vmax.f32 %v4668, %v4802
    %v4879 = vmax.f32 %v4670, %v4803
    %v4880 = vmax.f32 %v4672, %v4804
    %v4881 = vmax.f32 %v4674, %v4805
    %v4882 = vmax.f32 %v4678, %v4806
    %v4883 = vmax.f32 %v4680, %v4807
    %v4884 = vmax.f32 %v4682, %v4808
    %v4885 = vmax.f32 %v4684, %v4809
    %v4886 = vmax.f32 %v4688, %v4810
    %v4887 = vmax.f32 %v4690, %v4811
    %v4888 = vmax.f32 %v4692, %v4812
    %v4889 = vmax.f32 %v4694, %v4813
    %v4890 = vmax.f32 %v4698, %v4814
    %v4891 = vmax.f32 %v4700, %v4815
    %v4892 = vmax.f32 %v4702, %v4816
    %v4893 = vmax.f32 %v4704, %v4817
    %v4894 = vmax.f32 %v4708, %v4818
    %v4895 = vmax.f32 %v4710, %v4819
    %v4896 = vmax.f32 %v4712, %v4820
    %v4897 = vmax.f32 %v4714, %v4821
    %v4898 = vmax.f32 %v4718, %v4822
    %v4899 = vmax.f32 %v4720, %v4823
    %v4900 = vmax.f32 %v4722, %v4824
    %v4901 = vmax.f32 %v4724, %v4825
    %v4902 = vmax.f32 %v4728, %v4826
    %v4903 = vmax.f32 %v4730, %v4827
    %v4904 = vmax.f32 %v4732, %v4828
    %v4905 = vmax.f32 %v4734, %v4829
    %v4906 = vmax.f32 %v4738, %v4830
    %v4907 = vmax.f32 %v4740, %v4831
    %v4908 = vmax.f32 %v4742, %v4832
    %v4909 = vmax.f32 %v4744, %v4833
    %v4910 = vmax.f32 %v4748, %v4834
    %v4911 = vmax.f32 %v4750, %v4835
    %v4912 = vmax.f32 %v4752, %v4836
    %v4913 = vmax.f32 %v4754, %v4837
    %v4914 = vmax.f32 %v4758, %v4838
    %v4915 = vmax.f32 %v4760, %v4839
    %v4916 = vmax.f32 %v4762, %v4840
    %v4917 = vmax.f32 %v4764, %v4841
    %v4918 = vld [vmem:[#allocation11] sm:$0x3]
    %v4919 = vld [vmem:[#allocation2] sm:$0x1]
    %4921 = vset.pattern.permute.xlu0 0
    %4922 = vperm.xlu0 %4921, %v4919
    %v4923 = vpop.permute.xlu0 %4922
    %v4925 = vlaneseq
    %v4926 = vshrl.u32 %v4925, 7
    %v4927 = vsub.s32 0, %v4926
    %v4928 = vrot.slane %v4923, %v4927
    %v4930 = vlaneseq
    %v4931 = vshrl.u32 %v4930, 7
    %v4932 = vsub.s32 0, %v4931
    %v4933 = vrot.slane %v4918, %v4932
    %v4934 = vlaneseq
    %v4935 = vshrl.u32 %v4934, 7
    %v4936 = vsub.s32 1, %v4935
    %v4937 = vrot.slane %v4918, %v4936
    %4940 = vmatprep.subr.mxu0 %v4843
    %4941 = vmatpush1.xpose.msra.mxu0 %v4842
    %4942 = vmatprep.subr.mxu0 %v4845
    %4943 = vmatpush1.xpose.msra.mxu0 %v4844
    %4944 = vmatprep.subr.mxu0 %v4847
    %4945 = vmatpush1.xpose.msra.mxu0 %v4846
    %4946 = vmatprep.subr.mxu0 %v4849
    %4947 = vmatpush1.xpose.msra.mxu0 %v4848
    %4948 = vmatprep.subr.mxu0 %v4851
    %4949 = vmatpush1.xpose.msra.mxu0 %v4850
    %4950 = vmatprep.subr.mxu0 %v4853
    %4951 = vmatpush1.xpose.msra.mxu0 %v4852
    %4952 = vmatprep.subr.mxu0 %v4855
    %4953 = vmatpush1.xpose.msra.mxu0 %v4854
    %4954 = vmatprep.subr.mxu0 %v4857
    %4955 = vmatpush1.xpose.msra.mxu0 %v4856
    %4956 = vmatprep.subr.mxu0 %v4859
    %4957 = vmatpush1.xpose.msra.mxu0 %v4858
    %4958 = vmatprep.subr.mxu0 %v4861
    %4959 = vmatpush1.xpose.msra.mxu0 %v4860
    %4960 = vmatprep.subr.mxu0 %v4863
    %4961 = vmatpush1.xpose.msra.mxu0 %v4862
    %4962 = vmatprep.subr.mxu0 %v4865
    %4963 = vmatpush1.xpose.msra.mxu0 %v4864
    %4964 = vmatprep.subr.mxu0 %v4867
    %4965 = vmatpush1.xpose.msra.mxu0 %v4866
    %4966 = vmatprep.subr.mxu0 %v4869
    %4967 = vmatpush1.xpose.msra.mxu0 %v4868
    %4968 = vmatprep.subr.mxu0 %v4871
    %4969 = vmatpush1.xpose.msra.mxu0 %v4870
    %4970 = vmatprep.subr.mxu0 %v4873
    %4971 = vmatpush1.xpose.msra.mxu0 %v4872
    %4972 = vmatprep.subr.mxu0 %v4875
    %4973 = vmatpush1.xpose.msra.mxu0 %v4874
    %4974 = vmatprep.subr.mxu0 %v4877
    %4975 = vmatpush1.xpose.msra.mxu0 %v4876
    %4976 = vmatprep.subr.mxu0 %v4879
    %4977 = vmatpush1.xpose.msra.mxu0 %v4878
    %4978 = vmatprep.subr.mxu0 %v4881
    %4979 = vmatpush1.xpose.msra.mxu0 %v4880
    %4980 = vmatprep.subr.mxu0 %v4883
    %4981 = vmatpush1.xpose.msra.mxu0 %v4882
    %4982 = vmatprep.subr.mxu0 %v4885
    %4983 = vmatpush1.xpose.msra.mxu0 %v4884
    %4984 = vmatprep.subr.mxu0 %v4887
    %4985 = vmatpush1.xpose.msra.mxu0 %v4886
    %4986 = vmatprep.subr.mxu0 %v4889
    %4987 = vmatpush1.xpose.msra.mxu0 %v4888
    %4988 = vmatprep.subr.mxu0 %v4891
    %4989 = vmatpush1.xpose.msra.mxu0 %v4890
    %4990 = vmatprep.subr.mxu0 %v4893
    %4991 = vmatpush1.xpose.msra.mxu0 %v4892
    %4992 = vmatprep.subr.mxu0 %v4895
    %4993 = vmatpush1.xpose.msra.mxu0 %v4894
    %4994 = vmatprep.subr.mxu0 %v4897
    %4995 = vmatpush1.xpose.msra.mxu0 %v4896
    %4996 = vmatprep.subr.mxu0 %v4899
    %4997 = vmatpush1.xpose.msra.mxu0 %v4898
    %4998 = vmatprep.subr.mxu0 %v4901
    %4999 = vmatpush1.xpose.msra.mxu0 %v4900
    %5000 = vmatprep.subr.mxu0 %v4903
    %5001 = vmatpush1.xpose.msra.mxu0 %v4902
    %5002 = vmatprep.subr.mxu0 %v4905
    %5003 = vmatpush1.xpose.msra.mxu0 %v4904
    %5004 = vmatprep.mubr.f32.mxu0 %v4937
    %5005 = vmatmul.mubr.f32.gmra.mrb[0].mxu0 %v4933
    %v5006 = vpop.f32.mrb[0].mxu0
    %v5007 = vadd.f32 %v4928, %v5006
    %v5008 = vpop.f32.mrb[0].mxu0
    %v5009 = vadd.f32 %v4928, %v5008
    %5010 = vdwg.mxu0
    %5011 = vmatprep.subr.mxu0 %v4907
    %5012 = vmatpush1.xpose.msra.mxu0 %v4906
    %5013 = vmatprep.subr.mxu0 %v4909
    %5014 = vmatpush1.xpose.msra.mxu0 %v4908
    %5015 = vmatprep.subr.mxu0 %v4911
    %5016 = vmatpush1.xpose.msra.mxu0 %v4910
    %5017 = vmatprep.subr.mxu0 %v4913
    %5018 = vmatpush1.xpose.msra.mxu0 %v4912
    %5019 = vmatprep.subr.mxu0 %v4915
    %5020 = vmatpush1.xpose.msra.mxu0 %v4914
    %5021 = vmatprep.subr.mxu0 %v4917
    %5022 = vmatpush1.xpose.msra.mxu0 %v4916
    %5023 = vmatprep.subr.mxu0 0.0
    %5024 = vmatpush1.xpose.msra.mxu0 0.0
    %5025 = vmatprep.subr.mxu0 0.0
    %5026 = vmatpush1.xpose.msra.mxu0 0.0
    %5027 = vmatprep.subr.mxu0 0.0
    %5028 = vmatpush1.xpose.msra.mxu0 0.0
    %5029 = vmatprep.subr.mxu0 0.0
    %5030 = vmatpush1.xpose.msra.mxu0 0.0
    %5031 = vmatprep.subr.mxu0 0.0
    %5032 = vmatpush1.xpose.msra.mxu0 0.0
    %5033 = vmatprep.subr.mxu0 0.0
    %5034 = vmatpush1.xpose.msra.mxu0 0.0
    %5035 = vmatprep.subr.mxu0 0.0
    %5036 = vmatpush1.xpose.msra.mxu0 0.0
    %5037 = vmatprep.subr.mxu0 0.0
    %5038 = vmatpush1.xpose.msra.mxu0 0.0
    %5039 = vmatprep.subr.mxu0 0.0
    %5040 = vmatpush1.xpose.msra.mxu0 0.0
    %5041 = vmatprep.subr.mxu0 0.0
    %5042 = vmatpush1.xpose.msra.mxu0 0.0
    %5043 = vmatprep.subr.mxu0 0.0
    %5044 = vmatpush1.xpose.msra.mxu0 0.0
    %5045 = vmatprep.subr.mxu0 0.0
    %5046 = vmatpush1.xpose.msra.mxu0 0.0
    %5047 = vmatprep.subr.mxu0 0.0
    %5048 = vmatpush1.xpose.msra.mxu0 0.0
    %5049 = vmatprep.subr.mxu0 0.0
    %5050 = vmatpush1.xpose.msra.mxu0 0.0
    %5051 = vmatprep.subr.mxu0 0.0
    %5052 = vmatpush1.xpose.msra.mxu0 0.0
    %5053 = vmatprep.subr.mxu0 0.0
    %5054 = vmatpush1.xpose.msra.mxu0 0.0
    %5055 = vmatprep.subr.mxu0 0.0
    %5056 = vmatpush1.xpose.msra.mxu0 0.0
    %5057 = vmatprep.subr.mxu0 0.0
    %5058 = vmatpush1.xpose.msra.mxu0 0.0
    %5059 = vmatprep.subr.mxu0 0.0
    %5060 = vmatpush1.xpose.msra.mxu0 0.0
    %5061 = vmatprep.subr.mxu0 0.0
    %5062 = vmatpush1.xpose.msra.mxu0 0.0
    %5063 = vmatprep.subr.mxu0 0.0
    %5064 = vmatpush1.xpose.msra.mxu0 0.0
    %5065 = vmatprep.subr.mxu0 0.0
    %5066 = vmatpush1.xpose.msra.mxu0 0.0
    %5067 = vmatprep.subr.mxu0 0.0
    %5068 = vmatpush1.xpose.msra.mxu0 0.0
    %5069 = vmatprep.subr.mxu0 0.0
    %5070 = vmatpush1.xpose.msra.mxu0 0.0
    %5071 = vmatprep.subr.mxu0 0.0
    %5072 = vmatpush1.xpose.msra.mxu0 0.0
    %5073 = vmatprep.subr.mxu0 0.0
    %5074 = vmatpush1.xpose.msra.mxu0 0.0
    %5075 = vmatprep.mubr.f32.mxu0 %v4937
    %5076 = vmatmul.mubr.f32.gmra.mrb[0].mxu0 %v4933
    %v5077 = vpop.f32.mrb[0].mxu0
    %v5078 = vadd.f32 %v4928, %v5077
    %v5079 = vpop.f32.mrb[0].mxu0
    %5080 = vdwg.mxu0
    %v5081 = vsub.f32 0.0, %v5007
    %v5082 = vsub.f32 0.0, %v5009
    %v5083 = vsub.f32 0.0, %v5078
    %v5084 = vmul.f32 %v5081, 1.442695
    %v5085 = vpow.pop %v5084
    %v5086 = vmul.f32 %v5082, 1.442695
    %v5087 = vpow.pop %v5086
    %v5088 = vmul.f32 %v5083, 1.442695
    %v5089 = vpow.pop %v5088
    %v5090 = vadd.f32 %v5085, 1.0
    %v5091 = vadd.f32 %v5087, 1.0
    %v5092 = vadd.f32 %v5089, 1.0
    %v5093 = vrcp.pop %v5090
    %v5094 = vmul.f32 1.0, %v5093
    %v5095 = vrcp.pop %v5091
    %v5096 = vmul.f32 1.0, %v5095
    %v5097 = vrcp.pop %v5092
    %v5098 = vmul.f32 1.0, %v5097
    %v5102 = vcombine.low %v5094, %v5096
    %v5104 = vunpack.c.l.s4 1966171168
    %v5105 = vunpack.c.0.s8 %v5104
    %v5106 = vlaneseq
    %v5107 = vshrl.u32 %v5106, 7
    %v5108 = vsub.s32 %v5105, %v5107
    %v5109 = vrot.slane %v5102, %v5108
    %v5111 = vunpack.c.l.s4 1966171168
    %v5112 = vunpack.c.0.s8 %v5111
    %v5113 = vlaneseq
    %v5114 = vshrl.u32 %v5113, 7
    %v5115 = vsub.s32 %v5112, %v5114
    %v5116 = vrot.slane %v5098, %v5115
    %v5117 = vcombine.low %v5109, %v5116
    %v5119 = vunpack.c.l.s4 1966171168
    %v5120 = vunpack.c.0.s8 %v5119
    %v5121 = vlaneseq
    %v5122 = vshrl.u32 %v5121, 7
    %v5123 = vsub.s32 %v5120, %v5122
    %v5124 = vrot.slane %v5117, %v5123
    %v5126 = vlaneseq
    %vm5127 = vcmp.ge.s32.totalorder %v5126, 0
    %vm5128 = vcmp.lt.s32.totalorder %v5126, 304
    %vm5129 = vmand %vm5127, %vm5128
    %5130 = vst.msk [vmem:[%s7] sm:$0x7] %vm5129, %v5124
    // Predicated region
    $region54: #{discriminator_forward.1} parent=1 // pred_check
      _
    $region55: #{discriminator_forward.1} parent=1 // pred_check_branch
      %5132 = sbr.rel (0) target = $region57
    $region56: #{discriminator_forward.1} parent=1 // pred_region
      _
    $region57: #{discriminator_forward.1} parent=1 // pred_fallthru
      _
    // Predicated region
    $region58: #{discriminator_forward.1} parent=1 // pred_check
      _
    $region59: #{discriminator_forward.1} parent=1 // pred_check_branch
      %5134 = sbr.rel (0) target = $region61
    $region60: #{discriminator_forward.1} parent=1 // pred_region
      _
    $region61: #{discriminator_forward.1} parent=1 // pred_fallthru
      _
    %5135 = vsyncpa [#allocation4], 1
    %5136 = vsyncpa [#allocation6], 1
    %5137 = vsyncpa [#allocation9], 1
    %5138 = vsyncpa [#allocation12], 1

</llo_original>
